<compile_context>
chip_gen: v7x
topology: tpu7x:2x2x1
jax: 0.10.0
libtpu: 0.0.40
codegen_flags: <defaults>
</compile_context>

<pallas_src>
import math

import jax
import jax.numpy as jnp
from jax.experimental import pallas as pl
from jax.experimental.pallas import tpu as pltpu

_INV_SQRT2 = 1.0 / math.sqrt(2.0)


# ---------------------------------------------------------------------------
# Kernel
# ---------------------------------------------------------------------------
def _mlp_kernel(x_ref, w1_ref, b1_ref, w2_ref, b2_ref, o_ref, acc_ref):
    """One (token-tile i, Dmlp-slab k) step of fused fc1 + GELU + fc2."""
    k = pl.program_id(1)

    @pl.when(k == 0)
    def _():
        acc_ref[...] = jnp.zeros_like(acc_ref)

    # fc1 slab: (tm, Din) @ (Din, tn) -> (tm, tn), f32 accumulation on the MXU.
    h = jnp.dot(x_ref[...], w1_ref[...], preferred_element_type=jnp.float32)
    h = h + b1_ref[...]                       # (1, tn) f32 broadcast
    # Exact (erf) GELU in f32 -- matches torch.nn.functional.gelu default.
    h = 0.5 * h * (1.0 + jax.lax.erf(h * _INV_SQRT2))
    # fc2 partial product: (tm, tn) @ (tn, Dout) accumulated into f32 scratch.
    acc_ref[...] += jnp.dot(h.astype(w2_ref.dtype), w2_ref[...],
                            preferred_element_type=jnp.float32)

    @pl.when(k == pl.num_programs(1) - 1)
    def _():
        o_ref[...] = (acc_ref[...] + b2_ref[...]).astype(o_ref.dtype)


# ---------------------------------------------------------------------------
# Planning (generation-aware tiles + VMEM budget)
# ---------------------------------------------------------------------------
def _round_up(x, n):
    return ((x + n - 1) // n) * n


def _vmem_budget_bytes():
    """Usable scoped-VMEM budget: physical capacity minus headroom."""
    try:
        cap = int(pltpu.get_tpu_info().vmem_capacity_bytes)
    except Exception:
        cap = 64 << 20                       # conservative fallback
    if cap <= (64 << 20):                    # v7x-class (64 MiB/TC): leave
        return max(cap - (12 << 20), 24 << 20)  # room for Mosaic scratch
    return cap - (16 << 20)                  # v5e/v6e (128 MiB): ~112 MiB usable


def _vmem_step_bytes(tile_m, tile_n, d_in, d_out, cbytes, obytes):
    """True per-step VMEM footprint (counted once; no re-doubling)."""
    in_blocks = ((tile_m * d_in + d_in * tile_n + tile_n * d_out) * cbytes
                 + (tile_n + d_out) * 4)                 # x, W1, W2, b1, b2
    out_block = tile_m * d_out * obytes
    pipelined = 2 * (in_blocks + out_block)              # double-buffered DMA
    scratch = tile_m * d_out * 4                         # f32 accumulator
    live_h = tile_m * tile_n * 4                         # live f32 fc1 output
    return pipelined + scratch + live_h


def plan_tiles(m, d_in, d_mlp, d_out, *, out_dtype, compute_dtype=jnp.bfloat16,
               tile_m=None, tile_n=None):
    """Pick (tile_m, tile_n, vmem_limit_bytes) for this generation/problem."""
    cbytes = jnp.dtype(compute_dtype).itemsize
    obytes = jnp.dtype(out_dtype).itemsize
    budget = _vmem_budget_bytes()
    big_part = budget > (80 << 20)           # 128-MiB generations (v5e/v6e)

    m16 = _round_up(max(int(m), 1), 16)

    # tile_m: arithmetic-intensity knob (per-step FLOPs/weight-byte ~ tile_m).
    if tile_m is None:
        tile_m = 1024 if big_part else 512
    tile_m = max(16, min(_round_up(tile_m, 16), m16))
    # Megacore (v7x): keep >= 2 token tiles so neither TensorCore idles.
    if (m16 + tile_m - 1) // tile_m < 2 and m16 >= 32:
        tile_m = _round_up((m16 + 1) // 2, 16)

    # tile_n: Dmlp slab width, 256-aligned for the 256-wide MXU on v6e/v7x.
    n_align = 256 if d_mlp >= 256 else 128
    if tile_n is None:
        tile_n = 1024
    tile_n = max(n_align, min(_round_up(tile_n, n_align),
                              _round_up(d_mlp, n_align)))

    # Shrink until the double-buffered pipeline fits the VMEM budget.
    headroom = 4 << 20
    while _vmem_step_bytes(tile_m, tile_n, d_in, d_out,
                           cbytes, obytes) + headroom > budget:
        if tile_n > n_align:
            tile_n = max(n_align, _round_up(tile_n // 2, n_align))
        elif tile_m > 128:
            tile_m = max(128, _round_up(tile_m // 2, 16))
        elif tile_m > 16:
            tile_m = max(16, _round_up(tile_m // 2, 16))
        else:
            break

    vmem_limit = _vmem_step_bytes(tile_m, tile_n, d_in, d_out,
                                  cbytes, obytes) + headroom
    vmem_limit = int(min(budget, max(vmem_limit, 16 << 20)))
    return tile_m, tile_n, vmem_limit


# ---------------------------------------------------------------------------
# One-time parameter preparation (hoisted out of the per-forward path)
# ---------------------------------------------------------------------------
def prepare_params(w1, b1, w2, b2, *, tile_n, compute_dtype=jnp.bfloat16):
    """Cast weights to the MXU compute dtype and zero-pad Dmlp to a tile_n
    multiple.  Run ONCE per parameter set -- it costs a full read+write of the
    weights in HBM, which must not be paid on every forward."""
    d_in, d_mlp = w1.shape
    d_out = w2.shape[1]
    n_pad = _round_up(d_mlp, tile_n)
    w1c = w1.astype(compute_dtype)
    w2c = w2.astype(compute_dtype)
    b1f = b1.astype(jnp.float32)
    if n_pad != d_mlp:
        w1c = jnp.pad(w1c, ((0, 0), (0, n_pad - d_mlp)))
        w2c = jnp.pad(w2c, ((0, n_pad - d_mlp), (0, 0)))
        b1f = jnp.pad(b1f, (0, n_pad - d_mlp))
    return (w1c, b1f.reshape(1, n_pad), w2c,
            b2.astype(jnp.float32).reshape(1, d_out))


# ---------------------------------------------------------------------------
# Forward (prepared-parameter fast path + convenience wrapper)
# ---------------------------------------------------------------------------
def mlp_block_prepared(x, w1c, b1_2d, w2c, b2_2d, *, tile_m, tile_n,
                       vmem_limit, out_dtype=None):
    """x: [..., Din]; w1c: [Din, Npad] (compute dtype); b1_2d: [1, Npad] f32;
    w2c: [Npad, Dout]; b2_2d: [1, Dout] f32."""
    orig_shape = x.shape
    d_in, n_pad = w1c.shape
    d_out = w2c.shape[1]
    assert orig_shape[-1] == d_in, "fc1 in_features must match x's last dim"
    assert n_pad % tile_n == 0
    out_dtype = out_dtype or x.dtype
    compute_dtype = w1c.dtype
    cbytes = jnp.dtype(compute_dtype).itemsize
    obytes = jnp.dtype(out_dtype).itemsize

    x2d = x.reshape(-1, d_in).astype(compute_dtype)
    m = x2d.shape[0]
    tile_m = max(16, min(tile_m, _round_up(m, 16)))
    m_pad = _round_up(m, tile_m)
    if m_pad != m:
        x2d = jnp.pad(x2d, ((0, m_pad - m), (0, 0)))

    grid = (m_pad // tile_m, n_pad // tile_n)

    # W1/W2 index_maps ignore i, so the weights are streamed once per token
    # tile -- bill the scheduler for the real HBM traffic.
    cost = pl.CostEstimate(
        flops=2 * m_pad * d_in * n_pad + 2 * m_pad * n_pad * d_out,
        transcendentals=m_pad * n_pad,
        bytes_accessed=(x2d.size * cbytes
                        + grid[0] * (w1c.size + w2c.size) * cbytes
                        + grid[0] * (b1_2d.size + b2_2d.size) * 4
                        + m_pad * d_out * obytes),
    )

    out = pl.pallas_call(
        _mlp_kernel,
        out_shape=jax.ShapeDtypeStruct((m_pad, d_out), out_dtype),
        grid_spec=pltpu.PrefetchScalarGridSpec(
            num_scalar_prefetch=0,
            grid=grid,
            in_specs=[
                pl.BlockSpec((tile_m, d_in), lambda i, k: (i, 0)),    # x tile
                pl.BlockSpec((d_in, tile_n), lambda i, k: (0, k)),    # W1 slab
                pl.BlockSpec((1, tile_n), lambda i, k: (0, k)),       # b1 slab
                pl.BlockSpec((tile_n, d_out), lambda i, k: (k, 0)),   # W2 slab
                pl.BlockSpec((1, d_out), lambda i, k: (0, 0)),        # b2
            ],
            out_specs=pl.BlockSpec((tile_m, d_out), lambda i, k: (i, 0)),
            scratch_shapes=[pltpu.VMEM((tile_m, d_out), jnp.float32)],
        ),
        compiler_params=pltpu.CompilerParams(
            dimension_semantics=("parallel", "arbitrary"),
            vmem_limit_bytes=int(vmem_limit)),
        cost_estimate=cost,
    )(x2d, w1c, b1_2d, w2c, b2_2d)

    if m_pad != m:
        out = out[:m]
    return out.reshape(*orig_shape[:-1], d_out)


def mlp_block(x, w1, b1, w2, b2, *, tile_m=None, tile_n=None,
              compute_dtype=jnp.bfloat16):
    """Convenience one-shot wrapper.  For repeated forwards with fixed
    parameters, call plan_tiles + prepare_params once and then reuse
    mlp_block_prepared (avoids per-call weight cast/pad HBM traffic)."""
    d_in = x.shape[-1]
    d_mlp = w1.shape[1]
    d_out = w2.shape[1]
    m = math.prod(x.shape[:-1]) if x.ndim > 1 else 1
    tm, tn, vmem_limit = plan_tiles(m, d_in, d_mlp, d_out, out_dtype=x.dtype,
                                    compute_dtype=compute_dtype,
                                    tile_m=tile_m, tile_n=tile_n)
    params = prepare_params(w1, b1, w2, b2, tile_n=tn,
                            compute_dtype=compute_dtype)
    return mlp_block_prepared(x, *params, tile_m=tm, tile_n=tn,
                              vmem_limit=vmem_limit)


# ---------------------------------------------------------------------------
# Test harness
# ---------------------------------------------------------------------------
def _init_params(key, d_in, d_mlp, d_out, dtype=jnp.float32):
    """Deterministic synthetic init (stands in for tc.kern_init): LeCun-normal
    weights, zero biases.  Weights stored as [in, out] (transposed vs torch)."""
    k1, k2 = jax.random.split(key)
    w1 = (jax.random.normal(k1, (d_in, d_mlp), dtype) / math.sqrt(d_in)).astype(dtype)
    b1 = jnp.zeros((d_mlp,), dtype)
    w2 = (jax.random.normal(k2, (d_mlp, d_out), dtype) / math.sqrt(d_mlp)).astype(dtype)
    b2 = jnp.zeros((d_out,), dtype)
    return w1, b1, w2, b2


def _reference(x, w1, b1, w2, b2, compute_dtype=jnp.bfloat16):
    """Mirrors the kernel's numerics: bf16 matmul operands, f32 accumulation,
    f32 bias adds and exact-erf GELU."""
    xc, w1c, w2c = (a.astype(compute_dtype) for a in (x, w1, w2))
    h = jnp.dot(xc, w1c, preferred_element_type=jnp.float32) + b1.astype(jnp.float32)
    h = 0.5 * h * (1.0 + jax.lax.erf(h * _INV_SQRT2))
    y = jnp.dot(h.astype(compute_dtype), w2c,
                preferred_element_type=jnp.float32) + b2.astype(jnp.float32)
    return y.astype(x.dtype)


if __name__ == "__main__":
    # Small shapes consistent with the module: inputs [..., Din]; fc1 adapts
    # to Din (the _update_fc1_if_needed path); out_dim=None => Dout = Din.
    batch, seq, d_in = 2, 128, 256
    d_mlp = 1024
    d_out = d_in  # out_dim=None branch

    key = jax.random.PRNGKey(0)
    kx, kp = jax.random.split(key)
    x = jax.random.normal(kx, (batch, seq, d_in), jnp.float32)
    w1, b1, w2, b2 = _init_params(kp, d_in, d_mlp, d_out)

    # Setup (once per parameter set): plan tiles for this generation, then
    # cast/pad the weights a single time.
    tokens = batch * seq
    tm, tn, vmem_limit = plan_tiles(tokens, d_in, d_mlp, d_out,
                                    out_dtype=x.dtype)
    params = jax.tree.map(jax.block_until_ready,
                          prepare_params(w1, b1, w2, b2, tile_n=tn))

    # Forward (per-call fast path; no weight cast/pad traffic).
    y = mlp_block_prepared(x, *params, tile_m=tm, tile_n=tn,
                           vmem_limit=vmem_limit)
    y = jax.block_until_ready(y)

    y_ref = _reference(x.reshape(-1, d_in), w1, b1, w2, b2).reshape(y.shape)
    assert y.shape == (batch, seq, d_out)
    max_err = float(jnp.max(jnp.abs(y - y_ref)))
    assert jnp.allclose(y, y_ref, atol=1e-2, rtol=1e-2), (
        f"mismatch vs reference (max abs err {max_err})")

    # TODO(synk): dropout (train=True path) not implemented; forward here is
    # the inference path where nn.Dropout is skipped.
    print("KERNEL_OK")
</pallas_src>

<mosaic_0001>
module attributes {stable_mosaic.version = 11 : i64} {
  func.func @_mlp_kernel(%arg0: i32, %arg1: i32, %arg2: memref<128x256xbf16, #tpu.memory_space<vmem>>, %arg3: memref<256x1024xbf16, #tpu.memory_space<vmem>>, %arg4: memref<1x1024xf32, #tpu.memory_space<vmem>>, %arg5: memref<1024x256xbf16, #tpu.memory_space<vmem>>, %arg6: memref<1x256xf32, #tpu.memory_space<vmem>>, %arg7: memref<128x256xf32, #tpu.memory_space<vmem>>, %arg8: memref<128x256xf32, #tpu.memory_space<vmem>>) attributes {dimension_semantics = [#tpu.dimension_semantics<parallel>, #tpu.dimension_semantics<arbitrary>], iteration_bounds = array<i64: 2, 1>, scalar_prefetch = 0 : i64, scratch_operands = 1 : i64, tpu.core_type = #tpu.core_type<tc>, window_params = [{transform_indices = @transform_0, window_bounds = array<i64: 128, 256>}, {transform_indices = @transform_1, window_bounds = array<i64: 256, 1024>}, {transform_indices = @transform_2, window_bounds = array<i64: 1, 1024>}, {transform_indices = @transform_3, window_bounds = array<i64: 1024, 256>}, {pipeline_mode = #tpu.pipeline_mode<synchronous>, transform_indices = @transform_4, window_bounds = array<i64: 1, 256>}, {transform_indices = @transform_5, window_bounds = array<i64: 128, 256>}]} {
    %c0_i32 = arith.constant 0 : i32
    %0 = arith.cmpi eq, %arg1, %c0_i32 : i32
    %1 = arith.extui %0 : i1 to i32
    %c0_i32_0 = arith.constant 0 : i32
    %2 = arith.cmpi ne, %1, %c0_i32_0 : i32
    scf.if %2 {
      %cst_18 = arith.constant 0.000000e+00 : f32
      %26 = vector.broadcast %cst_18 : f32 to vector<128x256xf32>
      %c0_19 = arith.constant 0 : index
      %c0_20 = arith.constant 0 : index
      %27 = vector.load %arg8[%c0_19, %c0_20] : memref<128x256xf32, #tpu.memory_space<vmem>>, vector<128x256xf32>
      tpu.vector_store %arg8[%c0_19, %c0_20], %26 {strides = array<i32>} : memref<128x256xf32, #tpu.memory_space<vmem>>, vector<128x256xf32>,
    } else {
    }
    %c0 = arith.constant 0 : index
    %c0_1 = arith.constant 0 : index
    %3 = vector.load %arg2[%c0, %c0_1] : memref<128x256xbf16, #tpu.memory_space<vmem>>, vector<128x256xbf16>
    %c0_2 = arith.constant 0 : index
    %c0_3 = arith.constant 0 : index
    %4 = vector.load %arg3[%c0_2, %c0_3] : memref<256x1024xbf16, #tpu.memory_space<vmem>>, vector<256x1024xbf16>
    %cst = arith.constant dense<0.000000e+00> : vector<128x1024xf32>
    %5 = tpu.matmul %3, %4, %cst {dimension_numbers = #tpu.dot_dimension_numbers<[1], [0], [0], [1], [0, 0, 1, 1], [], []>} : vector<128x256xbf16>, vector<256x1024xbf16>, vector<128x1024xf32> -> vector<128x1024xf32>
    %c0_4 = arith.constant 0 : index
    %c0_5 = arith.constant 0 : index
    %6 = vector.load %arg4[%c0_4, %c0_5] : memref<1x1024xf32, #tpu.memory_space<vmem>>, vector<1x1024xf32>
    %7 = vector.broadcast %6 : vector<1x1024xf32> to vector<128x1024xf32>
    %8 = arith.addf %5, %7 : vector<128x1024xf32>
    %cst_6 = arith.constant 5.000000e-01 : f32
    %9 = vector.broadcast %cst_6 : f32 to vector<128x1024xf32>
    %10 = arith.mulf %9, %8 : vector<128x1024xf32>
    %cst_7 = arith.constant 0.707106769 : f32
    %11 = vector.broadcast %cst_7 : f32 to vector<128x1024xf32>
    %12 = arith.mulf %8, %11 : vector<128x1024xf32>
    %13 = math.erf %12 : vector<128x1024xf32>
    %cst_8 = arith.constant 1.000000e+00 : f32
    %14 = vector.broadcast %cst_8 : f32 to vector<128x1024xf32>
    %15 = arith.addf %14, %13 : vector<128x1024xf32>
    %16 = arith.mulf %10, %15 : vector<128x1024xf32>
    %c0_9 = arith.constant 0 : index
    %c0_10 = arith.constant 0 : index
    %17 = vector.load %arg8[%c0_9, %c0_10] : memref<128x256xf32, #tpu.memory_space<vmem>>, vector<128x256xf32>
    %18 = arith.truncf %16 : vector<128x1024xf32> to vector<128x1024xbf16>
    %c0_11 = arith.constant 0 : index
    %c0_12 = arith.constant 0 : index
    %19 = vector.load %arg5[%c0_11, %c0_12] : memref<1024x256xbf16, #tpu.memory_space<vmem>>, vector<1024x256xbf16>
    %cst_13 = arith.constant dense<0.000000e+00> : vector<128x256xf32>
    %20 = tpu.matmul %18, %19, %cst_13 {dimension_numbers = #tpu.dot_dimension_numbers<[1], [0], [0], [1], [0, 0, 1, 1], [], []>} : vector<128x1024xbf16>, vector<1024x256xbf16>, vector<128x256xf32> -> vector<128x256xf32>
    %21 = arith.addf %17, %20 : vector<128x256xf32>
    %c0_14 = arith.constant 0 : index
    %c0_15 = arith.constant 0 : index
    %22 = vector.load %arg8[%c0_14, %c0_15] : memref<128x256xf32, #tpu.memory_space<vmem>>, vector<128x256xf32>
    tpu.vector_store %arg8[%c0_14, %c0_15], %21 {strides = array<i32>} : memref<128x256xf32, #tpu.memory_space<vmem>>, vector<128x256xf32>,
    %c0_i32_16 = arith.constant 0 : i32
    %23 = arith.cmpi eq, %arg1, %c0_i32_16 : i32
    %24 = arith.extui %23 : i1 to i32
    %c0_i32_17 = arith.constant 0 : i32
    %25 = arith.cmpi ne, %24, %c0_i32_17 : i32
    scf.if %25 {
      %c0_18 = arith.constant 0 : index
      %c0_19 = arith.constant 0 : index
      %26 = vector.load %arg8[%c0_18, %c0_19] : memref<128x256xf32, #tpu.memory_space<vmem>>, vector<128x256xf32>
      %c0_20 = arith.constant 0 : index
      %c0_21 = arith.constant 0 : index
      %27 = vector.load %arg6[%c0_20, %c0_21] : memref<1x256xf32, #tpu.memory_space<vmem>>, vector<1x256xf32>
      %28 = vector.broadcast %27 : vector<1x256xf32> to vector<128x256xf32>
      %29 = arith.addf %26, %28 : vector<128x256xf32>
      %c0_22 = arith.constant 0 : index
      %c0_23 = arith.constant 0 : index
      %30 = vector.load %arg7[%c0_22, %c0_23] : memref<128x256xf32, #tpu.memory_space<vmem>>, vector<128x256xf32>
      tpu.vector_store %arg7[%c0_22, %c0_23], %29 {strides = array<i32>} : memref<128x256xf32, #tpu.memory_space<vmem>>, vector<128x256xf32>,
    } else {
    }
    return
  }
  func.func @transform_0(%arg0: i32, %arg1: i32) -> (i32, i32) {
    %c0_i32 = arith.constant 0 : i32
    %c0_i32_0 = arith.constant 0 : i32
    return %arg0, %c0_i32 : i32, i32
  }
  func.func @transform_1(%arg0: i32, %arg1: i32) -> (i32, i32) {
    %c0_i32 = arith.constant 0 : i32
    %c0_i32_0 = arith.constant 0 : i32
    return %c0_i32, %arg1 : i32, i32
  }
  func.func @transform_2(%arg0: i32, %arg1: i32) -> (i32, i32) {
    %c0_i32 = arith.constant 0 : i32
    %c0_i32_0 = arith.constant 0 : i32
    return %c0_i32, %arg1 : i32, i32
  }
  func.func @transform_3(%arg0: i32, %arg1: i32) -> (i32, i32) {
    %c0_i32 = arith.constant 0 : i32
    %c0_i32_0 = arith.constant 0 : i32
    return %arg1, %c0_i32 : i32, i32
  }
  func.func @transform_4(%arg0: i32, %arg1: i32) -> (i32, i32) {
    %c0_i32 = arith.constant 0 : i32
    %c0_i32_0 = arith.constant 0 : i32
    %c0_i32_1 = arith.constant 0 : i32
    return %c0_i32, %c0_i32_0 : i32, i32
  }
  func.func @transform_5(%arg0: i32, %arg1: i32) -> (i32, i32) {
    %c0_i32 = arith.constant 0 : i32
    %c0_i32_0 = arith.constant 0 : i32
    return %arg0, %c0_i32 : i32, i32
  }
}

</mosaic_0001>

<llo_original>
// kernel: tpu_custom_call.1
$region0: #{tpu_custom_call.1}
  #allocation0 [shape = 'u32[]', space=smem, size = 0x4, offset = 0x4, fixed_abs, tag = 'smem constant byte address 0x4 - core index']
  #allocation1 [shape = 'u32[144,128]{1,0:T(1,128)}', space=vmem, size = 0x12000, scoped, tag = 'internal scratch']
  #allocation2 [shape = 'f32[128,256]{1,0:T(8,128)}', space=vmem, size = 0x20000, scoped, tag = 'scratch operand']
  %s0 = inlined_call_operand.hbm [shape: bf16[256,256], index: 0, kind: input, shape index: {}]
  %s1 = inlined_call_operand.hbm [shape: bf16[256,1024], index: 1, kind: input, shape index: {}]
  %s2 = inlined_call_operand.hbm [shape: f32[1,1024], index: 2, kind: input, shape index: {}]
  %s3 = inlined_call_operand.hbm [shape: bf16[1024,256], index: 3, kind: input, shape index: {}]
  %s4 = inlined_call_operand.vmem [shape: f32[1,256], index: 4, kind: input, shape index: {}]
  %s5 = inlined_call_operand.hbm [shape: f32[256,256], index: 5, kind: output, shape index: {}]
  %s6 = sld [smem:[#allocation0]]
  $region77: #{tpu_custom_call.1} parent=0
    _
  %s8 = ssub.s32 1, %s6
  %s9 = scalar_select 0, %s8, %s6
  $region1: #{tpu_custom_call.1} parent=0
    #allocation3 [shape = 'u8[131072]{0}', space=vmem, size = 0x20000, scoped, tag = 'input window, operand 0']
    #allocation4 [shape = 's32[2]{0}', space=sflag, size = 0x8, scoped, tag = 'scoped memory for tpu_custom_call.1']
    #allocation5 [shape = 's32[2]{0}', space=sflag, size = 0x8, scoped, tag = 'scoped memory for tpu_custom_call.1']
    #allocation6 [shape = 'u8[524288]{0}', space=vmem, size = 0x80000, scoped, tag = 'input window, operand 1, single buffered']
    #allocation7 [shape = 's32[1]{0}', space=sflag, size = 0x4, scoped, tag = 'scoped memory for tpu_custom_call.1']
    #allocation8 [shape = 'u8[4096]{0}', space=vmem, size = 0x1000, scoped, tag = 'input window, operand 2, single buffered']
    #allocation9 [shape = 'u8[524288]{0}', space=vmem, size = 0x80000, scoped, tag = 'input window, operand 3, single buffered']
    #allocation10 [shape = 's32[1]{0}', space=sflag, size = 0x4, scoped, tag = 'scoped memory for tpu_custom_call.1']
    #allocation11 [shape = 'u8[262144]{0}', space=vmem, size = 0x40000, scoped, tag = 'output window, operand 0']
    %10 = vsyncpa [#allocation4], 0
    %s11 = scalar_lea.sflag [#allocation4], 1
    %12 = vsyncpa %s11, 0
    %13 = vsyncpa [#allocation7], 0
    %14 = vsyncpa [#allocation10], 0
    %15 = vsyncpa [#allocation5], 0
    %s16 = scalar_lea.sflag [#allocation5], 1
    %17 = vsyncpa %s16, 0
    loop: start=0, step=1, limit=4
    $region2: #{tpu_custom_call.1} parent=1 // loop_pre_header
      _
    $region3: #{tpu_custom_call.1} parent=1 // loop_header
      %s19 = sphi 0, %s23
      %p20 = scmp.ge.s32.totalorder %s19, 4
      %s26 = sphi 0, %s38
      %s27 = sphi 0, %s34
      %s28 = sphi 0, %s26
      %s29 = sphi 0, %s27
      %s30 = sphi 0, %s28
      %s31 = sphi 0, %s29
      %s41 = sphi 0, %s43
      %s44 = sphi 0, %s41
      %s45 = sphi 0, %s44
      %s61 = sphi 0, %s45
      %s67 = sphi 0, %s69
      %s70 = sphi 0, %s67
      %s71 = sphi 0, %s70
      %s87 = sphi 0, %s71
      %s93 = sphi 0, %s95
      %s96 = sphi 0, %s93
      %s97 = sphi 0, %s96
      %s113 = sphi 0, %s97
      %s119 = sphi 0, %s121
      %s122 = sphi 0, %s119
      %s123 = sphi 0, %s122
      %s139 = sphi 0, %s123
      %s143 = sphi 0, %s143
      %s145 = sphi 0, %s143
      %s146 = sphi 0, %s145
      %s160 = sphi 0, %s146
      %s166 = sphi 0, %s168
      %s169 = sphi 0, %s166
      %s170 = sphi 0, %s169
      %s186 = sphi 0, %s170
    $region4: #{tpu_custom_call.1} parent=1 // loop_header_branch
      %22 = sbr.rel (%p20) target = $region8
    $region5: #{tpu_custom_call.1} parent=1 // loop_body
      %s24 = ssub.s32 %s19, 1
      %s25 = ssub.s32 %s19, 2
      %s32 = sadd.s32 1, %s27
      %p33 = scmp.ge.s32.totalorder %s32, 1
      %s34 = scalar_select %p33, 0, %s32
      %s35 = sadd.s32 1, %s26
      %s36 = scalar_select %p33, %s35, %s26
      %p37 = scmp.ge.s32.totalorder %s36, 2
      %s38 = scalar_select %p37, 0, %s36
      %s39 = ssub.s32 %s26, %s38
      %p40 = scmp.eq.s32.totalorder %s39, 0
      %s42 = sadd.s32 %s41, 1
      %s43 = scalar_select %p40, %s41, %s42
      %p46 = pneg %p40
      %p47 = scmp.eq.s32.totalorder %s19, 1
      %p48 = por %p46, %p47
      %p49 = scmp.ne.s32.totalorder %s41, %s44
      %p50 = scmp.eq.s32.totalorder %s19, 0
      %p51 = por %p49, %p50
      %p52 = scmp.ne.s32.totalorder %s41, %s44
      %p53 = scmp.eq.s32.totalorder %s24, 1
      %p54 = por %p52, %p53
      %p55 = scmp.ne.s32.totalorder %s44, %s45
      %p56 = scmp.eq.s32.totalorder %s24, 0
      %p57 = por %p55, %p56
      %p58 = scmp.ne.s32.totalorder %s44, %s45
      %p59 = scmp.eq.s32.totalorder %s25, 1
      %p60 = por %p58, %p59
      %p62 = scmp.ne.s32.totalorder %s45, %s61
      %p63 = scmp.eq.s32.totalorder %s25, 0
      %p64 = por %p62, %p63
      %s65 = ssub.s32 %s27, %s34
      %p66 = scmp.eq.s32.totalorder %s65, 0
      %s68 = sadd.s32 %s67, 1
      %s69 = scalar_select %p66, %s67, %s68
      %p72 = pneg %p66
      %p73 = scmp.eq.s32.totalorder %s19, 1
      %p74 = por %p72, %p73
      %p75 = scmp.ne.s32.totalorder %s67, %s70
      %p76 = scmp.eq.s32.totalorder %s19, 0
      %p77 = por %p75, %p76
      %p78 = scmp.ne.s32.totalorder %s67, %s70
      %p79 = scmp.eq.s32.totalorder %s24, 1
      %p80 = por %p78, %p79
      %p81 = scmp.ne.s32.totalorder %s70, %s71
      %p82 = scmp.eq.s32.totalorder %s24, 0
      %p83 = por %p81, %p82
      %p84 = scmp.ne.s32.totalorder %s70, %s71
      %p85 = scmp.eq.s32.totalorder %s25, 1
      %p86 = por %p84, %p85
      %p88 = scmp.ne.s32.totalorder %s71, %s87
      %p89 = scmp.eq.s32.totalorder %s25, 0
      %p90 = por %p88, %p89
      %s91 = ssub.s32 %s27, %s34
      %p92 = scmp.eq.s32.totalorder %s91, 0
      %s94 = sadd.s32 %s93, 1
      %s95 = scalar_select %p92, %s93, %s94
      %p98 = pneg %p92
      %p99 = scmp.eq.s32.totalorder %s19, 1
      %p100 = por %p98, %p99
      %p101 = scmp.ne.s32.totalorder %s93, %s96
      %p102 = scmp.eq.s32.totalorder %s19, 0
      %p103 = por %p101, %p102
      %p104 = scmp.ne.s32.totalorder %s93, %s96
      %p105 = scmp.eq.s32.totalorder %s24, 1
      %p106 = por %p104, %p105
      %p107 = scmp.ne.s32.totalorder %s96, %s97
      %p108 = scmp.eq.s32.totalorder %s24, 0
      %p109 = por %p107, %p108
      %p110 = scmp.ne.s32.totalorder %s96, %s97
      %p111 = scmp.eq.s32.totalorder %s25, 1
      %p112 = por %p110, %p111
      %p114 = scmp.ne.s32.totalorder %s97, %s113
      %p115 = scmp.eq.s32.totalorder %s25, 0
      %p116 = por %p114, %p115
      %s117 = ssub.s32 %s27, %s34
      %p118 = scmp.eq.s32.totalorder %s117, 0
      %s120 = sadd.s32 %s119, 1
      %s121 = scalar_select %p118, %s119, %s120
      %p124 = pneg %p118
      %p125 = scmp.eq.s32.totalorder %s19, 1
      %p126 = por %p124, %p125
      %p127 = scmp.ne.s32.totalorder %s119, %s122
      %p128 = scmp.eq.s32.totalorder %s19, 0
      %p129 = por %p127, %p128
      %p130 = scmp.ne.s32.totalorder %s119, %s122
      %p131 = scmp.eq.s32.totalorder %s24, 1
      %p132 = por %p130, %p131
      %p133 = scmp.ne.s32.totalorder %s122, %s123
      %p134 = scmp.eq.s32.totalorder %s24, 0
      %p135 = por %p133, %p134
      %p136 = scmp.ne.s32.totalorder %s122, %s123
      %p137 = scmp.eq.s32.totalorder %s25, 1
      %p138 = por %p136, %p137
      %p140 = scmp.ne.s32.totalorder %s123, %s139
      %p141 = scmp.eq.s32.totalorder %s25, 0
      %p142 = por %p140, %p141
      %s144 = sadd.s32 %s143, 1
      %p147 = scmp.eq.s32.totalorder %s19, 1
      %p148 = scmp.ne.s32.totalorder %s143, %s145
      %p149 = scmp.eq.s32.totalorder %s19, 0
      %p150 = por %p148, %p149
      %p151 = scmp.ne.s32.totalorder %s143, %s145
      %p152 = scmp.eq.s32.totalorder %s24, 1
      %p153 = por %p151, %p152
      %p154 = scmp.ne.s32.totalorder %s145, %s146
      %p155 = scmp.eq.s32.totalorder %s24, 0
      %p156 = por %p154, %p155
      %p157 = scmp.ne.s32.totalorder %s145, %s146
      %p158 = scmp.eq.s32.totalorder %s25, 1
      %p159 = por %p157, %p158
      %p161 = scmp.ne.s32.totalorder %s146, %s160
      %p162 = scmp.eq.s32.totalorder %s25, 0
      %p163 = por %p161, %p162
      %s164 = ssub.s32 %s26, %s38
      %p165 = scmp.eq.s32.totalorder %s164, 0
      %s167 = sadd.s32 %s166, 1
      %s168 = scalar_select %p165, %s166, %s167
      %p171 = pneg %p165
      %p172 = scmp.eq.s32.totalorder %s19, 1
      %p173 = por %p171, %p172
      %p174 = scmp.ne.s32.totalorder %s166, %s169
      %p175 = scmp.eq.s32.totalorder %s19, 0
      %p176 = por %p174, %p175
      %p177 = scmp.ne.s32.totalorder %s166, %s169
      %p178 = scmp.eq.s32.totalorder %s24, 1
      %p179 = por %p177, %p178
      %p180 = scmp.ne.s32.totalorder %s169, %s170
      %p181 = scmp.eq.s32.totalorder %s24, 0
      %p182 = por %p180, %p181
      %p183 = scmp.ne.s32.totalorder %s169, %s170
      %p184 = scmp.eq.s32.totalorder %s25, 1
      %p185 = por %p183, %p184
      %p187 = scmp.ne.s32.totalorder %s170, %s186
      %p188 = scmp.eq.s32.totalorder %s25, 0
      %p189 = por %p187, %p188
      %p190 = scmp.le.s32.totalorder 1, %s19
      %p191 = scmp.lt.s32.totalorder %s19, 3
      %p192 = pnand %p190, %p191
      %p193 = pneg %p192
      // Predicated region
      $region9: #{tpu_custom_call.1} parent=5 // pred_check
        _
      $region10: #{tpu_custom_call.1} parent=5 // pred_check_branch
        %195 = sbr.rel (%p192) target = $region12
      $region11: #{tpu_custom_call.1} parent=5 // pred_region
        %s196 = ssub.s32 %s19, 1
        // Predicated region
        $region13: #{tpu_custom_call.1} parent=11 // pred_check
          %p197 = pneg %p83
        $region14: #{tpu_custom_call.1} parent=11 // pred_check_branch
          %199 = sbr.rel (%p197) target = $region16
        $region15: #{tpu_custom_call.1} parent=11 // pred_region
          %s200 = smul.u32 8, %s29
          %s202 = ssub.s32 16384, 16384
          %203 = vsyncadd [#allocation7], %s202
          %s204 = smul.addr %s200, 64
          %s205 = scalar_lea.hbm %s1, %s204
          %s206 = sshll.u32 [#allocation6], 4
          %s207 = int_to_ptr.vmem [resolvable:$true] %s206
          %212 = dma.hbm_to_vmem [thread:$0]  %s205, 16384, %s207, [#allocation7], 512, 512, 32
        $region16: #{tpu_custom_call.1} parent=11 // pred_fallthru
          _
        // Predicated region
        $region17: #{tpu_custom_call.1} parent=11 // pred_check
          %p213 = pneg %p109
        $region18: #{tpu_custom_call.1} parent=11 // pred_check_branch
          %215 = sbr.rel (%p213) target = $region20
        $region19: #{tpu_custom_call.1} parent=11 // pred_region
          %s216 = smul.u32 8, %s29
          %s218 = ssub.s32 128, 128
          %219 = vsyncadd [#allocation7], %s218
          %s220 = smul.addr %s216, 16
          %s221 = scalar_lea.hbm %s2, %s220
          %s223 = sshll.u32 [#allocation8], 4
          %s224 = int_to_ptr.vmem [resolvable:$true] %s223
          %226 = dma.hbm_to_vmem [thread:$0]  %s221, 128, %s224, [#allocation7]
        $region20: #{tpu_custom_call.1} parent=11 // pred_fallthru
          _
        // Predicated region
        $region21: #{tpu_custom_call.1} parent=11 // pred_check
          %p227 = pneg %p135
        $region22: #{tpu_custom_call.1} parent=11 // pred_check_branch
          %229 = sbr.rel (%p227) target = $region24
        $region23: #{tpu_custom_call.1} parent=11 // pred_region
          %s230 = smul.u32 128, %s29
          %s232 = ssub.s32 16384, 16384
          %233 = vsyncadd [#allocation10], %s232
          %s234 = smul.addr %s230, 2
          %s235 = smul.addr %s234, 64
          %s236 = scalar_lea.hbm %s3, %s235
          %s237 = sshll.u32 [#allocation9], 4
          %s238 = int_to_ptr.vmem [resolvable:$true] %s237
          %243 = dma.hbm_to_vmem [thread:$0]  %s236, 16384, %s238, [#allocation10], 128, 128, 8
        $region24: #{tpu_custom_call.1} parent=11 // pred_fallthru
          _
        // Predicated region
        $region25: #{tpu_custom_call.1} parent=11 // pred_check
          %p244 = pneg %p156
        $region26: #{tpu_custom_call.1} parent=11 // pred_check_branch
          %246 = sbr.rel (%p244) target = $region28
        $region27: #{tpu_custom_call.1} parent=11 // pred_region
          _
        $region28: #{tpu_custom_call.1} parent=11 // pred_fallthru
          _
      $region12: #{tpu_custom_call.1} parent=5 // pred_fallthru
        _
      %p247 = scmp.lt.s32.totalorder %s19, 2
      // Predicated region
      $region29: #{tpu_custom_call.1} parent=5 // pred_check
        %p248 = pneg %p247
      $region30: #{tpu_custom_call.1} parent=5 // pred_check_branch
        %250 = sbr.rel (%p248) target = $region32
      $region31: #{tpu_custom_call.1} parent=5 // pred_region
        // Predicated region
        $region33: #{tpu_custom_call.1} parent=31 // pred_check
          %p251 = pneg %p51
        $region34: #{tpu_custom_call.1} parent=31 // pred_check_branch
          %253 = sbr.rel (%p251) target = $region36
        $region35: #{tpu_custom_call.1} parent=31 // pred_region
          %s254 = sand.u32 %s41, 1
          %s255 = scalar_lea.sflag [#allocation4], %s254
          %s256 = sand.u32 %s41, 1
          %s257 = smul.addr %s256, 128
          %s258 = scalar_lea.vmem [#allocation3], %s257
          %s259 = smul.u32 16, %s26
          %s261 = ssub.s32 2048, 2048
          %262 = vsyncadd %s255, %s261
          %s263 = smul.addr %s259, 2
          %s264 = smul.addr %s263, 64
          %s265 = scalar_lea.hbm %s0, %s264
          %s266 = sshll.u32 %s258, 4
          %s267 = int_to_ptr.vmem [resolvable:$true] %s266
          %272 = dma.hbm_to_vmem [thread:$0]  %s265, 2048, %s267, %s255, 128, 128, 8
        $region36: #{tpu_custom_call.1} parent=31 // pred_fallthru
          _
      $region32: #{tpu_custom_call.1} parent=5 // pred_fallthru
        _
      %p273 = scmp.le.s32.totalorder 1, %s19
      %p274 = scmp.lt.s32.totalorder %s19, 3
      %p275 = pnand %p273, %p274
      %p276 = pneg %p275
      // Predicated region
      $region37: #{tpu_custom_call.1} parent=5 // pred_check
        _
      $region38: #{tpu_custom_call.1} parent=5 // pred_check_branch
        %278 = sbr.rel (%p275) target = $region40
      $region39: #{tpu_custom_call.1} parent=5 // pred_region
        %s279 = ssub.s32 %s19, 1
        %s280 = sand.u32 %s44, 1
        %s281 = scalar_lea.sflag [#allocation4], %s280
        %s282 = sand.u32 %s44, 1
        %s283 = smul.addr %s282, 128
        %s284 = scalar_lea.vmem [#allocation3], %s283
        // Predicated region
        $region41: #{tpu_custom_call.1} parent=39 // pred_check
          %p285 = pneg %p57
        $region42: #{tpu_custom_call.1} parent=39 // pred_check_branch
          %287 = sbr.rel (%p285) target = $region44
        $region43: #{tpu_custom_call.1} parent=39 // pred_region
          %288 = dma.done %s281, 2048
        $region44: #{tpu_custom_call.1} parent=39 // pred_fallthru
          _
        // Predicated region
        $region45: #{tpu_custom_call.1} parent=39 // pred_check
          %p289 = pneg %p83
        $region46: #{tpu_custom_call.1} parent=39 // pred_check_branch
          %291 = sbr.rel (%p289) target = $region48
        $region47: #{tpu_custom_call.1} parent=39 // pred_region
          %292 = dma.done [#allocation7], 16384
        $region48: #{tpu_custom_call.1} parent=39 // pred_fallthru
          _
        // Predicated region
        $region49: #{tpu_custom_call.1} parent=39 // pred_check
          %p293 = pneg %p109
        $region50: #{tpu_custom_call.1} parent=39 // pred_check_branch
          %295 = sbr.rel (%p293) target = $region52
        $region51: #{tpu_custom_call.1} parent=39 // pred_region
          %296 = dma.done [#allocation7], 128
        $region52: #{tpu_custom_call.1} parent=39 // pred_fallthru
          _
        // Predicated region
        $region53: #{tpu_custom_call.1} parent=39 // pred_check
          %p297 = pneg %p135
        $region54: #{tpu_custom_call.1} parent=39 // pred_check_branch
          %299 = sbr.rel (%p297) target = $region56
        $region55: #{tpu_custom_call.1} parent=39 // pred_region
          %300 = dma.done [#allocation10], 16384
        $region56: #{tpu_custom_call.1} parent=39 // pred_fallthru
          _
        %s301 = sand.u32 %s44, 1
        %s302 = scalar_lea.sflag [#allocation4], %s301
        %s303 = sand.u32 %s44, 1
        %s304 = smul.addr %s303, 128
        %s305 = scalar_lea.vmem [#allocation3], %s304
        %p306 = pneg %p57
        %p307 = pneg %p54
        %p308 = pneg %p83
        %p309 = pneg %p80
        %p310 = pneg %p109
        %p311 = pneg %p106
        %p312 = pneg %p135
        %p313 = pneg %p132
        %p314 = pneg %p156
        %p315 = pneg %p153
        %p316 = pneg %p182
        %p317 = pneg %p179
        %s318 = sand.u32 %s169, 1
        %s319 = scalar_lea.sflag [#allocation5], %s318
        %s320 = sand.u32 %s169, 1
        %s321 = smul.addr %s320, 256
        %s322 = scalar_lea.vmem [#allocation11], %s321
        %s323 = smul.u32 16, %s28
        %s324 = smul.u32 8, %s29
        %s325 = smul.u32 8, %s29
        %s326 = smul.u32 128, %s29
        %s327 = smul.u32 16, %s28
        %p328 = scmp.eq.s32.totalorder %s29, 0
        // Predicated region
        $region57: #{tpu_custom_call.1} parent=39 // pred_check
          %p329 = pneg %p328
        $region58: #{tpu_custom_call.1} parent=39 // pred_check_branch
          %331 = sbr.rel (%p329) target = $region60
        $region59: #{tpu_custom_call.1} parent=39 // pred_region
          %332 = vst [vmem:[#allocation2] sm:$0xff] 0.0
          %333 = vst [vmem:[#allocation2 + $0x8] sm:$0xff] 0.0
          %334 = vst [vmem:[#allocation2 + $0x10] sm:$0xff] 0.0
          %335 = vst [vmem:[#allocation2 + $0x18] sm:$0xff] 0.0
          %336 = vst [vmem:[#allocation2 + $0x20] sm:$0xff] 0.0
          %337 = vst [vmem:[#allocation2 + $0x28] sm:$0xff] 0.0
          %338 = vst [vmem:[#allocation2 + $0x30] sm:$0xff] 0.0
          %339 = vst [vmem:[#allocation2 + $0x38] sm:$0xff] 0.0
          %340 = vst [vmem:[#allocation2 + $0x40] sm:$0xff] 0.0
          %341 = vst [vmem:[#allocation2 + $0x48] sm:$0xff] 0.0
          %342 = vst [vmem:[#allocation2 + $0x50] sm:$0xff] 0.0
          %343 = vst [vmem:[#allocation2 + $0x58] sm:$0xff] 0.0
          %344 = vst [vmem:[#allocation2 + $0x60] sm:$0xff] 0.0
          %345 = vst [vmem:[#allocation2 + $0x68] sm:$0xff] 0.0
          %346 = vst [vmem:[#allocation2 + $0x70] sm:$0xff] 0.0
          %347 = vst [vmem:[#allocation2 + $0x78] sm:$0xff] 0.0
          %348 = vst [vmem:[#allocation2 + $0x80] sm:$0xff] 0.0
          %349 = vst [vmem:[#allocation2 + $0x88] sm:$0xff] 0.0
          %350 = vst [vmem:[#allocation2 + $0x90] sm:$0xff] 0.0
          %351 = vst [vmem:[#allocation2 + $0x98] sm:$0xff] 0.0
          %352 = vst [vmem:[#allocation2 + $0xa0] sm:$0xff] 0.0
          %353 = vst [vmem:[#allocation2 + $0xa8] sm:$0xff] 0.0
          %354 = vst [vmem:[#allocation2 + $0xb0] sm:$0xff] 0.0
          %355 = vst [vmem:[#allocation2 + $0xb8] sm:$0xff] 0.0
          %356 = vst [vmem:[#allocation2 + $0xc0] sm:$0xff] 0.0
          %357 = vst [vmem:[#allocation2 + $0xc8] sm:$0xff] 0.0
          %358 = vst [vmem:[#allocation2 + $0xd0] sm:$0xff] 0.0
          %359 = vst [vmem:[#allocation2 + $0xd8] sm:$0xff] 0.0
          %360 = vst [vmem:[#allocation2 + $0xe0] sm:$0xff] 0.0
          %361 = vst [vmem:[#allocation2 + $0xe8] sm:$0xff] 0.0
          %362 = vst [vmem:[#allocation2 + $0xf0] sm:$0xff] 0.0
          %363 = vst [vmem:[#allocation2 + $0xf8] sm:$0xff] 0.0
        $region60: #{tpu_custom_call.1} parent=39 // pred_fallthru
          _
        %v364 = vld [vmem:[%s284] sm:$0xff]
        %v365 = vld [vmem:[%s284 + $0x8] sm:$0xff]
        %v366 = vld [vmem:[%s284 + $0x10] sm:$0xff]
        %v367 = vld [vmem:[%s284 + $0x18] sm:$0xff]
        %v368 = vld [vmem:[%s284 + $0x20] sm:$0xff]
        %v369 = vld [vmem:[%s284 + $0x28] sm:$0xff]
        %v370 = vld [vmem:[%s284 + $0x30] sm:$0xff]
        %v371 = vld [vmem:[%s284 + $0x38] sm:$0xff]
        %v372 = vld [vmem:[%s284 + $0x40] sm:$0xff]
        %v373 = vld [vmem:[%s284 + $0x48] sm:$0xff]
        %v374 = vld [vmem:[%s284 + $0x50] sm:$0xff]
        %v375 = vld [vmem:[%s284 + $0x58] sm:$0xff]
        %v376 = vld [vmem:[%s284 + $0x60] sm:$0xff]
        %v377 = vld [vmem:[%s284 + $0x68] sm:$0xff]
        %v378 = vld [vmem:[%s284 + $0x70] sm:$0xff]
        %v379 = vld [vmem:[%s284 + $0x78] sm:$0xff]
        %v380 = vld [vmem:[#allocation6] sm:$0xff]
        %v381 = vld [vmem:[#allocation6 + $0x8] sm:$0xff]
        %v382 = vld [vmem:[#allocation6 + $0x10] sm:$0xff]
        %v383 = vld [vmem:[#allocation6 + $0x18] sm:$0xff]
        %v384 = vld [vmem:[#allocation6 + $0x20] sm:$0xff]
        %v385 = vld [vmem:[#allocation6 + $0x28] sm:$0xff]
        %v386 = vld [vmem:[#allocation6 + $0x30] sm:$0xff]
        %v387 = vld [vmem:[#allocation6 + $0x38] sm:$0xff]
        %v388 = vld [vmem:[#allocation6 + $0x40] sm:$0xff]
        %v389 = vld [vmem:[#allocation6 + $0x48] sm:$0xff]
        %v390 = vld [vmem:[#allocation6 + $0x50] sm:$0xff]
        %v391 = vld [vmem:[#allocation6 + $0x58] sm:$0xff]
        %v392 = vld [vmem:[#allocation6 + $0x60] sm:$0xff]
        %v393 = vld [vmem:[#allocation6 + $0x68] sm:$0xff]
        %v394 = vld [vmem:[#allocation6 + $0x70] sm:$0xff]
        %v395 = vld [vmem:[#allocation6 + $0x78] sm:$0xff]
        %v396 = vld [vmem:[#allocation6 + $0x80] sm:$0xff]
        %v397 = vld [vmem:[#allocation6 + $0x88] sm:$0xff]
        %v398 = vld [vmem:[#allocation6 + $0x90] sm:$0xff]
        %v399 = vld [vmem:[#allocation6 + $0x98] sm:$0xff]
        %v400 = vld [vmem:[#allocation6 + $0xa0] sm:$0xff]
        %v401 = vld [vmem:[#allocation6 + $0xa8] sm:$0xff]
        %v402 = vld [vmem:[#allocation6 + $0xb0] sm:$0xff]
        %v403 = vld [vmem:[#allocation6 + $0xb8] sm:$0xff]
        %v404 = vld [vmem:[#allocation6 + $0xc0] sm:$0xff]
        %v405 = vld [vmem:[#allocation6 + $0xc8] sm:$0xff]
        %v406 = vld [vmem:[#allocation6 + $0xd0] sm:$0xff]
        %v407 = vld [vmem:[#allocation6 + $0xd8] sm:$0xff]
        %v408 = vld [vmem:[#allocation6 + $0xe0] sm:$0xff]
        %v409 = vld [vmem:[#allocation6 + $0xe8] sm:$0xff]
        %v410 = vld [vmem:[#allocation6 + $0xf0] sm:$0xff]
        %v411 = vld [vmem:[#allocation6 + $0xf8] sm:$0xff]
        %v412 = vld [vmem:[#allocation6 + $0x100] sm:$0xff]
        %v413 = vld [vmem:[#allocation6 + $0x108] sm:$0xff]
        %v414 = vld [vmem:[#allocation6 + $0x110] sm:$0xff]
        %v415 = vld [vmem:[#allocation6 + $0x118] sm:$0xff]
        %v416 = vld [vmem:[#allocation6 + $0x120] sm:$0xff]
        %v417 = vld [vmem:[#allocation6 + $0x128] sm:$0xff]
        %v418 = vld [vmem:[#allocation6 + $0x130] sm:$0xff]
        %v419 = vld [vmem:[#allocation6 + $0x138] sm:$0xff]
        %v420 = vld [vmem:[#allocation6 + $0x140] sm:$0xff]
        %v421 = vld [vmem:[#allocation6 + $0x148] sm:$0xff]
        %v422 = vld [vmem:[#allocation6 + $0x150] sm:$0xff]
        %v423 = vld [vmem:[#allocation6 + $0x158] sm:$0xff]
        %v424 = vld [vmem:[#allocation6 + $0x160] sm:$0xff]
        %v425 = vld [vmem:[#allocation6 + $0x168] sm:$0xff]
        %v426 = vld [vmem:[#allocation6 + $0x170] sm:$0xff]
        %v427 = vld [vmem:[#allocation6 + $0x178] sm:$0xff]
        %v428 = vld [vmem:[#allocation6 + $0x180] sm:$0xff]
        %v429 = vld [vmem:[#allocation6 + $0x188] sm:$0xff]
        %v430 = vld [vmem:[#allocation6 + $0x190] sm:$0xff]
        %v431 = vld [vmem:[#allocation6 + $0x198] sm:$0xff]
        %v432 = vld [vmem:[#allocation6 + $0x1a0] sm:$0xff]
        %v433 = vld [vmem:[#allocation6 + $0x1a8] sm:$0xff]
        %v434 = vld [vmem:[#allocation6 + $0x1b0] sm:$0xff]
        %v435 = vld [vmem:[#allocation6 + $0x1b8] sm:$0xff]
        %v436 = vld [vmem:[#allocation6 + $0x1c0] sm:$0xff]
        %v437 = vld [vmem:[#allocation6 + $0x1c8] sm:$0xff]
        %v438 = vld [vmem:[#allocation6 + $0x1d0] sm:$0xff]
        %v439 = vld [vmem:[#allocation6 + $0x1d8] sm:$0xff]
        %v440 = vld [vmem:[#allocation6 + $0x1e0] sm:$0xff]
        %v441 = vld [vmem:[#allocation6 + $0x1e8] sm:$0xff]
        %v442 = vld [vmem:[#allocation6 + $0x1f0] sm:$0xff]
        %v443 = vld [vmem:[#allocation6 + $0x1f8] sm:$0xff]
        %v444 = vld [vmem:[#allocation6 + $0x200] sm:$0xff]
        %v445 = vld [vmem:[#allocation6 + $0x208] sm:$0xff]
        %v446 = vld [vmem:[#allocation6 + $0x210] sm:$0xff]
        %v447 = vld [vmem:[#allocation6 + $0x218] sm:$0xff]
        %v448 = vld [vmem:[#allocation6 + $0x220] sm:$0xff]
        %v449 = vld [vmem:[#allocation6 + $0x228] sm:$0xff]
        %v450 = vld [vmem:[#allocation6 + $0x230] sm:$0xff]
        %v451 = vld [vmem:[#allocation6 + $0x238] sm:$0xff]
        %v452 = vld [vmem:[#allocation6 + $0x240] sm:$0xff]
        %v453 = vld [vmem:[#allocation6 + $0x248] sm:$0xff]
        %v454 = vld [vmem:[#allocation6 + $0x250] sm:$0xff]
        %v455 = vld [vmem:[#allocation6 + $0x258] sm:$0xff]
        %v456 = vld [vmem:[#allocation6 + $0x260] sm:$0xff]
        %v457 = vld [vmem:[#allocation6 + $0x268] sm:$0xff]
        %v458 = vld [vmem:[#allocation6 + $0x270] sm:$0xff]
        %v459 = vld [vmem:[#allocation6 + $0x278] sm:$0xff]
        %v460 = vld [vmem:[#allocation6 + $0x280] sm:$0xff]
        %v461 = vld [vmem:[#allocation6 + $0x288] sm:$0xff]
        %v462 = vld [vmem:[#allocation6 + $0x290] sm:$0xff]
        %v463 = vld [vmem:[#allocation6 + $0x298] sm:$0xff]
        %v464 = vld [vmem:[#allocation6 + $0x2a0] sm:$0xff]
        %v465 = vld [vmem:[#allocation6 + $0x2a8] sm:$0xff]
        %v466 = vld [vmem:[#allocation6 + $0x2b0] sm:$0xff]
        %v467 = vld [vmem:[#allocation6 + $0x2b8] sm:$0xff]
        %v468 = vld [vmem:[#allocation6 + $0x2c0] sm:$0xff]
        %v469 = vld [vmem:[#allocation6 + $0x2c8] sm:$0xff]
        %v470 = vld [vmem:[#allocation6 + $0x2d0] sm:$0xff]
        %v471 = vld [vmem:[#allocation6 + $0x2d8] sm:$0xff]
        %v472 = vld [vmem:[#allocation6 + $0x2e0] sm:$0xff]
        %v473 = vld [vmem:[#allocation6 + $0x2e8] sm:$0xff]
        %v474 = vld [vmem:[#allocation6 + $0x2f0] sm:$0xff]
        %v475 = vld [vmem:[#allocation6 + $0x2f8] sm:$0xff]
        %v476 = vld [vmem:[#allocation6 + $0x300] sm:$0xff]
        %v477 = vld [vmem:[#allocation6 + $0x308] sm:$0xff]
        %v478 = vld [vmem:[#allocation6 + $0x310] sm:$0xff]
        %v479 = vld [vmem:[#allocation6 + $0x318] sm:$0xff]
        %v480 = vld [vmem:[#allocation6 + $0x320] sm:$0xff]
        %v481 = vld [vmem:[#allocation6 + $0x328] sm:$0xff]
        %v482 = vld [vmem:[#allocation6 + $0x330] sm:$0xff]
        %v483 = vld [vmem:[#allocation6 + $0x338] sm:$0xff]
        %v484 = vld [vmem:[#allocation6 + $0x340] sm:$0xff]
        %v485 = vld [vmem:[#allocation6 + $0x348] sm:$0xff]
        %v486 = vld [vmem:[#allocation6 + $0x350] sm:$0xff]
        %v487 = vld [vmem:[#allocation6 + $0x358] sm:$0xff]
        %v488 = vld [vmem:[#allocation6 + $0x360] sm:$0xff]
        %v489 = vld [vmem:[#allocation6 + $0x368] sm:$0xff]
        %v490 = vld [vmem:[#allocation6 + $0x370] sm:$0xff]
        %v491 = vld [vmem:[#allocation6 + $0x378] sm:$0xff]
        %v492 = vld [vmem:[#allocation6 + $0x380] sm:$0xff]
        %v493 = vld [vmem:[#allocation6 + $0x388] sm:$0xff]
        %v494 = vld [vmem:[#allocation6 + $0x390] sm:$0xff]
        %v495 = vld [vmem:[#allocation6 + $0x398] sm:$0xff]
        %v496 = vld [vmem:[#allocation6 + $0x3a0] sm:$0xff]
        %v497 = vld [vmem:[#allocation6 + $0x3a8] sm:$0xff]
        %v498 = vld [vmem:[#allocation6 + $0x3b0] sm:$0xff]
        %v499 = vld [vmem:[#allocation6 + $0x3b8] sm:$0xff]
        %v500 = vld [vmem:[#allocation6 + $0x3c0] sm:$0xff]
        %v501 = vld [vmem:[#allocation6 + $0x3c8] sm:$0xff]
        %v502 = vld [vmem:[#allocation6 + $0x3d0] sm:$0xff]
        %v503 = vld [vmem:[#allocation6 + $0x3d8] sm:$0xff]
        %v504 = vld [vmem:[#allocation6 + $0x3e0] sm:$0xff]
        %v505 = vld [vmem:[#allocation6 + $0x3e8] sm:$0xff]
        %v506 = vld [vmem:[#allocation6 + $0x3f0] sm:$0xff]
        %v507 = vld [vmem:[#allocation6 + $0x3f8] sm:$0xff]
        %v508 = vld [vmem:[#allocation8] sm:$0xff]
        %v510 = vlaneseq
        %v511 = vshrl.u32 %v510, 7
        %v512 = vsub.s32 0, %v511
        %v513 = vrot.slane %v508, %v512
        %v514 = vlaneseq
        %v515 = vshrl.u32 %v514, 7
        %v516 = vsub.s32 1, %v515
        %v517 = vrot.slane %v508, %v516
        %v518 = vlaneseq
        %v519 = vshrl.u32 %v518, 7
        %v520 = vsub.s32 2, %v519
        %v521 = vrot.slane %v508, %v520
        %v522 = vlaneseq
        %v523 = vshrl.u32 %v522, 7
        %v524 = vsub.s32 3, %v523
        %v525 = vrot.slane %v508, %v524
        %v526 = vlaneseq
        %v527 = vshrl.u32 %v526, 7
        %v528 = vsub.s32 4, %v527
        %v529 = vrot.slane %v508, %v528
        %v530 = vlaneseq
        %v531 = vshrl.u32 %v530, 7
        %v532 = vsub.s32 5, %v531
        %v533 = vrot.slane %v508, %v532
        %v534 = vlaneseq
        %v535 = vshrl.u32 %v534, 7
        %v536 = vsub.s32 6, %v535
        %v537 = vrot.slane %v508, %v536
        %v538 = vlaneseq
        %v539 = vshrl.u32 %v538, 7
        %v540 = vsub.s32 7, %v539
        %v541 = vrot.slane %v508, %v540
        %v566 = vunpack.c.l.b16 %v364
        %v567 = vunpack.c.h.b16 %v364
        %v568 = vunpack.c.l.b16 %v365
        %v569 = vunpack.c.h.b16 %v365
        %v570 = vunpack.c.l.b16 %v366
        %v571 = vunpack.c.h.b16 %v366
        %v572 = vunpack.c.l.b16 %v367
        %v573 = vunpack.c.h.b16 %v367
        %v574 = vunpack.c.l.b16 %v368
        %v575 = vunpack.c.h.b16 %v368
        %v576 = vunpack.c.l.b16 %v369
        %v577 = vunpack.c.h.b16 %v369
        %v578 = vunpack.c.l.b16 %v370
        %v579 = vunpack.c.h.b16 %v370
        %v580 = vunpack.c.l.b16 %v371
        %v581 = vunpack.c.h.b16 %v371
        %v582 = vunpack.c.l.b16 %v372
        %v583 = vunpack.c.h.b16 %v372
        %v584 = vunpack.c.l.b16 %v373
        %v585 = vunpack.c.h.b16 %v373
        %v586 = vunpack.c.l.b16 %v374
        %v587 = vunpack.c.h.b16 %v374
        %v588 = vunpack.c.l.b16 %v375
        %v589 = vunpack.c.h.b16 %v375
        %v590 = vunpack.c.l.b16 %v376
        %v591 = vunpack.c.h.b16 %v376
        %v592 = vunpack.c.l.b16 %v377
        %v593 = vunpack.c.h.b16 %v377
        %v594 = vunpack.c.l.b16 %v378
        %v595 = vunpack.c.h.b16 %v378
        %v596 = vunpack.c.l.b16 %v379
        %v597 = vunpack.c.h.b16 %v379
        %v598 = vpack.c.b16 %v568, %v566
        %v599 = vpack.c.b16 %v569, %v567
        %v600 = vpack.c.b16 %v572, %v570
        %v601 = vpack.c.b16 %v573, %v571
        %v602 = vpack.c.b16 %v576, %v574
        %v603 = vpack.c.b16 %v577, %v575
        %v604 = vpack.c.b16 %v580, %v578
        %v605 = vpack.c.b16 %v581, %v579
        %v606 = vpack.c.b16 %v584, %v582
        %v607 = vpack.c.b16 %v585, %v583
        %v608 = vpack.c.b16 %v588, %v586
        %v609 = vpack.c.b16 %v589, %v587
        %v610 = vpack.c.b16 %v592, %v590
        %v611 = vpack.c.b16 %v593, %v591
        %v612 = vpack.c.b16 %v596, %v594
        %v613 = vpack.c.b16 %v597, %v595
        %v758 = vunpack.c.l.b16 %v380
        %v759 = vunpack.c.h.b16 %v380
        %v760 = vunpack.c.l.b16 %v381
        %v761 = vunpack.c.h.b16 %v381
        %v762 = vunpack.c.l.b16 %v382
        %v763 = vunpack.c.h.b16 %v382
        %v764 = vunpack.c.l.b16 %v383
        %v765 = vunpack.c.h.b16 %v383
        %v766 = vunpack.c.l.b16 %v384
        %v767 = vunpack.c.h.b16 %v384
        %v768 = vunpack.c.l.b16 %v385
        %v769 = vunpack.c.h.b16 %v385
        %v770 = vunpack.c.l.b16 %v386
        %v771 = vunpack.c.h.b16 %v386
        %v772 = vunpack.c.l.b16 %v387
        %v773 = vunpack.c.h.b16 %v387
        %v774 = vunpack.c.l.b16 %v388
        %v775 = vunpack.c.h.b16 %v388
        %v776 = vunpack.c.l.b16 %v389
        %v777 = vunpack.c.h.b16 %v389
        %v778 = vunpack.c.l.b16 %v390
        %v779 = vunpack.c.h.b16 %v390
        %v780 = vunpack.c.l.b16 %v391
        %v781 = vunpack.c.h.b16 %v391
        %v782 = vunpack.c.l.b16 %v392
        %v783 = vunpack.c.h.b16 %v392
        %v784 = vunpack.c.l.b16 %v393
        %v785 = vunpack.c.h.b16 %v393
        %v786 = vunpack.c.l.b16 %v394
        %v787 = vunpack.c.h.b16 %v394
        %v788 = vunpack.c.l.b16 %v395
        %v789 = vunpack.c.h.b16 %v395
        %v790 = vunpack.c.l.b16 %v396
        %v791 = vunpack.c.h.b16 %v396
        %v792 = vunpack.c.l.b16 %v397
        %v793 = vunpack.c.h.b16 %v397
        %v794 = vunpack.c.l.b16 %v398
        %v795 = vunpack.c.h.b16 %v398
        %v796 = vunpack.c.l.b16 %v399
        %v797 = vunpack.c.h.b16 %v399
        %v798 = vunpack.c.l.b16 %v400
        %v799 = vunpack.c.h.b16 %v400
        %v800 = vunpack.c.l.b16 %v401
        %v801 = vunpack.c.h.b16 %v401
        %v802 = vunpack.c.l.b16 %v402
        %v803 = vunpack.c.h.b16 %v402
        %v804 = vunpack.c.l.b16 %v403
        %v805 = vunpack.c.h.b16 %v403
        %v806 = vunpack.c.l.b16 %v404
        %v807 = vunpack.c.h.b16 %v404
        %v808 = vunpack.c.l.b16 %v405
        %v809 = vunpack.c.h.b16 %v405
        %v810 = vunpack.c.l.b16 %v406
        %v811 = vunpack.c.h.b16 %v406
        %v812 = vunpack.c.l.b16 %v407
        %v813 = vunpack.c.h.b16 %v407
        %v814 = vunpack.c.l.b16 %v408
        %v815 = vunpack.c.h.b16 %v408
        %v816 = vunpack.c.l.b16 %v409
        %v817 = vunpack.c.h.b16 %v409
        %v818 = vunpack.c.l.b16 %v410
        %v819 = vunpack.c.h.b16 %v410
        %v820 = vunpack.c.l.b16 %v411
        %v821 = vunpack.c.h.b16 %v411
        %v822 = vunpack.c.l.b16 %v412
        %v823 = vunpack.c.h.b16 %v412
        %v824 = vunpack.c.l.b16 %v413
        %v825 = vunpack.c.h.b16 %v413
        %v826 = vunpack.c.l.b16 %v414
        %v827 = vunpack.c.h.b16 %v414
        %v828 = vunpack.c.l.b16 %v415
        %v829 = vunpack.c.h.b16 %v415
        %v830 = vunpack.c.l.b16 %v416
        %v831 = vunpack.c.h.b16 %v416
        %v832 = vunpack.c.l.b16 %v417
        %v833 = vunpack.c.h.b16 %v417
        %v834 = vunpack.c.l.b16 %v418
        %v835 = vunpack.c.h.b16 %v418
        %v836 = vunpack.c.l.b16 %v419
        %v837 = vunpack.c.h.b16 %v419
        %v838 = vunpack.c.l.b16 %v420
        %v839 = vunpack.c.h.b16 %v420
        %v840 = vunpack.c.l.b16 %v421
        %v841 = vunpack.c.h.b16 %v421
        %v842 = vunpack.c.l.b16 %v422
        %v843 = vunpack.c.h.b16 %v422
        %v844 = vunpack.c.l.b16 %v423
        %v845 = vunpack.c.h.b16 %v423
        %v846 = vunpack.c.l.b16 %v424
        %v847 = vunpack.c.h.b16 %v424
        %v848 = vunpack.c.l.b16 %v425
        %v849 = vunpack.c.h.b16 %v425
        %v850 = vunpack.c.l.b16 %v426
        %v851 = vunpack.c.h.b16 %v426
        %v852 = vunpack.c.l.b16 %v427
        %v853 = vunpack.c.h.b16 %v427
        %v854 = vunpack.c.l.b16 %v428
        %v855 = vunpack.c.h.b16 %v428
        %v856 = vunpack.c.l.b16 %v429
        %v857 = vunpack.c.h.b16 %v429
        %v858 = vunpack.c.l.b16 %v430
        %v859 = vunpack.c.h.b16 %v430
        %v860 = vunpack.c.l.b16 %v431
        %v861 = vunpack.c.h.b16 %v431
        %v862 = vunpack.c.l.b16 %v432
        %v863 = vunpack.c.h.b16 %v432
        %v864 = vunpack.c.l.b16 %v433
        %v865 = vunpack.c.h.b16 %v433
        %v866 = vunpack.c.l.b16 %v434
        %v867 = vunpack.c.h.b16 %v434
        %v868 = vunpack.c.l.b16 %v435
        %v869 = vunpack.c.h.b16 %v435
        %v870 = vunpack.c.l.b16 %v436
        %v871 = vunpack.c.h.b16 %v436
        %v872 = vunpack.c.l.b16 %v437
        %v873 = vunpack.c.h.b16 %v437
        %v874 = vunpack.c.l.b16 %v438
        %v875 = vunpack.c.h.b16 %v438
        %v876 = vunpack.c.l.b16 %v439
        %v877 = vunpack.c.h.b16 %v439
        %v878 = vunpack.c.l.b16 %v440
        %v879 = vunpack.c.h.b16 %v440
        %v880 = vunpack.c.l.b16 %v441
        %v881 = vunpack.c.h.b16 %v441
        %v882 = vunpack.c.l.b16 %v442
        %v883 = vunpack.c.h.b16 %v442
        %v884 = vunpack.c.l.b16 %v443
        %v885 = vunpack.c.h.b16 %v443
        %v886 = vunpack.c.l.b16 %v444
        %v887 = vunpack.c.h.b16 %v444
        %v888 = vunpack.c.l.b16 %v445
        %v889 = vunpack.c.h.b16 %v445
        %v890 = vunpack.c.l.b16 %v446
        %v891 = vunpack.c.h.b16 %v446
        %v892 = vunpack.c.l.b16 %v447
        %v893 = vunpack.c.h.b16 %v447
        %v894 = vunpack.c.l.b16 %v448
        %v895 = vunpack.c.h.b16 %v448
        %v896 = vunpack.c.l.b16 %v449
        %v897 = vunpack.c.h.b16 %v449
        %v898 = vunpack.c.l.b16 %v450
        %v899 = vunpack.c.h.b16 %v450
        %v900 = vunpack.c.l.b16 %v451
        %v901 = vunpack.c.h.b16 %v451
        %v902 = vunpack.c.l.b16 %v452
        %v903 = vunpack.c.h.b16 %v452
        %v904 = vunpack.c.l.b16 %v453
        %v905 = vunpack.c.h.b16 %v453
        %v906 = vunpack.c.l.b16 %v454
        %v907 = vunpack.c.h.b16 %v454
        %v908 = vunpack.c.l.b16 %v455
        %v909 = vunpack.c.h.b16 %v455
        %v910 = vunpack.c.l.b16 %v456
        %v911 = vunpack.c.h.b16 %v456
        %v912 = vunpack.c.l.b16 %v457
        %v913 = vunpack.c.h.b16 %v457
        %v914 = vunpack.c.l.b16 %v458
        %v915 = vunpack.c.h.b16 %v458
        %v916 = vunpack.c.l.b16 %v459
        %v917 = vunpack.c.h.b16 %v459
        %v918 = vunpack.c.l.b16 %v460
        %v919 = vunpack.c.h.b16 %v460
        %v920 = vunpack.c.l.b16 %v461
        %v921 = vunpack.c.h.b16 %v461
        %v922 = vunpack.c.l.b16 %v462
        %v923 = vunpack.c.h.b16 %v462
        %v924 = vunpack.c.l.b16 %v463
        %v925 = vunpack.c.h.b16 %v463
        %v926 = vunpack.c.l.b16 %v464
        %v927 = vunpack.c.h.b16 %v464
        %v928 = vunpack.c.l.b16 %v465
        %v929 = vunpack.c.h.b16 %v465
        %v930 = vunpack.c.l.b16 %v466
        %v931 = vunpack.c.h.b16 %v466
        %v932 = vunpack.c.l.b16 %v467
        %v933 = vunpack.c.h.b16 %v467
        %v934 = vunpack.c.l.b16 %v468
        %v935 = vunpack.c.h.b16 %v468
        %v936 = vunpack.c.l.b16 %v469
        %v937 = vunpack.c.h.b16 %v469
        %v938 = vunpack.c.l.b16 %v470
        %v939 = vunpack.c.h.b16 %v470
        %v940 = vunpack.c.l.b16 %v471
        %v941 = vunpack.c.h.b16 %v471
        %v942 = vunpack.c.l.b16 %v472
        %v943 = vunpack.c.h.b16 %v472
        %v944 = vunpack.c.l.b16 %v473
        %v945 = vunpack.c.h.b16 %v473
        %v946 = vunpack.c.l.b16 %v474
        %v947 = vunpack.c.h.b16 %v474
        %v948 = vunpack.c.l.b16 %v475
        %v949 = vunpack.c.h.b16 %v475
        %v950 = vunpack.c.l.b16 %v476
        %v951 = vunpack.c.h.b16 %v476
        %v952 = vunpack.c.l.b16 %v477
        %v953 = vunpack.c.h.b16 %v477
        %v954 = vunpack.c.l.b16 %v478
        %v955 = vunpack.c.h.b16 %v478
        %v956 = vunpack.c.l.b16 %v479
        %v957 = vunpack.c.h.b16 %v479
        %v958 = vunpack.c.l.b16 %v480
        %v959 = vunpack.c.h.b16 %v480
        %v960 = vunpack.c.l.b16 %v481
        %v961 = vunpack.c.h.b16 %v481
        %v962 = vunpack.c.l.b16 %v482
        %v963 = vunpack.c.h.b16 %v482
        %v964 = vunpack.c.l.b16 %v483
        %v965 = vunpack.c.h.b16 %v483
        %v966 = vunpack.c.l.b16 %v484
        %v967 = vunpack.c.h.b16 %v484
        %v968 = vunpack.c.l.b16 %v485
        %v969 = vunpack.c.h.b16 %v485
        %v970 = vunpack.c.l.b16 %v486
        %v971 = vunpack.c.h.b16 %v486
        %v972 = vunpack.c.l.b16 %v487
        %v973 = vunpack.c.h.b16 %v487
        %v974 = vunpack.c.l.b16 %v488
        %v975 = vunpack.c.h.b16 %v488
        %v976 = vunpack.c.l.b16 %v489
        %v977 = vunpack.c.h.b16 %v489
        %v978 = vunpack.c.l.b16 %v490
        %v979 = vunpack.c.h.b16 %v490
        %v980 = vunpack.c.l.b16 %v491
        %v981 = vunpack.c.h.b16 %v491
        %v982 = vunpack.c.l.b16 %v492
        %v983 = vunpack.c.h.b16 %v492
        %v984 = vunpack.c.l.b16 %v493
        %v985 = vunpack.c.h.b16 %v493
        %v986 = vunpack.c.l.b16 %v494
        %v987 = vunpack.c.h.b16 %v494
        %v988 = vunpack.c.l.b16 %v495
        %v989 = vunpack.c.h.b16 %v495
        %v990 = vunpack.c.l.b16 %v496
        %v991 = vunpack.c.h.b16 %v496
        %v992 = vunpack.c.l.b16 %v497
        %v993 = vunpack.c.h.b16 %v497
        %v994 = vunpack.c.l.b16 %v498
        %v995 = vunpack.c.h.b16 %v498
        %v996 = vunpack.c.l.b16 %v499
        %v997 = vunpack.c.h.b16 %v499
        %v998 = vunpack.c.l.b16 %v500
        %v999 = vunpack.c.h.b16 %v500
        %v1000 = vunpack.c.l.b16 %v501
        %v1001 = vunpack.c.h.b16 %v501
        %v1002 = vunpack.c.l.b16 %v502
        %v1003 = vunpack.c.h.b16 %v502
        %v1004 = vunpack.c.l.b16 %v503
        %v1005 = vunpack.c.h.b16 %v503
        %v1006 = vunpack.c.l.b16 %v504
        %v1007 = vunpack.c.h.b16 %v504
        %v1008 = vunpack.c.l.b16 %v505
        %v1009 = vunpack.c.h.b16 %v505
        %v1010 = vunpack.c.l.b16 %v506
        %v1011 = vunpack.c.h.b16 %v506
        %v1012 = vunpack.c.l.b16 %v507
        %v1013 = vunpack.c.h.b16 %v507
        %v1014 = vpack.c.b16 %v766, %v758
        %v1015 = vpack.c.b16 %v767, %v759
        %v1016 = vpack.c.b16 %v768, %v760
        %v1017 = vpack.c.b16 %v769, %v761
        %v1018 = vpack.c.b16 %v770, %v762
        %v1019 = vpack.c.b16 %v771, %v763
        %v1020 = vpack.c.b16 %v772, %v764
        %v1021 = vpack.c.b16 %v773, %v765
        %v1022 = vpack.c.b16 %v782, %v774
        %v1023 = vpack.c.b16 %v783, %v775
        %v1024 = vpack.c.b16 %v784, %v776
        %v1025 = vpack.c.b16 %v785, %v777
        %v1026 = vpack.c.b16 %v786, %v778
        %v1027 = vpack.c.b16 %v787, %v779
        %v1028 = vpack.c.b16 %v788, %v780
        %v1029 = vpack.c.b16 %v789, %v781
        %v1030 = vpack.c.b16 %v798, %v790
        %v1031 = vpack.c.b16 %v799, %v791
        %v1032 = vpack.c.b16 %v800, %v792
        %v1033 = vpack.c.b16 %v801, %v793
        %v1034 = vpack.c.b16 %v802, %v794
        %v1035 = vpack.c.b16 %v803, %v795
        %v1036 = vpack.c.b16 %v804, %v796
        %v1037 = vpack.c.b16 %v805, %v797
        %v1038 = vpack.c.b16 %v814, %v806
        %v1039 = vpack.c.b16 %v815, %v807
        %v1040 = vpack.c.b16 %v816, %v808
        %v1041 = vpack.c.b16 %v817, %v809
        %v1042 = vpack.c.b16 %v818, %v810
        %v1043 = vpack.c.b16 %v819, %v811
        %v1044 = vpack.c.b16 %v820, %v812
        %v1045 = vpack.c.b16 %v821, %v813
        %v1046 = vpack.c.b16 %v830, %v822
        %v1047 = vpack.c.b16 %v831, %v823
        %v1048 = vpack.c.b16 %v832, %v824
        %v1049 = vpack.c.b16 %v833, %v825
        %v1050 = vpack.c.b16 %v834, %v826
        %v1051 = vpack.c.b16 %v835, %v827
        %v1052 = vpack.c.b16 %v836, %v828
        %v1053 = vpack.c.b16 %v837, %v829
        %v1054 = vpack.c.b16 %v846, %v838
        %v1055 = vpack.c.b16 %v847, %v839
        %v1056 = vpack.c.b16 %v848, %v840
        %v1057 = vpack.c.b16 %v849, %v841
        %v1058 = vpack.c.b16 %v850, %v842
        %v1059 = vpack.c.b16 %v851, %v843
        %v1060 = vpack.c.b16 %v852, %v844
        %v1061 = vpack.c.b16 %v853, %v845
        %v1062 = vpack.c.b16 %v862, %v854
        %v1063 = vpack.c.b16 %v863, %v855
        %v1064 = vpack.c.b16 %v864, %v856
        %v1065 = vpack.c.b16 %v865, %v857
        %v1066 = vpack.c.b16 %v866, %v858
        %v1067 = vpack.c.b16 %v867, %v859
        %v1068 = vpack.c.b16 %v868, %v860
        %v1069 = vpack.c.b16 %v869, %v861
        %v1070 = vpack.c.b16 %v878, %v870
        %v1071 = vpack.c.b16 %v879, %v871
        %v1072 = vpack.c.b16 %v880, %v872
        %v1073 = vpack.c.b16 %v881, %v873
        %v1074 = vpack.c.b16 %v882, %v874
        %v1075 = vpack.c.b16 %v883, %v875
        %v1076 = vpack.c.b16 %v884, %v876
        %v1077 = vpack.c.b16 %v885, %v877
        %v1078 = vpack.c.b16 %v894, %v886
        %v1079 = vpack.c.b16 %v895, %v887
        %v1080 = vpack.c.b16 %v896, %v888
        %v1081 = vpack.c.b16 %v897, %v889
        %v1082 = vpack.c.b16 %v898, %v890
        %v1083 = vpack.c.b16 %v899, %v891
        %v1084 = vpack.c.b16 %v900, %v892
        %v1085 = vpack.c.b16 %v901, %v893
        %v1086 = vpack.c.b16 %v910, %v902
        %v1087 = vpack.c.b16 %v911, %v903
        %v1088 = vpack.c.b16 %v912, %v904
        %v1089 = vpack.c.b16 %v913, %v905
        %v1090 = vpack.c.b16 %v914, %v906
        %v1091 = vpack.c.b16 %v915, %v907
        %v1092 = vpack.c.b16 %v916, %v908
        %v1093 = vpack.c.b16 %v917, %v909
        %v1094 = vpack.c.b16 %v926, %v918
        %v1095 = vpack.c.b16 %v927, %v919
        %v1096 = vpack.c.b16 %v928, %v920
        %v1097 = vpack.c.b16 %v929, %v921
        %v1098 = vpack.c.b16 %v930, %v922
        %v1099 = vpack.c.b16 %v931, %v923
        %v1100 = vpack.c.b16 %v932, %v924
        %v1101 = vpack.c.b16 %v933, %v925
        %v1102 = vpack.c.b16 %v942, %v934
        %v1103 = vpack.c.b16 %v943, %v935
        %v1104 = vpack.c.b16 %v944, %v936
        %v1105 = vpack.c.b16 %v945, %v937
        %v1106 = vpack.c.b16 %v946, %v938
        %v1107 = vpack.c.b16 %v947, %v939
        %v1108 = vpack.c.b16 %v948, %v940
        %v1109 = vpack.c.b16 %v949, %v941
        %v1110 = vpack.c.b16 %v958, %v950
        %v1111 = vpack.c.b16 %v959, %v951
        %v1112 = vpack.c.b16 %v960, %v952
        %v1113 = vpack.c.b16 %v961, %v953
        %v1114 = vpack.c.b16 %v962, %v954
        %v1115 = vpack.c.b16 %v963, %v955
        %v1116 = vpack.c.b16 %v964, %v956
        %v1117 = vpack.c.b16 %v965, %v957
        %v1118 = vpack.c.b16 %v974, %v966
        %v1119 = vpack.c.b16 %v975, %v967
        %v1120 = vpack.c.b16 %v976, %v968
        %v1121 = vpack.c.b16 %v977, %v969
        %v1122 = vpack.c.b16 %v978, %v970
        %v1123 = vpack.c.b16 %v979, %v971
        %v1124 = vpack.c.b16 %v980, %v972
        %v1125 = vpack.c.b16 %v981, %v973
        %v1126 = vpack.c.b16 %v990, %v982
        %v1127 = vpack.c.b16 %v991, %v983
        %v1128 = vpack.c.b16 %v992, %v984
        %v1129 = vpack.c.b16 %v993, %v985
        %v1130 = vpack.c.b16 %v994, %v986
        %v1131 = vpack.c.b16 %v995, %v987
        %v1132 = vpack.c.b16 %v996, %v988
        %v1133 = vpack.c.b16 %v997, %v989
        %v1134 = vpack.c.b16 %v1006, %v998
        %v1135 = vpack.c.b16 %v1007, %v999
        %v1136 = vpack.c.b16 %v1008, %v1000
        %v1137 = vpack.c.b16 %v1009, %v1001
        %v1138 = vpack.c.b16 %v1010, %v1002
        %v1139 = vpack.c.b16 %v1011, %v1003
        %v1140 = vpack.c.b16 %v1012, %v1004
        %v1141 = vpack.c.b16 %v1013, %v1005
        %1270 = vmatprep.subr.bf16.mxu0 %v1015
        %1271 = vmatpush1.bf16.msra.mxu0 %v1014
        %1272 = vmatprep.subr.bf16.mxu0 %v1023
        %1273 = vmatpush1.bf16.msra.mxu0 %v1022
        %1274 = vmatprep.subr.bf16.mxu0 %v1031
        %1275 = vmatpush1.bf16.msra.mxu0 %v1030
        %1276 = vmatprep.subr.bf16.mxu0 %v1039
        %1277 = vmatpush1.bf16.msra.mxu0 %v1038
        %1278 = vmatprep.subr.bf16.mxu0 %v1047
        %1279 = vmatpush1.bf16.msra.mxu0 %v1046
        %1280 = vmatprep.subr.bf16.mxu0 %v1055
        %1281 = vmatpush1.bf16.msra.mxu0 %v1054
        %1282 = vmatprep.subr.bf16.mxu0 %v1063
        %1283 = vmatpush1.bf16.msra.mxu0 %v1062
        %1284 = vmatprep.subr.bf16.mxu0 %v1071
        %1285 = vmatpush1.bf16.msra.mxu0 %v1070
        %1286 = vmatprep.subr.bf16.mxu0 %v1079
        %1287 = vmatpush1.bf16.msra.mxu0 %v1078
        %1288 = vmatprep.subr.bf16.mxu0 %v1087
        %1289 = vmatpush1.bf16.msra.mxu0 %v1086
        %1290 = vmatprep.subr.bf16.mxu0 %v1095
        %1291 = vmatpush1.bf16.msra.mxu0 %v1094
        %1292 = vmatprep.subr.bf16.mxu0 %v1103
        %1293 = vmatpush1.bf16.msra.mxu0 %v1102
        %1294 = vmatprep.subr.bf16.mxu0 %v1111
        %1295 = vmatpush1.bf16.msra.mxu0 %v1110
        %1296 = vmatprep.subr.bf16.mxu0 %v1119
        %1297 = vmatpush1.bf16.msra.mxu0 %v1118
        %1298 = vmatprep.subr.bf16.mxu0 %v1127
        %1299 = vmatpush1.bf16.msra.mxu0 %v1126
        %1300 = vmatprep.subr.bf16.mxu0 %v1135
        %1301 = vmatpush1.bf16.msra.mxu0 %v1134
        %1302 = vmatprep.mubr.bf16.mxu0 %v599
        %1303 = vmatmul.mubr.bf16.gmra.mrb[0].mxu0 %v598
        %v1304 = vpop.f32.mrb[0].mxu0
        %v1305 = vadd.f32 %v513, %v1304
        %v1306 = vpop.f32.mrb[0].mxu0
        %v1307 = vadd.f32 %v517, %v1306
        %v1308 = vpop.f32.mrb[0].mxu0
        %v1309 = vadd.f32 %v513, %v1308
        %v1310 = vpop.f32.mrb[0].mxu0
        %v1311 = vadd.f32 %v517, %v1310
        %1312 = vmatprep.mubr.bf16.mxu0 %v601
        %1313 = vmatmul.mubr.bf16.gmra.mrb[0].mxu0 %v600
        %v1314 = vpop.f32.mrb[0].mxu0
        %v1315 = vadd.f32 %v513, %v1314
        %v1316 = vpop.f32.mrb[0].mxu0
        %v1317 = vadd.f32 %v517, %v1316
        %v1318 = vpop.f32.mrb[0].mxu0
        %v1319 = vadd.f32 %v513, %v1318
        %v1320 = vpop.f32.mrb[0].mxu0
        %v1321 = vadd.f32 %v517, %v1320
        %1322 = vmatprep.mubr.bf16.mxu0 %v603
        %1323 = vmatmul.mubr.bf16.gmra.mrb[0].mxu0 %v602
        %v1324 = vpop.f32.mrb[0].mxu0
        %v1325 = vadd.f32 %v513, %v1324
        %v1326 = vpop.f32.mrb[0].mxu0
        %v1327 = vadd.f32 %v517, %v1326
        %v1328 = vpop.f32.mrb[0].mxu0
        %v1329 = vadd.f32 %v513, %v1328
        %v1330 = vpop.f32.mrb[0].mxu0
        %v1331 = vadd.f32 %v517, %v1330
        %1332 = vmatprep.mubr.bf16.mxu0 %v605
        %1333 = vmatmul.mubr.bf16.gmra.mrb[0].mxu0 %v604
        %v1334 = vpop.f32.mrb[0].mxu0
        %v1335 = vadd.f32 %v513, %v1334
        %v1336 = vpop.f32.mrb[0].mxu0
        %v1337 = vadd.f32 %v517, %v1336
        %v1338 = vpop.f32.mrb[0].mxu0
        %v1339 = vadd.f32 %v513, %v1338
        %v1340 = vpop.f32.mrb[0].mxu0
        %v1341 = vadd.f32 %v517, %v1340
        %1342 = vmatprep.mubr.bf16.mxu0 %v607
        %1343 = vmatmul.mubr.bf16.gmra.mrb[0].mxu0 %v606
        %v1344 = vpop.f32.mrb[0].mxu0
        %v1345 = vadd.f32 %v513, %v1344
        %v1346 = vpop.f32.mrb[0].mxu0
        %v1347 = vadd.f32 %v517, %v1346
        %v1348 = vpop.f32.mrb[0].mxu0
        %v1349 = vadd.f32 %v513, %v1348
        %v1350 = vpop.f32.mrb[0].mxu0
        %v1351 = vadd.f32 %v517, %v1350
        %1352 = vmatprep.mubr.bf16.mxu0 %v609
        %1353 = vmatmul.mubr.bf16.gmra.mrb[0].mxu0 %v608
        %v1354 = vpop.f32.mrb[0].mxu0
        %v1355 = vadd.f32 %v513, %v1354
        %v1356 = vpop.f32.mrb[0].mxu0
        %v1357 = vadd.f32 %v517, %v1356
        %v1358 = vpop.f32.mrb[0].mxu0
        %v1359 = vadd.f32 %v513, %v1358
        %v1360 = vpop.f32.mrb[0].mxu0
        %v1361 = vadd.f32 %v517, %v1360
        %1362 = vmatprep.mubr.bf16.mxu0 %v611
        %1363 = vmatmul.mubr.bf16.gmra.mrb[0].mxu0 %v610
        %v1364 = vpop.f32.mrb[0].mxu0
        %v1365 = vadd.f32 %v513, %v1364
        %v1366 = vpop.f32.mrb[0].mxu0
        %v1367 = vadd.f32 %v517, %v1366
        %v1368 = vpop.f32.mrb[0].mxu0
        %v1369 = vadd.f32 %v513, %v1368
        %v1370 = vpop.f32.mrb[0].mxu0
        %v1371 = vadd.f32 %v517, %v1370
        %1372 = vmatprep.mubr.bf16.mxu0 %v613
        %1373 = vmatmul.mubr.bf16.gmra.mrb[0].mxu0 %v612
        %v1374 = vpop.f32.mrb[0].mxu0
        %v1375 = vadd.f32 %v513, %v1374
        %v1376 = vpop.f32.mrb[0].mxu0
        %v1377 = vadd.f32 %v517, %v1376
        %v1378 = vpop.f32.mrb[0].mxu0
        %v1379 = vadd.f32 %v513, %v1378
        %v1380 = vpop.f32.mrb[0].mxu0
        %v1381 = vadd.f32 %v517, %v1380
        %1382 = vdwg.mxu0
        %1383 = vmatprep.subr.bf16.mxu0 %v1017
        %1384 = vmatpush1.bf16.msra.mxu0 %v1016
        %1385 = vmatprep.subr.bf16.mxu0 %v1025
        %1386 = vmatpush1.bf16.msra.mxu0 %v1024
        %1387 = vmatprep.subr.bf16.mxu0 %v1033
        %1388 = vmatpush1.bf16.msra.mxu0 %v1032
        %1389 = vmatprep.subr.bf16.mxu0 %v1041
        %1390 = vmatpush1.bf16.msra.mxu0 %v1040
        %1391 = vmatprep.subr.bf16.mxu0 %v1049
        %1392 = vmatpush1.bf16.msra.mxu0 %v1048
        %1393 = vmatprep.subr.bf16.mxu0 %v1057
        %1394 = vmatpush1.bf16.msra.mxu0 %v1056
        %1395 = vmatprep.subr.bf16.mxu0 %v1065
        %1396 = vmatpush1.bf16.msra.mxu0 %v1064
        %1397 = vmatprep.subr.bf16.mxu0 %v1073
        %1398 = vmatpush1.bf16.msra.mxu0 %v1072
        %1399 = vmatprep.subr.bf16.mxu0 %v1081
        %1400 = vmatpush1.bf16.msra.mxu0 %v1080
        %1401 = vmatprep.subr.bf16.mxu0 %v1089
        %1402 = vmatpush1.bf16.msra.mxu0 %v1088
        %1403 = vmatprep.subr.bf16.mxu0 %v1097
        %1404 = vmatpush1.bf16.msra.mxu0 %v1096
        %1405 = vmatprep.subr.bf16.mxu0 %v1105
        %1406 = vmatpush1.bf16.msra.mxu0 %v1104
        %1407 = vmatprep.subr.bf16.mxu0 %v1113
        %1408 = vmatpush1.bf16.msra.mxu0 %v1112
        %1409 = vmatprep.subr.bf16.mxu0 %v1121
        %1410 = vmatpush1.bf16.msra.mxu0 %v1120
        %1411 = vmatprep.subr.bf16.mxu0 %v1129
        %1412 = vmatpush1.bf16.msra.mxu0 %v1128
        %1413 = vmatprep.subr.bf16.mxu0 %v1137
        %1414 = vmatpush1.bf16.msra.mxu0 %v1136
        %1415 = vmatprep.mubr.bf16.mxu0 %v599
        %1416 = vmatmul.mubr.bf16.gmra.mrb[0].mxu0 %v598
        %v1417 = vpop.f32.mrb[0].mxu0
        %v1418 = vadd.f32 %v521, %v1417
        %v1419 = vpop.f32.mrb[0].mxu0
        %v1420 = vadd.f32 %v525, %v1419
        %v1421 = vpop.f32.mrb[0].mxu0
        %v1422 = vadd.f32 %v521, %v1421
        %v1423 = vpop.f32.mrb[0].mxu0
        %v1424 = vadd.f32 %v525, %v1423
        %1425 = vmatprep.mubr.bf16.mxu0 %v601
        %1426 = vmatmul.mubr.bf16.gmra.mrb[0].mxu0 %v600
        %v1427 = vpop.f32.mrb[0].mxu0
        %v1428 = vadd.f32 %v521, %v1427
        %v1429 = vpop.f32.mrb[0].mxu0
        %v1430 = vadd.f32 %v525, %v1429
        %v1431 = vpop.f32.mrb[0].mxu0
        %v1432 = vadd.f32 %v521, %v1431
        %v1433 = vpop.f32.mrb[0].mxu0
        %v1434 = vadd.f32 %v525, %v1433
        %1435 = vmatprep.mubr.bf16.mxu0 %v603
        %1436 = vmatmul.mubr.bf16.gmra.mrb[0].mxu0 %v602
        %v1437 = vpop.f32.mrb[0].mxu0
        %v1438 = vadd.f32 %v521, %v1437
        %v1439 = vpop.f32.mrb[0].mxu0
        %v1440 = vadd.f32 %v525, %v1439
        %v1441 = vpop.f32.mrb[0].mxu0
        %v1442 = vadd.f32 %v521, %v1441
        %v1443 = vpop.f32.mrb[0].mxu0
        %v1444 = vadd.f32 %v525, %v1443
        %1445 = vmatprep.mubr.bf16.mxu0 %v605
        %1446 = vmatmul.mubr.bf16.gmra.mrb[0].mxu0 %v604
        %v1447 = vpop.f32.mrb[0].mxu0
        %v1448 = vadd.f32 %v521, %v1447
        %v1449 = vpop.f32.mrb[0].mxu0
        %v1450 = vadd.f32 %v525, %v1449
        %v1451 = vpop.f32.mrb[0].mxu0
        %v1452 = vadd.f32 %v521, %v1451
        %v1453 = vpop.f32.mrb[0].mxu0
        %v1454 = vadd.f32 %v525, %v1453
        %1455 = vmatprep.mubr.bf16.mxu0 %v607
        %1456 = vmatmul.mubr.bf16.gmra.mrb[0].mxu0 %v606
        %v1457 = vpop.f32.mrb[0].mxu0
        %v1458 = vadd.f32 %v521, %v1457
        %v1459 = vpop.f32.mrb[0].mxu0
        %v1460 = vadd.f32 %v525, %v1459
        %v1461 = vpop.f32.mrb[0].mxu0
        %v1462 = vadd.f32 %v521, %v1461
        %v1463 = vpop.f32.mrb[0].mxu0
        %v1464 = vadd.f32 %v525, %v1463
        %1465 = vmatprep.mubr.bf16.mxu0 %v609
        %1466 = vmatmul.mubr.bf16.gmra.mrb[0].mxu0 %v608
        %v1467 = vpop.f32.mrb[0].mxu0
        %v1468 = vadd.f32 %v521, %v1467
        %v1469 = vpop.f32.mrb[0].mxu0
        %v1470 = vadd.f32 %v525, %v1469
        %v1471 = vpop.f32.mrb[0].mxu0
        %v1472 = vadd.f32 %v521, %v1471
        %v1473 = vpop.f32.mrb[0].mxu0
        %v1474 = vadd.f32 %v525, %v1473
        %1475 = vmatprep.mubr.bf16.mxu0 %v611
        %1476 = vmatmul.mubr.bf16.gmra.mrb[0].mxu0 %v610
        %v1477 = vpop.f32.mrb[0].mxu0
        %v1478 = vadd.f32 %v521, %v1477
        %v1479 = vpop.f32.mrb[0].mxu0
        %v1480 = vadd.f32 %v525, %v1479
        %v1481 = vpop.f32.mrb[0].mxu0
        %v1482 = vadd.f32 %v521, %v1481
        %v1483 = vpop.f32.mrb[0].mxu0
        %v1484 = vadd.f32 %v525, %v1483
        %1485 = vmatprep.mubr.bf16.mxu0 %v613
        %1486 = vmatmul.mubr.bf16.gmra.mrb[0].mxu0 %v612
        %v1487 = vpop.f32.mrb[0].mxu0
        %v1488 = vadd.f32 %v521, %v1487
        %v1489 = vpop.f32.mrb[0].mxu0
        %v1490 = vadd.f32 %v525, %v1489
        %v1491 = vpop.f32.mrb[0].mxu0
        %v1492 = vadd.f32 %v521, %v1491
        %v1493 = vpop.f32.mrb[0].mxu0
        %v1494 = vadd.f32 %v525, %v1493
        %1495 = vdwg.mxu0
        %1496 = vmatprep.subr.bf16.mxu0 %v1019
        %1497 = vmatpush1.bf16.msra.mxu0 %v1018
        %1498 = vmatprep.subr.bf16.mxu0 %v1027
        %1499 = vmatpush1.bf16.msra.mxu0 %v1026
        %1500 = vmatprep.subr.bf16.mxu0 %v1035
        %1501 = vmatpush1.bf16.msra.mxu0 %v1034
        %1502 = vmatprep.subr.bf16.mxu0 %v1043
        %1503 = vmatpush1.bf16.msra.mxu0 %v1042
        %1504 = vmatprep.subr.bf16.mxu0 %v1051
        %1505 = vmatpush1.bf16.msra.mxu0 %v1050
        %1506 = vmatprep.subr.bf16.mxu0 %v1059
        %1507 = vmatpush1.bf16.msra.mxu0 %v1058
        %1508 = vmatprep.subr.bf16.mxu0 %v1067
        %1509 = vmatpush1.bf16.msra.mxu0 %v1066
        %1510 = vmatprep.subr.bf16.mxu0 %v1075
        %1511 = vmatpush1.bf16.msra.mxu0 %v1074
        %1512 = vmatprep.subr.bf16.mxu0 %v1083
        %1513 = vmatpush1.bf16.msra.mxu0 %v1082
        %1514 = vmatprep.subr.bf16.mxu0 %v1091
        %1515 = vmatpush1.bf16.msra.mxu0 %v1090
        %1516 = vmatprep.subr.bf16.mxu0 %v1099
        %1517 = vmatpush1.bf16.msra.mxu0 %v1098
        %1518 = vmatprep.subr.bf16.mxu0 %v1107
        %1519 = vmatpush1.bf16.msra.mxu0 %v1106
        %1520 = vmatprep.subr.bf16.mxu0 %v1115
        %1521 = vmatpush1.bf16.msra.mxu0 %v1114
        %1522 = vmatprep.subr.bf16.mxu0 %v1123
        %1523 = vmatpush1.bf16.msra.mxu0 %v1122
        %1524 = vmatprep.subr.bf16.mxu0 %v1131
        %1525 = vmatpush1.bf16.msra.mxu0 %v1130
        %1526 = vmatprep.subr.bf16.mxu0 %v1139
        %1527 = vmatpush1.bf16.msra.mxu0 %v1138
        %1528 = vmatprep.mubr.bf16.mxu0 %v599
        %1529 = vmatmul.mubr.bf16.gmra.mrb[0].mxu0 %v598
        %v1530 = vpop.f32.mrb[0].mxu0
        %v1531 = vadd.f32 %v529, %v1530
        %v1532 = vpop.f32.mrb[0].mxu0
        %v1533 = vadd.f32 %v533, %v1532
        %v1534 = vpop.f32.mrb[0].mxu0
        %v1535 = vadd.f32 %v529, %v1534
        %v1536 = vpop.f32.mrb[0].mxu0
        %v1537 = vadd.f32 %v533, %v1536
        %1538 = vmatprep.mubr.bf16.mxu0 %v601
        %1539 = vmatmul.mubr.bf16.gmra.mrb[0].mxu0 %v600
        %v1540 = vpop.f32.mrb[0].mxu0
        %v1541 = vadd.f32 %v529, %v1540
        %v1542 = vpop.f32.mrb[0].mxu0
        %v1543 = vadd.f32 %v533, %v1542
        %v1544 = vpop.f32.mrb[0].mxu0
        %v1545 = vadd.f32 %v529, %v1544
        %v1546 = vpop.f32.mrb[0].mxu0
        %v1547 = vadd.f32 %v533, %v1546
        %1548 = vmatprep.mubr.bf16.mxu0 %v603
        %1549 = vmatmul.mubr.bf16.gmra.mrb[0].mxu0 %v602
        %v1550 = vpop.f32.mrb[0].mxu0
        %v1551 = vadd.f32 %v529, %v1550
        %v1552 = vpop.f32.mrb[0].mxu0
        %v1553 = vadd.f32 %v533, %v1552
        %v1554 = vpop.f32.mrb[0].mxu0
        %v1555 = vadd.f32 %v529, %v1554
        %v1556 = vpop.f32.mrb[0].mxu0
        %v1557 = vadd.f32 %v533, %v1556
        %1558 = vmatprep.mubr.bf16.mxu0 %v605
        %1559 = vmatmul.mubr.bf16.gmra.mrb[0].mxu0 %v604
        %v1560 = vpop.f32.mrb[0].mxu0
        %v1561 = vadd.f32 %v529, %v1560
        %v1562 = vpop.f32.mrb[0].mxu0
        %v1563 = vadd.f32 %v533, %v1562
        %v1564 = vpop.f32.mrb[0].mxu0
        %v1565 = vadd.f32 %v529, %v1564
        %v1566 = vpop.f32.mrb[0].mxu0
        %v1567 = vadd.f32 %v533, %v1566
        %1568 = vmatprep.mubr.bf16.mxu0 %v607
        %1569 = vmatmul.mubr.bf16.gmra.mrb[0].mxu0 %v606
        %v1570 = vpop.f32.mrb[0].mxu0
        %v1571 = vadd.f32 %v529, %v1570
        %v1572 = vpop.f32.mrb[0].mxu0
        %v1573 = vadd.f32 %v533, %v1572
        %v1574 = vpop.f32.mrb[0].mxu0
        %v1575 = vadd.f32 %v529, %v1574
        %v1576 = vpop.f32.mrb[0].mxu0
        %v1577 = vadd.f32 %v533, %v1576
        %1578 = vmatprep.mubr.bf16.mxu0 %v609
        %1579 = vmatmul.mubr.bf16.gmra.mrb[0].mxu0 %v608
        %v1580 = vpop.f32.mrb[0].mxu0
        %v1581 = vadd.f32 %v529, %v1580
        %v1582 = vpop.f32.mrb[0].mxu0
        %v1583 = vadd.f32 %v533, %v1582
        %v1584 = vpop.f32.mrb[0].mxu0
        %v1585 = vadd.f32 %v529, %v1584
        %v1586 = vpop.f32.mrb[0].mxu0
        %v1587 = vadd.f32 %v533, %v1586
        %1588 = vmatprep.mubr.bf16.mxu0 %v611
        %1589 = vmatmul.mubr.bf16.gmra.mrb[0].mxu0 %v610
        %v1590 = vpop.f32.mrb[0].mxu0
        %v1591 = vadd.f32 %v529, %v1590
        %v1592 = vpop.f32.mrb[0].mxu0
        %v1593 = vadd.f32 %v533, %v1592
        %v1594 = vpop.f32.mrb[0].mxu0
        %v1595 = vadd.f32 %v529, %v1594
        %v1596 = vpop.f32.mrb[0].mxu0
        %v1597 = vadd.f32 %v533, %v1596
        %1598 = vmatprep.mubr.bf16.mxu0 %v613
        %1599 = vmatmul.mubr.bf16.gmra.mrb[0].mxu0 %v612
        %v1600 = vpop.f32.mrb[0].mxu0
        %v1601 = vadd.f32 %v529, %v1600
        %v1602 = vpop.f32.mrb[0].mxu0
        %v1603 = vadd.f32 %v533, %v1602
        %v1604 = vpop.f32.mrb[0].mxu0
        %v1605 = vadd.f32 %v529, %v1604
        %v1606 = vpop.f32.mrb[0].mxu0
        %v1607 = vadd.f32 %v533, %v1606
        %1608 = vdwg.mxu0
        %1609 = vmatprep.subr.bf16.mxu0 %v1021
        %1610 = vmatpush1.bf16.msra.mxu0 %v1020
        %1611 = vmatprep.subr.bf16.mxu0 %v1029
        %1612 = vmatpush1.bf16.msra.mxu0 %v1028
        %1613 = vmatprep.subr.bf16.mxu0 %v1037
        %1614 = vmatpush1.bf16.msra.mxu0 %v1036
        %1615 = vmatprep.subr.bf16.mxu0 %v1045
        %1616 = vmatpush1.bf16.msra.mxu0 %v1044
        %1617 = vmatprep.subr.bf16.mxu0 %v1053
        %1618 = vmatpush1.bf16.msra.mxu0 %v1052
        %1619 = vmatprep.subr.bf16.mxu0 %v1061
        %1620 = vmatpush1.bf16.msra.mxu0 %v1060
        %1621 = vmatprep.subr.bf16.mxu0 %v1069
        %1622 = vmatpush1.bf16.msra.mxu0 %v1068
        %1623 = vmatprep.subr.bf16.mxu0 %v1077
        %1624 = vmatpush1.bf16.msra.mxu0 %v1076
        %1625 = vmatprep.subr.bf16.mxu0 %v1085
        %1626 = vmatpush1.bf16.msra.mxu0 %v1084
        %1627 = vmatprep.subr.bf16.mxu0 %v1093
        %1628 = vmatpush1.bf16.msra.mxu0 %v1092
        %1629 = vmatprep.subr.bf16.mxu0 %v1101
        %1630 = vmatpush1.bf16.msra.mxu0 %v1100
        %1631 = vmatprep.subr.bf16.mxu0 %v1109
        %1632 = vmatpush1.bf16.msra.mxu0 %v1108
        %1633 = vmatprep.subr.bf16.mxu0 %v1117
        %1634 = vmatpush1.bf16.msra.mxu0 %v1116
        %1635 = vmatprep.subr.bf16.mxu0 %v1125
        %1636 = vmatpush1.bf16.msra.mxu0 %v1124
        %1637 = vmatprep.subr.bf16.mxu0 %v1133
        %1638 = vmatpush1.bf16.msra.mxu0 %v1132
        %1639 = vmatprep.subr.bf16.mxu0 %v1141
        %1640 = vmatpush1.bf16.msra.mxu0 %v1140
        %1641 = vmatprep.mubr.bf16.mxu0 %v599
        %1642 = vmatmul.mubr.bf16.gmra.mrb[0].mxu0 %v598
        %v1643 = vpop.f32.mrb[0].mxu0
        %v1644 = vadd.f32 %v537, %v1643
        %v1645 = vpop.f32.mrb[0].mxu0
        %v1646 = vadd.f32 %v541, %v1645
        %v1647 = vpop.f32.mrb[0].mxu0
        %v1648 = vadd.f32 %v537, %v1647
        %v1649 = vpop.f32.mrb[0].mxu0
        %v1650 = vadd.f32 %v541, %v1649
        %1651 = vmatprep.mubr.bf16.mxu0 %v601
        %1652 = vmatmul.mubr.bf16.gmra.mrb[0].mxu0 %v600
        %v1653 = vpop.f32.mrb[0].mxu0
        %v1654 = vadd.f32 %v537, %v1653
        %v1655 = vpop.f32.mrb[0].mxu0
        %v1656 = vadd.f32 %v541, %v1655
        %v1657 = vpop.f32.mrb[0].mxu0
        %v1658 = vadd.f32 %v537, %v1657
        %v1659 = vpop.f32.mrb[0].mxu0
        %v1660 = vadd.f32 %v541, %v1659
        %1661 = vmatprep.mubr.bf16.mxu0 %v603
        %1662 = vmatmul.mubr.bf16.gmra.mrb[0].mxu0 %v602
        %v1663 = vpop.f32.mrb[0].mxu0
        %v1664 = vadd.f32 %v537, %v1663
        %v1665 = vpop.f32.mrb[0].mxu0
        %v1666 = vadd.f32 %v541, %v1665
        %v1667 = vpop.f32.mrb[0].mxu0
        %v1668 = vadd.f32 %v537, %v1667
        %v1669 = vpop.f32.mrb[0].mxu0
        %v1670 = vadd.f32 %v541, %v1669
        %1671 = vmatprep.mubr.bf16.mxu0 %v605
        %1672 = vmatmul.mubr.bf16.gmra.mrb[0].mxu0 %v604
        %v1673 = vpop.f32.mrb[0].mxu0
        %v1674 = vadd.f32 %v537, %v1673
        %v1675 = vpop.f32.mrb[0].mxu0
        %v1676 = vadd.f32 %v541, %v1675
        %v1677 = vpop.f32.mrb[0].mxu0
        %v1678 = vadd.f32 %v537, %v1677
        %v1679 = vpop.f32.mrb[0].mxu0
        %v1680 = vadd.f32 %v541, %v1679
        %1681 = vmatprep.mubr.bf16.mxu0 %v607
        %1682 = vmatmul.mubr.bf16.gmra.mrb[0].mxu0 %v606
        %v1683 = vpop.f32.mrb[0].mxu0
        %v1684 = vadd.f32 %v537, %v1683
        %v1685 = vpop.f32.mrb[0].mxu0
        %v1686 = vadd.f32 %v541, %v1685
        %v1687 = vpop.f32.mrb[0].mxu0
        %v1688 = vadd.f32 %v537, %v1687
        %v1689 = vpop.f32.mrb[0].mxu0
        %v1690 = vadd.f32 %v541, %v1689
        %1691 = vmatprep.mubr.bf16.mxu0 %v609
        %1692 = vmatmul.mubr.bf16.gmra.mrb[0].mxu0 %v608
        %v1693 = vpop.f32.mrb[0].mxu0
        %v1694 = vadd.f32 %v537, %v1693
        %v1695 = vpop.f32.mrb[0].mxu0
        %v1696 = vadd.f32 %v541, %v1695
        %v1697 = vpop.f32.mrb[0].mxu0
        %v1698 = vadd.f32 %v537, %v1697
        %v1699 = vpop.f32.mrb[0].mxu0
        %v1700 = vadd.f32 %v541, %v1699
        %1701 = vmatprep.mubr.bf16.mxu0 %v611
        %1702 = vmatmul.mubr.bf16.gmra.mrb[0].mxu0 %v610
        %v1703 = vpop.f32.mrb[0].mxu0
        %v1704 = vadd.f32 %v537, %v1703
        %v1705 = vpop.f32.mrb[0].mxu0
        %v1706 = vadd.f32 %v541, %v1705
        %v1707 = vpop.f32.mrb[0].mxu0
        %v1708 = vadd.f32 %v537, %v1707
        %v1709 = vpop.f32.mrb[0].mxu0
        %v1710 = vadd.f32 %v541, %v1709
        %1711 = vmatprep.mubr.bf16.mxu0 %v613
        %1712 = vmatmul.mubr.bf16.gmra.mrb[0].mxu0 %v612
        %v1713 = vpop.f32.mrb[0].mxu0
        %v1714 = vadd.f32 %v537, %v1713
        %v1715 = vpop.f32.mrb[0].mxu0
        %v1716 = vadd.f32 %v541, %v1715
        %v1717 = vpop.f32.mrb[0].mxu0
        %v1718 = vadd.f32 %v537, %v1717
        %v1719 = vpop.f32.mrb[0].mxu0
        %v1720 = vadd.f32 %v541, %v1719
        %1721 = vdwg.mxu0
        %v1722 = vmul.f32 %v1305, 0.5
        %v1723 = vmul.f32 %v1307, 0.5
        %v1724 = vmul.f32 %v1418, 0.5
        %v1725 = vmul.f32 %v1420, 0.5
        %v1726 = vmul.f32 %v1531, 0.5
        %v1727 = vmul.f32 %v1533, 0.5
        %v1728 = vmul.f32 %v1644, 0.5
        %v1729 = vmul.f32 %v1646, 0.5
        %v1730 = vmul.f32 %v1309, 0.5
        %v1731 = vmul.f32 %v1311, 0.5
        %v1732 = vmul.f32 %v1422, 0.5
        %v1733 = vmul.f32 %v1424, 0.5
        %v1734 = vmul.f32 %v1535, 0.5
        %v1735 = vmul.f32 %v1537, 0.5
        %v1736 = vmul.f32 %v1648, 0.5
        %v1737 = vmul.f32 %v1650, 0.5
        %v1738 = vmul.f32 %v1315, 0.5
        %v1739 = vmul.f32 %v1317, 0.5
        %v1740 = vmul.f32 %v1428, 0.5
        %v1741 = vmul.f32 %v1430, 0.5
        %v1742 = vmul.f32 %v1541, 0.5
        %v1743 = vmul.f32 %v1543, 0.5
        %v1744 = vmul.f32 %v1654, 0.5
        %v1745 = vmul.f32 %v1656, 0.5
        %v1746 = vmul.f32 %v1319, 0.5
        %v1747 = vmul.f32 %v1321, 0.5
        %v1748 = vmul.f32 %v1432, 0.5
        %v1749 = vmul.f32 %v1434, 0.5
        %v1750 = vmul.f32 %v1545, 0.5
        %v1751 = vmul.f32 %v1547, 0.5
        %v1752 = vmul.f32 %v1658, 0.5
        %v1753 = vmul.f32 %v1660, 0.5
        %v1754 = vmul.f32 %v1325, 0.5
        %v1755 = vmul.f32 %v1327, 0.5
        %v1756 = vmul.f32 %v1438, 0.5
        %v1757 = vmul.f32 %v1440, 0.5
        %v1758 = vmul.f32 %v1551, 0.5
        %v1759 = vmul.f32 %v1553, 0.5
        %v1760 = vmul.f32 %v1664, 0.5
        %v1761 = vmul.f32 %v1666, 0.5
        %v1762 = vmul.f32 %v1329, 0.5
        %v1763 = vmul.f32 %v1331, 0.5
        %v1764 = vmul.f32 %v1442, 0.5
        %v1765 = vmul.f32 %v1444, 0.5
        %v1766 = vmul.f32 %v1555, 0.5
        %v1767 = vmul.f32 %v1557, 0.5
        %v1768 = vmul.f32 %v1668, 0.5
        %v1769 = vmul.f32 %v1670, 0.5
        %v1770 = vmul.f32 %v1335, 0.5
        %v1771 = vmul.f32 %v1337, 0.5
        %v1772 = vmul.f32 %v1448, 0.5
        %v1773 = vmul.f32 %v1450, 0.5
        %v1774 = vmul.f32 %v1561, 0.5
        %v1775 = vmul.f32 %v1563, 0.5
        %v1776 = vmul.f32 %v1674, 0.5
        %v1777 = vmul.f32 %v1676, 0.5
        %v1778 = vmul.f32 %v1339, 0.5
        %v1779 = vmul.f32 %v1341, 0.5
        %v1780 = vmul.f32 %v1452, 0.5
        %v1781 = vmul.f32 %v1454, 0.5
        %v1782 = vmul.f32 %v1565, 0.5
        %v1783 = vmul.f32 %v1567, 0.5
        %v1784 = vmul.f32 %v1678, 0.5
        %v1785 = vmul.f32 %v1680, 0.5
        %v1786 = vmul.f32 %v1345, 0.5
        %v1787 = vmul.f32 %v1347, 0.5
        %v1788 = vmul.f32 %v1458, 0.5
        %v1789 = vmul.f32 %v1460, 0.5
        %v1790 = vmul.f32 %v1571, 0.5
        %v1791 = vmul.f32 %v1573, 0.5
        %v1792 = vmul.f32 %v1684, 0.5
        %v1793 = vmul.f32 %v1686, 0.5
        %v1794 = vmul.f32 %v1349, 0.5
        %v1795 = vmul.f32 %v1351, 0.5
        %v1796 = vmul.f32 %v1462, 0.5
        %v1797 = vmul.f32 %v1464, 0.5
        %v1798 = vmul.f32 %v1575, 0.5
        %v1799 = vmul.f32 %v1577, 0.5
        %v1800 = vmul.f32 %v1688, 0.5
        %v1801 = vmul.f32 %v1690, 0.5
        %v1802 = vmul.f32 %v1355, 0.5
        %v1803 = vmul.f32 %v1357, 0.5
        %v1804 = vmul.f32 %v1468, 0.5
        %v1805 = vmul.f32 %v1470, 0.5
        %v1806 = vmul.f32 %v1581, 0.5
        %v1807 = vmul.f32 %v1583, 0.5
        %v1808 = vmul.f32 %v1694, 0.5
        %v1809 = vmul.f32 %v1696, 0.5
        %v1810 = vmul.f32 %v1359, 0.5
        %v1811 = vmul.f32 %v1361, 0.5
        %v1812 = vmul.f32 %v1472, 0.5
        %v1813 = vmul.f32 %v1474, 0.5
        %v1814 = vmul.f32 %v1585, 0.5
        %v1815 = vmul.f32 %v1587, 0.5
        %v1816 = vmul.f32 %v1698, 0.5
        %v1817 = vmul.f32 %v1700, 0.5
        %v1818 = vmul.f32 %v1365, 0.5
        %v1819 = vmul.f32 %v1367, 0.5
        %v1820 = vmul.f32 %v1478, 0.5
        %v1821 = vmul.f32 %v1480, 0.5
        %v1822 = vmul.f32 %v1591, 0.5
        %v1823 = vmul.f32 %v1593, 0.5
        %v1824 = vmul.f32 %v1704, 0.5
        %v1825 = vmul.f32 %v1706, 0.5
        %v1826 = vmul.f32 %v1369, 0.5
        %v1827 = vmul.f32 %v1371, 0.5
        %v1828 = vmul.f32 %v1482, 0.5
        %v1829 = vmul.f32 %v1484, 0.5
        %v1830 = vmul.f32 %v1595, 0.5
        %v1831 = vmul.f32 %v1597, 0.5
        %v1832 = vmul.f32 %v1708, 0.5
        %v1833 = vmul.f32 %v1710, 0.5
        %v1834 = vmul.f32 %v1375, 0.5
        %v1835 = vmul.f32 %v1377, 0.5
        %v1836 = vmul.f32 %v1488, 0.5
        %v1837 = vmul.f32 %v1490, 0.5
        %v1838 = vmul.f32 %v1601, 0.5
        %v1839 = vmul.f32 %v1603, 0.5
        %v1840 = vmul.f32 %v1714, 0.5
        %v1841 = vmul.f32 %v1716, 0.5
        %v1842 = vmul.f32 %v1379, 0.5
        %v1843 = vmul.f32 %v1381, 0.5
        %v1844 = vmul.f32 %v1492, 0.5
        %v1845 = vmul.f32 %v1494, 0.5
        %v1846 = vmul.f32 %v1605, 0.5
        %v1847 = vmul.f32 %v1607, 0.5
        %v1848 = vmul.f32 %v1718, 0.5
        %v1849 = vmul.f32 %v1720, 0.5
        %v1850 = vmul.f32 %v1305, 0.70710677
        %v1851 = vmul.f32 %v1307, 0.70710677
        %v1852 = vmul.f32 %v1418, 0.70710677
        %v1853 = vmul.f32 %v1420, 0.70710677
        %v1854 = vmul.f32 %v1531, 0.70710677
        %v1855 = vmul.f32 %v1533, 0.70710677
        %v1856 = vmul.f32 %v1644, 0.70710677
        %v1857 = vmul.f32 %v1646, 0.70710677
        %v1858 = vmul.f32 %v1309, 0.70710677
        %v1859 = vmul.f32 %v1311, 0.70710677
        %v1860 = vmul.f32 %v1422, 0.70710677
        %v1861 = vmul.f32 %v1424, 0.70710677
        %v1862 = vmul.f32 %v1535, 0.70710677
        %v1863 = vmul.f32 %v1537, 0.70710677
        %v1864 = vmul.f32 %v1648, 0.70710677
        %v1865 = vmul.f32 %v1650, 0.70710677
        %v1866 = vmul.f32 %v1315, 0.70710677
        %v1867 = vmul.f32 %v1317, 0.70710677
        %v1868 = vmul.f32 %v1428, 0.70710677
        %v1869 = vmul.f32 %v1430, 0.70710677
        %v1870 = vmul.f32 %v1541, 0.70710677
        %v1871 = vmul.f32 %v1543, 0.70710677
        %v1872 = vmul.f32 %v1654, 0.70710677
        %v1873 = vmul.f32 %v1656, 0.70710677
        %v1874 = vmul.f32 %v1319, 0.70710677
        %v1875 = vmul.f32 %v1321, 0.70710677
        %v1876 = vmul.f32 %v1432, 0.70710677
        %v1877 = vmul.f32 %v1434, 0.70710677
        %v1878 = vmul.f32 %v1545, 0.70710677
        %v1879 = vmul.f32 %v1547, 0.70710677
        %v1880 = vmul.f32 %v1658, 0.70710677
        %v1881 = vmul.f32 %v1660, 0.70710677
        %v1882 = vmul.f32 %v1325, 0.70710677
        %v1883 = vmul.f32 %v1327, 0.70710677
        %v1884 = vmul.f32 %v1438, 0.70710677
        %v1885 = vmul.f32 %v1440, 0.70710677
        %v1886 = vmul.f32 %v1551, 0.70710677
        %v1887 = vmul.f32 %v1553, 0.70710677
        %v1888 = vmul.f32 %v1664, 0.70710677
        %v1889 = vmul.f32 %v1666, 0.70710677
        %v1890 = vmul.f32 %v1329, 0.70710677
        %v1891 = vmul.f32 %v1331, 0.70710677
        %v1892 = vmul.f32 %v1442, 0.70710677
        %v1893 = vmul.f32 %v1444, 0.70710677
        %v1894 = vmul.f32 %v1555, 0.70710677
        %v1895 = vmul.f32 %v1557, 0.70710677
        %v1896 = vmul.f32 %v1668, 0.70710677
        %v1897 = vmul.f32 %v1670, 0.70710677
        %v1898 = vmul.f32 %v1335, 0.70710677
        %v1899 = vmul.f32 %v1337, 0.70710677
        %v1900 = vmul.f32 %v1448, 0.70710677
        %v1901 = vmul.f32 %v1450, 0.70710677
        %v1902 = vmul.f32 %v1561, 0.70710677
        %v1903 = vmul.f32 %v1563, 0.70710677
        %v1904 = vmul.f32 %v1674, 0.70710677
        %v1905 = vmul.f32 %v1676, 0.70710677
        %v1906 = vmul.f32 %v1339, 0.70710677
        %v1907 = vmul.f32 %v1341, 0.70710677
        %v1908 = vmul.f32 %v1452, 0.70710677
        %v1909 = vmul.f32 %v1454, 0.70710677
        %v1910 = vmul.f32 %v1565, 0.70710677
        %v1911 = vmul.f32 %v1567, 0.70710677
        %v1912 = vmul.f32 %v1678, 0.70710677
        %v1913 = vmul.f32 %v1680, 0.70710677
        %v1914 = vmul.f32 %v1345, 0.70710677
        %v1915 = vmul.f32 %v1347, 0.70710677
        %v1916 = vmul.f32 %v1458, 0.70710677
        %v1917 = vmul.f32 %v1460, 0.70710677
        %v1918 = vmul.f32 %v1571, 0.70710677
        %v1919 = vmul.f32 %v1573, 0.70710677
        %v1920 = vmul.f32 %v1684, 0.70710677
        %v1921 = vmul.f32 %v1686, 0.70710677
        %v1922 = vmul.f32 %v1349, 0.70710677
        %v1923 = vmul.f32 %v1351, 0.70710677
        %v1924 = vmul.f32 %v1462, 0.70710677
        %v1925 = vmul.f32 %v1464, 0.70710677
        %v1926 = vmul.f32 %v1575, 0.70710677
        %v1927 = vmul.f32 %v1577, 0.70710677
        %v1928 = vmul.f32 %v1688, 0.70710677
        %v1929 = vmul.f32 %v1690, 0.70710677
        %v1930 = vmul.f32 %v1355, 0.70710677
        %v1931 = vmul.f32 %v1357, 0.70710677
        %v1932 = vmul.f32 %v1468, 0.70710677
        %v1933 = vmul.f32 %v1470, 0.70710677
        %v1934 = vmul.f32 %v1581, 0.70710677
        %v1935 = vmul.f32 %v1583, 0.70710677
        %v1936 = vmul.f32 %v1694, 0.70710677
        %v1937 = vmul.f32 %v1696, 0.70710677
        %v1938 = vmul.f32 %v1359, 0.70710677
        %v1939 = vmul.f32 %v1361, 0.70710677
        %v1940 = vmul.f32 %v1472, 0.70710677
        %v1941 = vmul.f32 %v1474, 0.70710677
        %v1942 = vmul.f32 %v1585, 0.70710677
        %v1943 = vmul.f32 %v1587, 0.70710677
        %v1944 = vmul.f32 %v1698, 0.70710677
        %v1945 = vmul.f32 %v1700, 0.70710677
        %v1946 = vmul.f32 %v1365, 0.70710677
        %v1947 = vmul.f32 %v1367, 0.70710677
        %v1948 = vmul.f32 %v1478, 0.70710677
        %v1949 = vmul.f32 %v1480, 0.70710677
        %v1950 = vmul.f32 %v1591, 0.70710677
        %v1951 = vmul.f32 %v1593, 0.70710677
        %v1952 = vmul.f32 %v1704, 0.70710677
        %v1953 = vmul.f32 %v1706, 0.70710677
        %v1954 = vmul.f32 %v1369, 0.70710677
        %v1955 = vmul.f32 %v1371, 0.70710677
        %v1956 = vmul.f32 %v1482, 0.70710677
        %v1957 = vmul.f32 %v1484, 0.70710677
        %v1958 = vmul.f32 %v1595, 0.70710677
        %v1959 = vmul.f32 %v1597, 0.70710677
        %v1960 = vmul.f32 %v1708, 0.70710677
        %v1961 = vmul.f32 %v1710, 0.70710677
        %v1962 = vmul.f32 %v1375, 0.70710677
        %v1963 = vmul.f32 %v1377, 0.70710677
        %v1964 = vmul.f32 %v1488, 0.70710677
        %v1965 = vmul.f32 %v1490, 0.70710677
        %v1966 = vmul.f32 %v1601, 0.70710677
        %v1967 = vmul.f32 %v1603, 0.70710677
        %v1968 = vmul.f32 %v1714, 0.70710677
        %v1969 = vmul.f32 %v1716, 0.70710677
        %v1970 = vmul.f32 %v1379, 0.70710677
        %v1971 = vmul.f32 %v1381, 0.70710677
        %v1972 = vmul.f32 %v1492, 0.70710677
        %v1973 = vmul.f32 %v1494, 0.70710677
        %v1974 = vmul.f32 %v1605, 0.70710677
        %v1975 = vmul.f32 %v1607, 0.70710677
        %v1976 = vmul.f32 %v1718, 0.70710677
        %v1977 = vmul.f32 %v1720, 0.70710677
        %v1978 = verf.f32.pop %v1850
        %v1979 = verf.f32.pop %v1851
        %v1980 = verf.f32.pop %v1852
        %v1981 = verf.f32.pop %v1853
        %v1982 = verf.f32.pop %v1854
        %v1983 = verf.f32.pop %v1855
        %v1984 = verf.f32.pop %v1856
        %v1985 = verf.f32.pop %v1857
        %v1986 = verf.f32.pop %v1858
        %v1987 = verf.f32.pop %v1859
        %v1988 = verf.f32.pop %v1860
        %v1989 = verf.f32.pop %v1861
        %v1990 = verf.f32.pop %v1862
        %v1991 = verf.f32.pop %v1863
        %v1992 = verf.f32.pop %v1864
        %v1993 = verf.f32.pop %v1865
        %v1994 = verf.f32.pop %v1866
        %v1995 = verf.f32.pop %v1867
        %v1996 = verf.f32.pop %v1868
        %v1997 = verf.f32.pop %v1869
        %v1998 = verf.f32.pop %v1870
        %v1999 = verf.f32.pop %v1871
        %v2000 = verf.f32.pop %v1872
        %v2001 = verf.f32.pop %v1873
        %v2002 = verf.f32.pop %v1874
        %v2003 = verf.f32.pop %v1875
        %v2004 = verf.f32.pop %v1876
        %v2005 = verf.f32.pop %v1877
        %v2006 = verf.f32.pop %v1878
        %v2007 = verf.f32.pop %v1879
        %v2008 = verf.f32.pop %v1880
        %v2009 = verf.f32.pop %v1881
        %v2010 = verf.f32.pop %v1882
        %v2011 = verf.f32.pop %v1883
        %v2012 = verf.f32.pop %v1884
        %v2013 = verf.f32.pop %v1885
        %v2014 = verf.f32.pop %v1886
        %v2015 = verf.f32.pop %v1887
        %v2016 = verf.f32.pop %v1888
        %v2017 = verf.f32.pop %v1889
        %v2018 = verf.f32.pop %v1890
        %v2019 = verf.f32.pop %v1891
        %v2020 = verf.f32.pop %v1892
        %v2021 = verf.f32.pop %v1893
        %v2022 = verf.f32.pop %v1894
        %v2023 = verf.f32.pop %v1895
        %v2024 = verf.f32.pop %v1896
        %v2025 = verf.f32.pop %v1897
        %v2026 = verf.f32.pop %v1898
        %v2027 = verf.f32.pop %v1899
        %v2028 = verf.f32.pop %v1900
        %v2029 = verf.f32.pop %v1901
        %v2030 = verf.f32.pop %v1902
        %v2031 = verf.f32.pop %v1903
        %v2032 = verf.f32.pop %v1904
        %v2033 = verf.f32.pop %v1905
        %v2034 = verf.f32.pop %v1906
        %v2035 = verf.f32.pop %v1907
        %v2036 = verf.f32.pop %v1908
        %v2037 = verf.f32.pop %v1909
        %v2038 = verf.f32.pop %v1910
        %v2039 = verf.f32.pop %v1911
        %v2040 = verf.f32.pop %v1912
        %v2041 = verf.f32.pop %v1913
        %v2042 = verf.f32.pop %v1914
        %v2043 = verf.f32.pop %v1915
        %v2044 = verf.f32.pop %v1916
        %v2045 = verf.f32.pop %v1917
        %v2046 = verf.f32.pop %v1918
        %v2047 = verf.f32.pop %v1919
        %v2048 = verf.f32.pop %v1920
        %v2049 = verf.f32.pop %v1921
        %v2050 = verf.f32.pop %v1922
        %v2051 = verf.f32.pop %v1923
        %v2052 = verf.f32.pop %v1924
        %v2053 = verf.f32.pop %v1925
        %v2054 = verf.f32.pop %v1926
        %v2055 = verf.f32.pop %v1927
        %v2056 = verf.f32.pop %v1928
        %v2057 = verf.f32.pop %v1929
        %v2058 = verf.f32.pop %v1930
        %v2059 = verf.f32.pop %v1931
        %v2060 = verf.f32.pop %v1932
        %v2061 = verf.f32.pop %v1933
        %v2062 = verf.f32.pop %v1934
        %v2063 = verf.f32.pop %v1935
        %v2064 = verf.f32.pop %v1936
        %v2065 = verf.f32.pop %v1937
        %v2066 = verf.f32.pop %v1938
        %v2067 = verf.f32.pop %v1939
        %v2068 = verf.f32.pop %v1940
        %v2069 = verf.f32.pop %v1941
        %v2070 = verf.f32.pop %v1942
        %v2071 = verf.f32.pop %v1943
        %v2072 = verf.f32.pop %v1944
        %v2073 = verf.f32.pop %v1945
        %v2074 = verf.f32.pop %v1946
        %v2075 = verf.f32.pop %v1947
        %v2076 = verf.f32.pop %v1948
        %v2077 = verf.f32.pop %v1949
        %v2078 = verf.f32.pop %v1950
        %v2079 = verf.f32.pop %v1951
        %v2080 = verf.f32.pop %v1952
        %v2081 = verf.f32.pop %v1953
        %v2082 = verf.f32.pop %v1954
        %v2083 = verf.f32.pop %v1955
        %v2084 = verf.f32.pop %v1956
        %v2085 = verf.f32.pop %v1957
        %v2086 = verf.f32.pop %v1958
        %v2087 = verf.f32.pop %v1959
        %v2088 = verf.f32.pop %v1960
        %v2089 = verf.f32.pop %v1961
        %v2090 = verf.f32.pop %v1962
        %v2091 = verf.f32.pop %v1963
        %v2092 = verf.f32.pop %v1964
        %v2093 = verf.f32.pop %v1965
        %v2094 = verf.f32.pop %v1966
        %v2095 = verf.f32.pop %v1967
        %v2096 = verf.f32.pop %v1968
        %v2097 = verf.f32.pop %v1969
        %v2098 = verf.f32.pop %v1970
        %v2099 = verf.f32.pop %v1971
        %v2100 = verf.f32.pop %v1972
        %v2101 = verf.f32.pop %v1973
        %v2102 = verf.f32.pop %v1974
        %v2103 = verf.f32.pop %v1975
        %v2104 = verf.f32.pop %v1976
        %v2105 = verf.f32.pop %v1977
        %v2106 = vadd.f32 %v1978, 1.0
        %v2107 = vadd.f32 %v1979, 1.0
        %v2108 = vadd.f32 %v1980, 1.0
        %v2109 = vadd.f32 %v1981, 1.0
        %v2110 = vadd.f32 %v1982, 1.0
        %v2111 = vadd.f32 %v1983, 1.0
        %v2112 = vadd.f32 %v1984, 1.0
        %v2113 = vadd.f32 %v1985, 1.0
        %v2114 = vadd.f32 %v1986, 1.0
        %v2115 = vadd.f32 %v1987, 1.0
        %v2116 = vadd.f32 %v1988, 1.0
        %v2117 = vadd.f32 %v1989, 1.0
        %v2118 = vadd.f32 %v1990, 1.0
        %v2119 = vadd.f32 %v1991, 1.0
        %v2120 = vadd.f32 %v1992, 1.0
        %v2121 = vadd.f32 %v1993, 1.0
        %v2122 = vadd.f32 %v1994, 1.0
        %v2123 = vadd.f32 %v1995, 1.0
        %v2124 = vadd.f32 %v1996, 1.0
        %v2125 = vadd.f32 %v1997, 1.0
        %v2126 = vadd.f32 %v1998, 1.0
        %v2127 = vadd.f32 %v1999, 1.0
        %v2128 = vadd.f32 %v2000, 1.0
        %v2129 = vadd.f32 %v2001, 1.0
        %v2130 = vadd.f32 %v2002, 1.0
        %v2131 = vadd.f32 %v2003, 1.0
        %v2132 = vadd.f32 %v2004, 1.0
        %v2133 = vadd.f32 %v2005, 1.0
        %v2134 = vadd.f32 %v2006, 1.0
        %v2135 = vadd.f32 %v2007, 1.0
        %v2136 = vadd.f32 %v2008, 1.0
        %v2137 = vadd.f32 %v2009, 1.0
        %v2138 = vadd.f32 %v2010, 1.0
        %v2139 = vadd.f32 %v2011, 1.0
        %v2140 = vadd.f32 %v2012, 1.0
        %v2141 = vadd.f32 %v2013, 1.0
        %v2142 = vadd.f32 %v2014, 1.0
        %v2143 = vadd.f32 %v2015, 1.0
        %v2144 = vadd.f32 %v2016, 1.0
        %v2145 = vadd.f32 %v2017, 1.0
        %v2146 = vadd.f32 %v2018, 1.0
        %v2147 = vadd.f32 %v2019, 1.0
        %v2148 = vadd.f32 %v2020, 1.0
        %v2149 = vadd.f32 %v2021, 1.0
        %v2150 = vadd.f32 %v2022, 1.0
        %v2151 = vadd.f32 %v2023, 1.0
        %v2152 = vadd.f32 %v2024, 1.0
        %v2153 = vadd.f32 %v2025, 1.0
        %v2154 = vadd.f32 %v2026, 1.0
        %v2155 = vadd.f32 %v2027, 1.0
        %v2156 = vadd.f32 %v2028, 1.0
        %v2157 = vadd.f32 %v2029, 1.0
        %v2158 = vadd.f32 %v2030, 1.0
        %v2159 = vadd.f32 %v2031, 1.0
        %v2160 = vadd.f32 %v2032, 1.0
        %v2161 = vadd.f32 %v2033, 1.0
        %v2162 = vadd.f32 %v2034, 1.0
        %v2163 = vadd.f32 %v2035, 1.0
        %v2164 = vadd.f32 %v2036, 1.0
        %v2165 = vadd.f32 %v2037, 1.0
        %v2166 = vadd.f32 %v2038, 1.0
        %v2167 = vadd.f32 %v2039, 1.0
        %v2168 = vadd.f32 %v2040, 1.0
        %v2169 = vadd.f32 %v2041, 1.0
        %v2170 = vadd.f32 %v2042, 1.0
        %v2171 = vadd.f32 %v2043, 1.0
        %v2172 = vadd.f32 %v2044, 1.0
        %v2173 = vadd.f32 %v2045, 1.0
        %v2174 = vadd.f32 %v2046, 1.0
        %v2175 = vadd.f32 %v2047, 1.0
        %v2176 = vadd.f32 %v2048, 1.0
        %v2177 = vadd.f32 %v2049, 1.0
        %v2178 = vadd.f32 %v2050, 1.0
        %v2179 = vadd.f32 %v2051, 1.0
        %v2180 = vadd.f32 %v2052, 1.0
        %v2181 = vadd.f32 %v2053, 1.0
        %v2182 = vadd.f32 %v2054, 1.0
        %v2183 = vadd.f32 %v2055, 1.0
        %v2184 = vadd.f32 %v2056, 1.0
        %v2185 = vadd.f32 %v2057, 1.0
        %v2186 = vadd.f32 %v2058, 1.0
        %v2187 = vadd.f32 %v2059, 1.0
        %v2188 = vadd.f32 %v2060, 1.0
        %v2189 = vadd.f32 %v2061, 1.0
        %v2190 = vadd.f32 %v2062, 1.0
        %v2191 = vadd.f32 %v2063, 1.0
        %v2192 = vadd.f32 %v2064, 1.0
        %v2193 = vadd.f32 %v2065, 1.0
        %v2194 = vadd.f32 %v2066, 1.0
        %v2195 = vadd.f32 %v2067, 1.0
        %v2196 = vadd.f32 %v2068, 1.0
        %v2197 = vadd.f32 %v2069, 1.0
        %v2198 = vadd.f32 %v2070, 1.0
        %v2199 = vadd.f32 %v2071, 1.0
        %v2200 = vadd.f32 %v2072, 1.0
        %v2201 = vadd.f32 %v2073, 1.0
        %v2202 = vadd.f32 %v2074, 1.0
        %v2203 = vadd.f32 %v2075, 1.0
        %v2204 = vadd.f32 %v2076, 1.0
        %v2205 = vadd.f32 %v2077, 1.0
        %v2206 = vadd.f32 %v2078, 1.0
        %v2207 = vadd.f32 %v2079, 1.0
        %v2208 = vadd.f32 %v2080, 1.0
        %v2209 = vadd.f32 %v2081, 1.0
        %v2210 = vadd.f32 %v2082, 1.0
        %v2211 = vadd.f32 %v2083, 1.0
        %v2212 = vadd.f32 %v2084, 1.0
        %v2213 = vadd.f32 %v2085, 1.0
        %v2214 = vadd.f32 %v2086, 1.0
        %v2215 = vadd.f32 %v2087, 1.0
        %v2216 = vadd.f32 %v2088, 1.0
        %v2217 = vadd.f32 %v2089, 1.0
        %v2218 = vadd.f32 %v2090, 1.0
        %v2219 = vadd.f32 %v2091, 1.0
        %v2220 = vadd.f32 %v2092, 1.0
        %v2221 = vadd.f32 %v2093, 1.0
        %v2222 = vadd.f32 %v2094, 1.0
        %v2223 = vadd.f32 %v2095, 1.0
        %v2224 = vadd.f32 %v2096, 1.0
        %v2225 = vadd.f32 %v2097, 1.0
        %v2226 = vadd.f32 %v2098, 1.0
        %v2227 = vadd.f32 %v2099, 1.0
        %v2228 = vadd.f32 %v2100, 1.0
        %v2229 = vadd.f32 %v2101, 1.0
        %v2230 = vadd.f32 %v2102, 1.0
        %v2231 = vadd.f32 %v2103, 1.0
        %v2232 = vadd.f32 %v2104, 1.0
        %v2233 = vadd.f32 %v2105, 1.0
        %v2234 = vmul.f32 %v1722, %v2106
        %v2235 = vmul.f32 %v1723, %v2107
        %v2236 = vmul.f32 %v1724, %v2108
        %v2237 = vmul.f32 %v1725, %v2109
        %v2238 = vmul.f32 %v1726, %v2110
        %v2239 = vmul.f32 %v1727, %v2111
        %v2240 = vmul.f32 %v1728, %v2112
        %v2241 = vmul.f32 %v1729, %v2113
        %v2242 = vmul.f32 %v1730, %v2114
        %v2243 = vmul.f32 %v1731, %v2115
        %v2244 = vmul.f32 %v1732, %v2116
        %v2245 = vmul.f32 %v1733, %v2117
        %v2246 = vmul.f32 %v1734, %v2118
        %v2247 = vmul.f32 %v1735, %v2119
        %v2248 = vmul.f32 %v1736, %v2120
        %v2249 = vmul.f32 %v1737, %v2121
        %v2250 = vmul.f32 %v1738, %v2122
        %v2251 = vmul.f32 %v1739, %v2123
        %v2252 = vmul.f32 %v1740, %v2124
        %v2253 = vmul.f32 %v1741, %v2125
        %v2254 = vmul.f32 %v1742, %v2126
        %v2255 = vmul.f32 %v1743, %v2127
        %v2256 = vmul.f32 %v1744, %v2128
        %v2257 = vmul.f32 %v1745, %v2129
        %v2258 = vmul.f32 %v1746, %v2130
        %v2259 = vmul.f32 %v1747, %v2131
        %v2260 = vmul.f32 %v1748, %v2132
        %v2261 = vmul.f32 %v1749, %v2133
        %v2262 = vmul.f32 %v1750, %v2134
        %v2263 = vmul.f32 %v1751, %v2135
        %v2264 = vmul.f32 %v1752, %v2136
        %v2265 = vmul.f32 %v1753, %v2137
        %v2266 = vmul.f32 %v1754, %v2138
        %v2267 = vmul.f32 %v1755, %v2139
        %v2268 = vmul.f32 %v1756, %v2140
        %v2269 = vmul.f32 %v1757, %v2141
        %v2270 = vmul.f32 %v1758, %v2142
        %v2271 = vmul.f32 %v1759, %v2143
        %v2272 = vmul.f32 %v1760, %v2144
        %v2273 = vmul.f32 %v1761, %v2145
        %v2274 = vmul.f32 %v1762, %v2146
        %v2275 = vmul.f32 %v1763, %v2147
        %v2276 = vmul.f32 %v1764, %v2148
        %v2277 = vmul.f32 %v1765, %v2149
        %v2278 = vmul.f32 %v1766, %v2150
        %v2279 = vmul.f32 %v1767, %v2151
        %v2280 = vmul.f32 %v1768, %v2152
        %v2281 = vmul.f32 %v1769, %v2153
        %v2282 = vmul.f32 %v1770, %v2154
        %v2283 = vmul.f32 %v1771, %v2155
        %v2284 = vmul.f32 %v1772, %v2156
        %v2285 = vmul.f32 %v1773, %v2157
        %v2286 = vmul.f32 %v1774, %v2158
        %v2287 = vmul.f32 %v1775, %v2159
        %v2288 = vmul.f32 %v1776, %v2160
        %v2289 = vmul.f32 %v1777, %v2161
        %v2290 = vmul.f32 %v1778, %v2162
        %v2291 = vmul.f32 %v1779, %v2163
        %v2292 = vmul.f32 %v1780, %v2164
        %v2293 = vmul.f32 %v1781, %v2165
        %v2294 = vmul.f32 %v1782, %v2166
        %v2295 = vmul.f32 %v1783, %v2167
        %v2296 = vmul.f32 %v1784, %v2168
        %v2297 = vmul.f32 %v1785, %v2169
        %v2298 = vmul.f32 %v1786, %v2170
        %v2299 = vmul.f32 %v1787, %v2171
        %v2300 = vmul.f32 %v1788, %v2172
        %v2301 = vmul.f32 %v1789, %v2173
        %v2302 = vmul.f32 %v1790, %v2174
        %v2303 = vmul.f32 %v1791, %v2175
        %v2304 = vmul.f32 %v1792, %v2176
        %v2305 = vmul.f32 %v1793, %v2177
        %v2306 = vmul.f32 %v1794, %v2178
        %v2307 = vmul.f32 %v1795, %v2179
        %v2308 = vmul.f32 %v1796, %v2180
        %v2309 = vmul.f32 %v1797, %v2181
        %v2310 = vmul.f32 %v1798, %v2182
        %v2311 = vmul.f32 %v1799, %v2183
        %v2312 = vmul.f32 %v1800, %v2184
        %v2313 = vmul.f32 %v1801, %v2185
        %v2314 = vmul.f32 %v1802, %v2186
        %v2315 = vmul.f32 %v1803, %v2187
        %v2316 = vmul.f32 %v1804, %v2188
        %v2317 = vmul.f32 %v1805, %v2189
        %v2318 = vmul.f32 %v1806, %v2190
        %v2319 = vmul.f32 %v1807, %v2191
        %v2320 = vmul.f32 %v1808, %v2192
        %v2321 = vmul.f32 %v1809, %v2193
        %v2322 = vmul.f32 %v1810, %v2194
        %v2323 = vmul.f32 %v1811, %v2195
        %v2324 = vmul.f32 %v1812, %v2196
        %v2325 = vmul.f32 %v1813, %v2197
        %v2326 = vmul.f32 %v1814, %v2198
        %v2327 = vmul.f32 %v1815, %v2199
        %v2328 = vmul.f32 %v1816, %v2200
        %v2329 = vmul.f32 %v1817, %v2201
        %v2330 = vmul.f32 %v1818, %v2202
        %v2331 = vmul.f32 %v1819, %v2203
        %v2332 = vmul.f32 %v1820, %v2204
        %v2333 = vmul.f32 %v1821, %v2205
        %v2334 = vmul.f32 %v1822, %v2206
        %v2335 = vmul.f32 %v1823, %v2207
        %v2336 = vmul.f32 %v1824, %v2208
        %v2337 = vmul.f32 %v1825, %v2209
        %v2338 = vmul.f32 %v1826, %v2210
        %v2339 = vmul.f32 %v1827, %v2211
        %v2340 = vmul.f32 %v1828, %v2212
        %v2341 = vmul.f32 %v1829, %v2213
        %v2342 = vmul.f32 %v1830, %v2214
        %v2343 = vmul.f32 %v1831, %v2215
        %v2344 = vmul.f32 %v1832, %v2216
        %v2345 = vmul.f32 %v1833, %v2217
        %v2346 = vmul.f32 %v1834, %v2218
        %v2347 = vmul.f32 %v1835, %v2219
        %v2348 = vmul.f32 %v1836, %v2220
        %v2349 = vmul.f32 %v1837, %v2221
        %v2350 = vmul.f32 %v1838, %v2222
        %v2351 = vmul.f32 %v1839, %v2223
        %v2352 = vmul.f32 %v1840, %v2224
        %v2353 = vmul.f32 %v1841, %v2225
        %v2354 = vmul.f32 %v1842, %v2226
        %v2355 = vmul.f32 %v1843, %v2227
        %v2356 = vmul.f32 %v1844, %v2228
        %v2357 = vmul.f32 %v1845, %v2229
        %v2358 = vmul.f32 %v1846, %v2230
        %v2359 = vmul.f32 %v1847, %v2231
        %v2360 = vmul.f32 %v1848, %v2232
        %v2361 = vmul.f32 %v1849, %v2233
        %v2362 = vld [vmem:[#allocation2] sm:$0xff]
        %v2363 = vld [vmem:[#allocation2 + $0x8] sm:$0xff]
        %v2364 = vld [vmem:[#allocation2 + $0x10] sm:$0xff]
        %v2365 = vld [vmem:[#allocation2 + $0x18] sm:$0xff]
        %v2366 = vld [vmem:[#allocation2 + $0x20] sm:$0xff]
        %v2367 = vld [vmem:[#allocation2 + $0x28] sm:$0xff]
        %v2368 = vld [vmem:[#allocation2 + $0x30] sm:$0xff]
        %v2369 = vld [vmem:[#allocation2 + $0x38] sm:$0xff]
        %v2370 = vld [vmem:[#allocation2 + $0x40] sm:$0xff]
        %v2371 = vld [vmem:[#allocation2 + $0x48] sm:$0xff]
        %v2372 = vld [vmem:[#allocation2 + $0x50] sm:$0xff]
        %v2373 = vld [vmem:[#allocation2 + $0x58] sm:$0xff]
        %v2374 = vld [vmem:[#allocation2 + $0x60] sm:$0xff]
        %v2375 = vld [vmem:[#allocation2 + $0x68] sm:$0xff]
        %v2376 = vld [vmem:[#allocation2 + $0x70] sm:$0xff]
        %v2377 = vld [vmem:[#allocation2 + $0x78] sm:$0xff]
        %v2378 = vld [vmem:[#allocation2 + $0x80] sm:$0xff]
        %v2379 = vld [vmem:[#allocation2 + $0x88] sm:$0xff]
        %v2380 = vld [vmem:[#allocation2 + $0x90] sm:$0xff]
        %v2381 = vld [vmem:[#allocation2 + $0x98] sm:$0xff]
        %v2382 = vld [vmem:[#allocation2 + $0xa0] sm:$0xff]
        %v2383 = vld [vmem:[#allocation2 + $0xa8] sm:$0xff]
        %v2384 = vld [vmem:[#allocation2 + $0xb0] sm:$0xff]
        %v2385 = vld [vmem:[#allocation2 + $0xb8] sm:$0xff]
        %v2386 = vld [vmem:[#allocation2 + $0xc0] sm:$0xff]
        %v2387 = vld [vmem:[#allocation2 + $0xc8] sm:$0xff]
        %v2388 = vld [vmem:[#allocation2 + $0xd0] sm:$0xff]
        %v2389 = vld [vmem:[#allocation2 + $0xd8] sm:$0xff]
        %v2390 = vld [vmem:[#allocation2 + $0xe0] sm:$0xff]
        %v2391 = vld [vmem:[#allocation2 + $0xe8] sm:$0xff]
        %v2392 = vld [vmem:[#allocation2 + $0xf0] sm:$0xff]
        %v2393 = vld [vmem:[#allocation2 + $0xf8] sm:$0xff]
        %v2394 = vpack.c.bf16 %v2242, %v2234
        %v2395 = vpack.c.bf16 %v2243, %v2235
        %v2396 = vpack.c.bf16 %v2244, %v2236
        %v2397 = vpack.c.bf16 %v2245, %v2237
        %v2398 = vpack.c.bf16 %v2246, %v2238
        %v2399 = vpack.c.bf16 %v2247, %v2239
        %v2400 = vpack.c.bf16 %v2248, %v2240
        %v2401 = vpack.c.bf16 %v2249, %v2241
        %v2402 = vpack.c.bf16 %v2258, %v2250
        %v2403 = vpack.c.bf16 %v2259, %v2251
        %v2404 = vpack.c.bf16 %v2260, %v2252
        %v2405 = vpack.c.bf16 %v2261, %v2253
        %v2406 = vpack.c.bf16 %v2262, %v2254
        %v2407 = vpack.c.bf16 %v2263, %v2255
        %v2408 = vpack.c.bf16 %v2264, %v2256
        %v2409 = vpack.c.bf16 %v2265, %v2257
        %v2410 = vpack.c.bf16 %v2274, %v2266
        %v2411 = vpack.c.bf16 %v2275, %v2267
        %v2412 = vpack.c.bf16 %v2276, %v2268
        %v2413 = vpack.c.bf16 %v2277, %v2269
        %v2414 = vpack.c.bf16 %v2278, %v2270
        %v2415 = vpack.c.bf16 %v2279, %v2271
        %v2416 = vpack.c.bf16 %v2280, %v2272
        %v2417 = vpack.c.bf16 %v2281, %v2273
        %v2418 = vpack.c.bf16 %v2290, %v2282
        %v2419 = vpack.c.bf16 %v2291, %v2283
        %v2420 = vpack.c.bf16 %v2292, %v2284
        %v2421 = vpack.c.bf16 %v2293, %v2285
        %v2422 = vpack.c.bf16 %v2294, %v2286
        %v2423 = vpack.c.bf16 %v2295, %v2287
        %v2424 = vpack.c.bf16 %v2296, %v2288
        %v2425 = vpack.c.bf16 %v2297, %v2289
        %v2426 = vpack.c.bf16 %v2306, %v2298
        %v2427 = vpack.c.bf16 %v2307, %v2299
        %v2428 = vpack.c.bf16 %v2308, %v2300
        %v2429 = vpack.c.bf16 %v2309, %v2301
        %v2430 = vpack.c.bf16 %v2310, %v2302
        %v2431 = vpack.c.bf16 %v2311, %v2303
        %v2432 = vpack.c.bf16 %v2312, %v2304
        %v2433 = vpack.c.bf16 %v2313, %v2305
        %v2434 = vpack.c.bf16 %v2322, %v2314
        %v2435 = vpack.c.bf16 %v2323, %v2315
        %v2436 = vpack.c.bf16 %v2324, %v2316
        %v2437 = vpack.c.bf16 %v2325, %v2317
        %v2438 = vpack.c.bf16 %v2326, %v2318
        %v2439 = vpack.c.bf16 %v2327, %v2319
        %v2440 = vpack.c.bf16 %v2328, %v2320
        %v2441 = vpack.c.bf16 %v2329, %v2321
        %v2442 = vpack.c.bf16 %v2338, %v2330
        %v2443 = vpack.c.bf16 %v2339, %v2331
        %v2444 = vpack.c.bf16 %v2340, %v2332
        %v2445 = vpack.c.bf16 %v2341, %v2333
        %v2446 = vpack.c.bf16 %v2342, %v2334
        %v2447 = vpack.c.bf16 %v2343, %v2335
        %v2448 = vpack.c.bf16 %v2344, %v2336
        %v2449 = vpack.c.bf16 %v2345, %v2337
        %v2450 = vpack.c.bf16 %v2354, %v2346
        %v2451 = vpack.c.bf16 %v2355, %v2347
        %v2452 = vpack.c.bf16 %v2356, %v2348
        %v2453 = vpack.c.bf16 %v2357, %v2349
        %v2454 = vpack.c.bf16 %v2358, %v2350
        %v2455 = vpack.c.bf16 %v2359, %v2351
        %v2456 = vpack.c.bf16 %v2360, %v2352
        %v2457 = vpack.c.bf16 %v2361, %v2353
        %v2458 = vld [vmem:[#allocation9] sm:$0xff]
        %v2459 = vld [vmem:[#allocation9 + $0x8] sm:$0xff]
        %v2460 = vld [vmem:[#allocation9 + $0x10] sm:$0xff]
        %v2461 = vld [vmem:[#allocation9 + $0x18] sm:$0xff]
        %v2462 = vld [vmem:[#allocation9 + $0x20] sm:$0xff]
        %v2463 = vld [vmem:[#allocation9 + $0x28] sm:$0xff]
        %v2464 = vld [vmem:[#allocation9 + $0x30] sm:$0xff]
        %v2465 = vld [vmem:[#allocation9 + $0x38] sm:$0xff]
        %v2466 = vld [vmem:[#allocation9 + $0x40] sm:$0xff]
        %v2467 = vld [vmem:[#allocation9 + $0x48] sm:$0xff]
        %v2468 = vld [vmem:[#allocation9 + $0x50] sm:$0xff]
        %v2469 = vld [vmem:[#allocation9 + $0x58] sm:$0xff]
        %v2470 = vld [vmem:[#allocation9 + $0x60] sm:$0xff]
        %v2471 = vld [vmem:[#allocation9 + $0x68] sm:$0xff]
        %v2472 = vld [vmem:[#allocation9 + $0x70] sm:$0xff]
        %v2473 = vld [vmem:[#allocation9 + $0x78] sm:$0xff]
        %v2474 = vld [vmem:[#allocation9 + $0x80] sm:$0xff]
        %v2475 = vld [vmem:[#allocation9 + $0x88] sm:$0xff]
        %v2476 = vld [vmem:[#allocation9 + $0x90] sm:$0xff]
        %v2477 = vld [vmem:[#allocation9 + $0x98] sm:$0xff]
        %v2478 = vld [vmem:[#allocation9 + $0xa0] sm:$0xff]
        %v2479 = vld [vmem:[#allocation9 + $0xa8] sm:$0xff]
        %v2480 = vld [vmem:[#allocation9 + $0xb0] sm:$0xff]
        %v2481 = vld [vmem:[#allocation9 + $0xb8] sm:$0xff]
        %v2482 = vld [vmem:[#allocation9 + $0xc0] sm:$0xff]
        %v2483 = vld [vmem:[#allocation9 + $0xc8] sm:$0xff]
        %v2484 = vld [vmem:[#allocation9 + $0xd0] sm:$0xff]
        %v2485 = vld [vmem:[#allocation9 + $0xd8] sm:$0xff]
        %v2486 = vld [vmem:[#allocation9 + $0xe0] sm:$0xff]
        %v2487 = vld [vmem:[#allocation9 + $0xe8] sm:$0xff]
        %v2488 = vld [vmem:[#allocation9 + $0xf0] sm:$0xff]
        %v2489 = vld [vmem:[#allocation9 + $0xf8] sm:$0xff]
        %v2490 = vld [vmem:[#allocation9 + $0x100] sm:$0xff]
        %v2491 = vld [vmem:[#allocation9 + $0x108] sm:$0xff]
        %v2492 = vld [vmem:[#allocation9 + $0x110] sm:$0xff]
        %v2493 = vld [vmem:[#allocation9 + $0x118] sm:$0xff]
        %v2494 = vld [vmem:[#allocation9 + $0x120] sm:$0xff]
        %v2495 = vld [vmem:[#allocation9 + $0x128] sm:$0xff]
        %v2496 = vld [vmem:[#allocation9 + $0x130] sm:$0xff]
        %v2497 = vld [vmem:[#allocation9 + $0x138] sm:$0xff]
        %v2498 = vld [vmem:[#allocation9 + $0x140] sm:$0xff]
        %v2499 = vld [vmem:[#allocation9 + $0x148] sm:$0xff]
        %v2500 = vld [vmem:[#allocation9 + $0x150] sm:$0xff]
        %v2501 = vld [vmem:[#allocation9 + $0x158] sm:$0xff]
        %v2502 = vld [vmem:[#allocation9 + $0x160] sm:$0xff]
        %v2503 = vld [vmem:[#allocation9 + $0x168] sm:$0xff]
        %v2504 = vld [vmem:[#allocation9 + $0x170] sm:$0xff]
        %v2505 = vld [vmem:[#allocation9 + $0x178] sm:$0xff]
        %v2506 = vld [vmem:[#allocation9 + $0x180] sm:$0xff]
        %v2507 = vld [vmem:[#allocation9 + $0x188] sm:$0xff]
        %v2508 = vld [vmem:[#allocation9 + $0x190] sm:$0xff]
        %v2509 = vld [vmem:[#allocation9 + $0x198] sm:$0xff]
        %v2510 = vld [vmem:[#allocation9 + $0x1a0] sm:$0xff]
        %v2511 = vld [vmem:[#allocation9 + $0x1a8] sm:$0xff]
        %v2512 = vld [vmem:[#allocation9 + $0x1b0] sm:$0xff]
        %v2513 = vld [vmem:[#allocation9 + $0x1b8] sm:$0xff]
        %v2514 = vld [vmem:[#allocation9 + $0x1c0] sm:$0xff]
        %v2515 = vld [vmem:[#allocation9 + $0x1c8] sm:$0xff]
        %v2516 = vld [vmem:[#allocation9 + $0x1d0] sm:$0xff]
        %v2517 = vld [vmem:[#allocation9 + $0x1d8] sm:$0xff]
        %v2518 = vld [vmem:[#allocation9 + $0x1e0] sm:$0xff]
        %v2519 = vld [vmem:[#allocation9 + $0x1e8] sm:$0xff]
        %v2520 = vld [vmem:[#allocation9 + $0x1f0] sm:$0xff]
        %v2521 = vld [vmem:[#allocation9 + $0x1f8] sm:$0xff]
        %v2522 = vld [vmem:[#allocation9 + $0x200] sm:$0xff]
        %v2523 = vld [vmem:[#allocation9 + $0x208] sm:$0xff]
        %v2524 = vld [vmem:[#allocation9 + $0x210] sm:$0xff]
        %v2525 = vld [vmem:[#allocation9 + $0x218] sm:$0xff]
        %v2526 = vld [vmem:[#allocation9 + $0x220] sm:$0xff]
        %v2527 = vld [vmem:[#allocation9 + $0x228] sm:$0xff]
        %v2528 = vld [vmem:[#allocation9 + $0x230] sm:$0xff]
        %v2529 = vld [vmem:[#allocation9 + $0x238] sm:$0xff]
        %v2530 = vld [vmem:[#allocation9 + $0x240] sm:$0xff]
        %v2531 = vld [vmem:[#allocation9 + $0x248] sm:$0xff]
        %v2532 = vld [vmem:[#allocation9 + $0x250] sm:$0xff]
        %v2533 = vld [vmem:[#allocation9 + $0x258] sm:$0xff]
        %v2534 = vld [vmem:[#allocation9 + $0x260] sm:$0xff]
        %v2535 = vld [vmem:[#allocation9 + $0x268] sm:$0xff]
        %v2536 = vld [vmem:[#allocation9 + $0x270] sm:$0xff]
        %v2537 = vld [vmem:[#allocation9 + $0x278] sm:$0xff]
        %v2538 = vld [vmem:[#allocation9 + $0x280] sm:$0xff]
        %v2539 = vld [vmem:[#allocation9 + $0x288] sm:$0xff]
        %v2540 = vld [vmem:[#allocation9 + $0x290] sm:$0xff]
        %v2541 = vld [vmem:[#allocation9 + $0x298] sm:$0xff]
        %v2542 = vld [vmem:[#allocation9 + $0x2a0] sm:$0xff]
        %v2543 = vld [vmem:[#allocation9 + $0x2a8] sm:$0xff]
        %v2544 = vld [vmem:[#allocation9 + $0x2b0] sm:$0xff]
        %v2545 = vld [vmem:[#allocation9 + $0x2b8] sm:$0xff]
        %v2546 = vld [vmem:[#allocation9 + $0x2c0] sm:$0xff]
        %v2547 = vld [vmem:[#allocation9 + $0x2c8] sm:$0xff]
        %v2548 = vld [vmem:[#allocation9 + $0x2d0] sm:$0xff]
        %v2549 = vld [vmem:[#allocation9 + $0x2d8] sm:$0xff]
        %v2550 = vld [vmem:[#allocation9 + $0x2e0] sm:$0xff]
        %v2551 = vld [vmem:[#allocation9 + $0x2e8] sm:$0xff]
        %v2552 = vld [vmem:[#allocation9 + $0x2f0] sm:$0xff]
        %v2553 = vld [vmem:[#allocation9 + $0x2f8] sm:$0xff]
        %v2554 = vld [vmem:[#allocation9 + $0x300] sm:$0xff]
        %v2555 = vld [vmem:[#allocation9 + $0x308] sm:$0xff]
        %v2556 = vld [vmem:[#allocation9 + $0x310] sm:$0xff]
        %v2557 = vld [vmem:[#allocation9 + $0x318] sm:$0xff]
        %v2558 = vld [vmem:[#allocation9 + $0x320] sm:$0xff]
        %v2559 = vld [vmem:[#allocation9 + $0x328] sm:$0xff]
        %v2560 = vld [vmem:[#allocation9 + $0x330] sm:$0xff]
        %v2561 = vld [vmem:[#allocation9 + $0x338] sm:$0xff]
        %v2562 = vld [vmem:[#allocation9 + $0x340] sm:$0xff]
        %v2563 = vld [vmem:[#allocation9 + $0x348] sm:$0xff]
        %v2564 = vld [vmem:[#allocation9 + $0x350] sm:$0xff]
        %v2565 = vld [vmem:[#allocation9 + $0x358] sm:$0xff]
        %v2566 = vld [vmem:[#allocation9 + $0x360] sm:$0xff]
        %v2567 = vld [vmem:[#allocation9 + $0x368] sm:$0xff]
        %v2568 = vld [vmem:[#allocation9 + $0x370] sm:$0xff]
        %v2569 = vld [vmem:[#allocation9 + $0x378] sm:$0xff]
        %v2570 = vld [vmem:[#allocation9 + $0x380] sm:$0xff]
        %v2571 = vld [vmem:[#allocation9 + $0x388] sm:$0xff]
        %v2572 = vld [vmem:[#allocation9 + $0x390] sm:$0xff]
        %v2573 = vld [vmem:[#allocation9 + $0x398] sm:$0xff]
        %v2574 = vld [vmem:[#allocation9 + $0x3a0] sm:$0xff]
        %v2575 = vld [vmem:[#allocation9 + $0x3a8] sm:$0xff]
        %v2576 = vld [vmem:[#allocation9 + $0x3b0] sm:$0xff]
        %v2577 = vld [vmem:[#allocation9 + $0x3b8] sm:$0xff]
        %v2578 = vld [vmem:[#allocation9 + $0x3c0] sm:$0xff]
        %v2579 = vld [vmem:[#allocation9 + $0x3c8] sm:$0xff]
        %v2580 = vld [vmem:[#allocation9 + $0x3d0] sm:$0xff]
        %v2581 = vld [vmem:[#allocation9 + $0x3d8] sm:$0xff]
        %v2582 = vld [vmem:[#allocation9 + $0x3e0] sm:$0xff]
        %v2583 = vld [vmem:[#allocation9 + $0x3e8] sm:$0xff]
        %v2584 = vld [vmem:[#allocation9 + $0x3f0] sm:$0xff]
        %v2585 = vld [vmem:[#allocation9 + $0x3f8] sm:$0xff]
        %v2714 = vunpack.c.l.b16 %v2458
        %v2715 = vunpack.c.h.b16 %v2458
        %v2716 = vunpack.c.l.b16 %v2459
        %v2717 = vunpack.c.h.b16 %v2459
        %v2718 = vunpack.c.l.b16 %v2460
        %v2719 = vunpack.c.h.b16 %v2460
        %v2720 = vunpack.c.l.b16 %v2461
        %v2721 = vunpack.c.h.b16 %v2461
        %v2722 = vunpack.c.l.b16 %v2462
        %v2723 = vunpack.c.h.b16 %v2462
        %v2724 = vunpack.c.l.b16 %v2463
        %v2725 = vunpack.c.h.b16 %v2463
        %v2726 = vunpack.c.l.b16 %v2464
        %v2727 = vunpack.c.h.b16 %v2464
        %v2728 = vunpack.c.l.b16 %v2465
        %v2729 = vunpack.c.h.b16 %v2465
        %v2730 = vunpack.c.l.b16 %v2466
        %v2731 = vunpack.c.h.b16 %v2466
        %v2732 = vunpack.c.l.b16 %v2467
        %v2733 = vunpack.c.h.b16 %v2467
        %v2734 = vunpack.c.l.b16 %v2468
        %v2735 = vunpack.c.h.b16 %v2468
        %v2736 = vunpack.c.l.b16 %v2469
        %v2737 = vunpack.c.h.b16 %v2469
        %v2738 = vunpack.c.l.b16 %v2470
        %v2739 = vunpack.c.h.b16 %v2470
        %v2740 = vunpack.c.l.b16 %v2471
        %v2741 = vunpack.c.h.b16 %v2471
        %v2742 = vunpack.c.l.b16 %v2472
        %v2743 = vunpack.c.h.b16 %v2472
        %v2744 = vunpack.c.l.b16 %v2473
        %v2745 = vunpack.c.h.b16 %v2473
        %v2746 = vunpack.c.l.b16 %v2474
        %v2747 = vunpack.c.h.b16 %v2474
        %v2748 = vunpack.c.l.b16 %v2475
        %v2749 = vunpack.c.h.b16 %v2475
        %v2750 = vunpack.c.l.b16 %v2476
        %v2751 = vunpack.c.h.b16 %v2476
        %v2752 = vunpack.c.l.b16 %v2477
        %v2753 = vunpack.c.h.b16 %v2477
        %v2754 = vunpack.c.l.b16 %v2478
        %v2755 = vunpack.c.h.b16 %v2478
        %v2756 = vunpack.c.l.b16 %v2479
        %v2757 = vunpack.c.h.b16 %v2479
        %v2758 = vunpack.c.l.b16 %v2480
        %v2759 = vunpack.c.h.b16 %v2480
        %v2760 = vunpack.c.l.b16 %v2481
        %v2761 = vunpack.c.h.b16 %v2481
        %v2762 = vunpack.c.l.b16 %v2482
        %v2763 = vunpack.c.h.b16 %v2482
        %v2764 = vunpack.c.l.b16 %v2483
        %v2765 = vunpack.c.h.b16 %v2483
        %v2766 = vunpack.c.l.b16 %v2484
        %v2767 = vunpack.c.h.b16 %v2484
        %v2768 = vunpack.c.l.b16 %v2485
        %v2769 = vunpack.c.h.b16 %v2485
        %v2770 = vunpack.c.l.b16 %v2486
        %v2771 = vunpack.c.h.b16 %v2486
        %v2772 = vunpack.c.l.b16 %v2487
        %v2773 = vunpack.c.h.b16 %v2487
        %v2774 = vunpack.c.l.b16 %v2488
        %v2775 = vunpack.c.h.b16 %v2488
        %v2776 = vunpack.c.l.b16 %v2489
        %v2777 = vunpack.c.h.b16 %v2489
        %v2778 = vunpack.c.l.b16 %v2490
        %v2779 = vunpack.c.h.b16 %v2490
        %v2780 = vunpack.c.l.b16 %v2491
        %v2781 = vunpack.c.h.b16 %v2491
        %v2782 = vunpack.c.l.b16 %v2492
        %v2783 = vunpack.c.h.b16 %v2492
        %v2784 = vunpack.c.l.b16 %v2493
        %v2785 = vunpack.c.h.b16 %v2493
        %v2786 = vunpack.c.l.b16 %v2494
        %v2787 = vunpack.c.h.b16 %v2494
        %v2788 = vunpack.c.l.b16 %v2495
        %v2789 = vunpack.c.h.b16 %v2495
        %v2790 = vunpack.c.l.b16 %v2496
        %v2791 = vunpack.c.h.b16 %v2496
        %v2792 = vunpack.c.l.b16 %v2497
        %v2793 = vunpack.c.h.b16 %v2497
        %v2794 = vunpack.c.l.b16 %v2498
        %v2795 = vunpack.c.h.b16 %v2498
        %v2796 = vunpack.c.l.b16 %v2499
        %v2797 = vunpack.c.h.b16 %v2499
        %v2798 = vunpack.c.l.b16 %v2500
        %v2799 = vunpack.c.h.b16 %v2500
        %v2800 = vunpack.c.l.b16 %v2501
        %v2801 = vunpack.c.h.b16 %v2501
        %v2802 = vunpack.c.l.b16 %v2502
        %v2803 = vunpack.c.h.b16 %v2502
        %v2804 = vunpack.c.l.b16 %v2503
        %v2805 = vunpack.c.h.b16 %v2503
        %v2806 = vunpack.c.l.b16 %v2504
        %v2807 = vunpack.c.h.b16 %v2504
        %v2808 = vunpack.c.l.b16 %v2505
        %v2809 = vunpack.c.h.b16 %v2505
        %v2810 = vunpack.c.l.b16 %v2506
        %v2811 = vunpack.c.h.b16 %v2506
        %v2812 = vunpack.c.l.b16 %v2507
        %v2813 = vunpack.c.h.b16 %v2507
        %v2814 = vunpack.c.l.b16 %v2508
        %v2815 = vunpack.c.h.b16 %v2508
        %v2816 = vunpack.c.l.b16 %v2509
        %v2817 = vunpack.c.h.b16 %v2509
        %v2818 = vunpack.c.l.b16 %v2510
        %v2819 = vunpack.c.h.b16 %v2510
        %v2820 = vunpack.c.l.b16 %v2511
        %v2821 = vunpack.c.h.b16 %v2511
        %v2822 = vunpack.c.l.b16 %v2512
        %v2823 = vunpack.c.h.b16 %v2512
        %v2824 = vunpack.c.l.b16 %v2513
        %v2825 = vunpack.c.h.b16 %v2513
        %v2826 = vunpack.c.l.b16 %v2514
        %v2827 = vunpack.c.h.b16 %v2514
        %v2828 = vunpack.c.l.b16 %v2515
        %v2829 = vunpack.c.h.b16 %v2515
        %v2830 = vunpack.c.l.b16 %v2516
        %v2831 = vunpack.c.h.b16 %v2516
        %v2832 = vunpack.c.l.b16 %v2517
        %v2833 = vunpack.c.h.b16 %v2517
        %v2834 = vunpack.c.l.b16 %v2518
        %v2835 = vunpack.c.h.b16 %v2518
        %v2836 = vunpack.c.l.b16 %v2519
        %v2837 = vunpack.c.h.b16 %v2519
        %v2838 = vunpack.c.l.b16 %v2520
        %v2839 = vunpack.c.h.b16 %v2520
        %v2840 = vunpack.c.l.b16 %v2521
        %v2841 = vunpack.c.h.b16 %v2521
        %v2842 = vunpack.c.l.b16 %v2522
        %v2843 = vunpack.c.h.b16 %v2522
        %v2844 = vunpack.c.l.b16 %v2523
        %v2845 = vunpack.c.h.b16 %v2523
        %v2846 = vunpack.c.l.b16 %v2524
        %v2847 = vunpack.c.h.b16 %v2524
        %v2848 = vunpack.c.l.b16 %v2525
        %v2849 = vunpack.c.h.b16 %v2525
        %v2850 = vunpack.c.l.b16 %v2526
        %v2851 = vunpack.c.h.b16 %v2526
        %v2852 = vunpack.c.l.b16 %v2527
        %v2853 = vunpack.c.h.b16 %v2527
        %v2854 = vunpack.c.l.b16 %v2528
        %v2855 = vunpack.c.h.b16 %v2528
        %v2856 = vunpack.c.l.b16 %v2529
        %v2857 = vunpack.c.h.b16 %v2529
        %v2858 = vunpack.c.l.b16 %v2530
        %v2859 = vunpack.c.h.b16 %v2530
        %v2860 = vunpack.c.l.b16 %v2531
        %v2861 = vunpack.c.h.b16 %v2531
        %v2862 = vunpack.c.l.b16 %v2532
        %v2863 = vunpack.c.h.b16 %v2532
        %v2864 = vunpack.c.l.b16 %v2533
        %v2865 = vunpack.c.h.b16 %v2533
        %v2866 = vunpack.c.l.b16 %v2534
        %v2867 = vunpack.c.h.b16 %v2534
        %v2868 = vunpack.c.l.b16 %v2535
        %v2869 = vunpack.c.h.b16 %v2535
        %v2870 = vunpack.c.l.b16 %v2536
        %v2871 = vunpack.c.h.b16 %v2536
        %v2872 = vunpack.c.l.b16 %v2537
        %v2873 = vunpack.c.h.b16 %v2537
        %v2874 = vunpack.c.l.b16 %v2538
        %v2875 = vunpack.c.h.b16 %v2538
        %v2876 = vunpack.c.l.b16 %v2539
        %v2877 = vunpack.c.h.b16 %v2539
        %v2878 = vunpack.c.l.b16 %v2540
        %v2879 = vunpack.c.h.b16 %v2540
        %v2880 = vunpack.c.l.b16 %v2541
        %v2881 = vunpack.c.h.b16 %v2541
        %v2882 = vunpack.c.l.b16 %v2542
        %v2883 = vunpack.c.h.b16 %v2542
        %v2884 = vunpack.c.l.b16 %v2543
        %v2885 = vunpack.c.h.b16 %v2543
        %v2886 = vunpack.c.l.b16 %v2544
        %v2887 = vunpack.c.h.b16 %v2544
        %v2888 = vunpack.c.l.b16 %v2545
        %v2889 = vunpack.c.h.b16 %v2545
        %v2890 = vunpack.c.l.b16 %v2546
        %v2891 = vunpack.c.h.b16 %v2546
        %v2892 = vunpack.c.l.b16 %v2547
        %v2893 = vunpack.c.h.b16 %v2547
        %v2894 = vunpack.c.l.b16 %v2548
        %v2895 = vunpack.c.h.b16 %v2548
        %v2896 = vunpack.c.l.b16 %v2549
        %v2897 = vunpack.c.h.b16 %v2549
        %v2898 = vunpack.c.l.b16 %v2550
        %v2899 = vunpack.c.h.b16 %v2550
        %v2900 = vunpack.c.l.b16 %v2551
        %v2901 = vunpack.c.h.b16 %v2551
        %v2902 = vunpack.c.l.b16 %v2552
        %v2903 = vunpack.c.h.b16 %v2552
        %v2904 = vunpack.c.l.b16 %v2553
        %v2905 = vunpack.c.h.b16 %v2553
        %v2906 = vunpack.c.l.b16 %v2554
        %v2907 = vunpack.c.h.b16 %v2554
        %v2908 = vunpack.c.l.b16 %v2555
        %v2909 = vunpack.c.h.b16 %v2555
        %v2910 = vunpack.c.l.b16 %v2556
        %v2911 = vunpack.c.h.b16 %v2556
        %v2912 = vunpack.c.l.b16 %v2557
        %v2913 = vunpack.c.h.b16 %v2557
        %v2914 = vunpack.c.l.b16 %v2558
        %v2915 = vunpack.c.h.b16 %v2558
        %v2916 = vunpack.c.l.b16 %v2559
        %v2917 = vunpack.c.h.b16 %v2559
        %v2918 = vunpack.c.l.b16 %v2560
        %v2919 = vunpack.c.h.b16 %v2560
        %v2920 = vunpack.c.l.b16 %v2561
        %v2921 = vunpack.c.h.b16 %v2561
        %v2922 = vunpack.c.l.b16 %v2562
        %v2923 = vunpack.c.h.b16 %v2562
        %v2924 = vunpack.c.l.b16 %v2563
        %v2925 = vunpack.c.h.b16 %v2563
        %v2926 = vunpack.c.l.b16 %v2564
        %v2927 = vunpack.c.h.b16 %v2564
        %v2928 = vunpack.c.l.b16 %v2565
        %v2929 = vunpack.c.h.b16 %v2565
        %v2930 = vunpack.c.l.b16 %v2566
        %v2931 = vunpack.c.h.b16 %v2566
        %v2932 = vunpack.c.l.b16 %v2567
        %v2933 = vunpack.c.h.b16 %v2567
        %v2934 = vunpack.c.l.b16 %v2568
        %v2935 = vunpack.c.h.b16 %v2568
        %v2936 = vunpack.c.l.b16 %v2569
        %v2937 = vunpack.c.h.b16 %v2569
        %v2938 = vunpack.c.l.b16 %v2570
        %v2939 = vunpack.c.h.b16 %v2570
        %v2940 = vunpack.c.l.b16 %v2571
        %v2941 = vunpack.c.h.b16 %v2571
        %v2942 = vunpack.c.l.b16 %v2572
        %v2943 = vunpack.c.h.b16 %v2572
        %v2944 = vunpack.c.l.b16 %v2573
        %v2945 = vunpack.c.h.b16 %v2573
        %v2946 = vunpack.c.l.b16 %v2574
        %v2947 = vunpack.c.h.b16 %v2574
        %v2948 = vunpack.c.l.b16 %v2575
        %v2949 = vunpack.c.h.b16 %v2575
        %v2950 = vunpack.c.l.b16 %v2576
        %v2951 = vunpack.c.h.b16 %v2576
        %v2952 = vunpack.c.l.b16 %v2577
        %v2953 = vunpack.c.h.b16 %v2577
        %v2954 = vunpack.c.l.b16 %v2578
        %v2955 = vunpack.c.h.b16 %v2578
        %v2956 = vunpack.c.l.b16 %v2579
        %v2957 = vunpack.c.h.b16 %v2579
        %v2958 = vunpack.c.l.b16 %v2580
        %v2959 = vunpack.c.h.b16 %v2580
        %v2960 = vunpack.c.l.b16 %v2581
        %v2961 = vunpack.c.h.b16 %v2581
        %v2962 = vunpack.c.l.b16 %v2582
        %v2963 = vunpack.c.h.b16 %v2582
        %v2964 = vunpack.c.l.b16 %v2583
        %v2965 = vunpack.c.h.b16 %v2583
        %v2966 = vunpack.c.l.b16 %v2584
        %v2967 = vunpack.c.h.b16 %v2584
        %v2968 = vunpack.c.l.b16 %v2585
        %v2969 = vunpack.c.h.b16 %v2585
        %v2970 = vpack.c.b16 %v2716, %v2714
        %v2971 = vpack.c.b16 %v2717, %v2715
        %v2972 = vpack.c.b16 %v2720, %v2718
        %v2973 = vpack.c.b16 %v2721, %v2719
        %v2974 = vpack.c.b16 %v2724, %v2722
        %v2975 = vpack.c.b16 %v2725, %v2723
        %v2976 = vpack.c.b16 %v2728, %v2726
        %v2977 = vpack.c.b16 %v2729, %v2727
        %v2978 = vpack.c.b16 %v2732, %v2730
        %v2979 = vpack.c.b16 %v2733, %v2731
        %v2980 = vpack.c.b16 %v2736, %v2734
        %v2981 = vpack.c.b16 %v2737, %v2735
        %v2982 = vpack.c.b16 %v2740, %v2738
        %v2983 = vpack.c.b16 %v2741, %v2739
        %v2984 = vpack.c.b16 %v2744, %v2742
        %v2985 = vpack.c.b16 %v2745, %v2743
        %v2986 = vpack.c.b16 %v2748, %v2746
        %v2987 = vpack.c.b16 %v2749, %v2747
        %v2988 = vpack.c.b16 %v2752, %v2750
        %v2989 = vpack.c.b16 %v2753, %v2751
        %v2990 = vpack.c.b16 %v2756, %v2754
        %v2991 = vpack.c.b16 %v2757, %v2755
        %v2992 = vpack.c.b16 %v2760, %v2758
        %v2993 = vpack.c.b16 %v2761, %v2759
        %v2994 = vpack.c.b16 %v2764, %v2762
        %v2995 = vpack.c.b16 %v2765, %v2763
        %v2996 = vpack.c.b16 %v2768, %v2766
        %v2997 = vpack.c.b16 %v2769, %v2767
        %v2998 = vpack.c.b16 %v2772, %v2770
        %v2999 = vpack.c.b16 %v2773, %v2771
        %v3000 = vpack.c.b16 %v2776, %v2774
        %v3001 = vpack.c.b16 %v2777, %v2775
        %v3002 = vpack.c.b16 %v2780, %v2778
        %v3003 = vpack.c.b16 %v2781, %v2779
        %v3004 = vpack.c.b16 %v2784, %v2782
        %v3005 = vpack.c.b16 %v2785, %v2783
        %v3006 = vpack.c.b16 %v2788, %v2786
        %v3007 = vpack.c.b16 %v2789, %v2787
        %v3008 = vpack.c.b16 %v2792, %v2790
        %v3009 = vpack.c.b16 %v2793, %v2791
        %v3010 = vpack.c.b16 %v2796, %v2794
        %v3011 = vpack.c.b16 %v2797, %v2795
        %v3012 = vpack.c.b16 %v2800, %v2798
        %v3013 = vpack.c.b16 %v2801, %v2799
        %v3014 = vpack.c.b16 %v2804, %v2802
        %v3015 = vpack.c.b16 %v2805, %v2803
        %v3016 = vpack.c.b16 %v2808, %v2806
        %v3017 = vpack.c.b16 %v2809, %v2807
        %v3018 = vpack.c.b16 %v2812, %v2810
        %v3019 = vpack.c.b16 %v2813, %v2811
        %v3020 = vpack.c.b16 %v2816, %v2814
        %v3021 = vpack.c.b16 %v2817, %v2815
        %v3022 = vpack.c.b16 %v2820, %v2818
        %v3023 = vpack.c.b16 %v2821, %v2819
        %v3024 = vpack.c.b16 %v2824, %v2822
        %v3025 = vpack.c.b16 %v2825, %v2823
        %v3026 = vpack.c.b16 %v2828, %v2826
        %v3027 = vpack.c.b16 %v2829, %v2827
        %v3028 = vpack.c.b16 %v2832, %v2830
        %v3029 = vpack.c.b16 %v2833, %v2831
        %v3030 = vpack.c.b16 %v2836, %v2834
        %v3031 = vpack.c.b16 %v2837, %v2835
        %v3032 = vpack.c.b16 %v2840, %v2838
        %v3033 = vpack.c.b16 %v2841, %v2839
        %v3034 = vpack.c.b16 %v2844, %v2842
        %v3035 = vpack.c.b16 %v2845, %v2843
        %v3036 = vpack.c.b16 %v2848, %v2846
        %v3037 = vpack.c.b16 %v2849, %v2847
        %v3038 = vpack.c.b16 %v2852, %v2850
        %v3039 = vpack.c.b16 %v2853, %v2851
        %v3040 = vpack.c.b16 %v2856, %v2854
        %v3041 = vpack.c.b16 %v2857, %v2855
        %v3042 = vpack.c.b16 %v2860, %v2858
        %v3043 = vpack.c.b16 %v2861, %v2859
        %v3044 = vpack.c.b16 %v2864, %v2862
        %v3045 = vpack.c.b16 %v2865, %v2863
        %v3046 = vpack.c.b16 %v2868, %v2866
        %v3047 = vpack.c.b16 %v2869, %v2867
        %v3048 = vpack.c.b16 %v2872, %v2870
        %v3049 = vpack.c.b16 %v2873, %v2871
        %v3050 = vpack.c.b16 %v2876, %v2874
        %v3051 = vpack.c.b16 %v2877, %v2875
        %v3052 = vpack.c.b16 %v2880, %v2878
        %v3053 = vpack.c.b16 %v2881, %v2879
        %v3054 = vpack.c.b16 %v2884, %v2882
        %v3055 = vpack.c.b16 %v2885, %v2883
        %v3056 = vpack.c.b16 %v2888, %v2886
        %v3057 = vpack.c.b16 %v2889, %v2887
        %v3058 = vpack.c.b16 %v2892, %v2890
        %v3059 = vpack.c.b16 %v2893, %v2891
        %v3060 = vpack.c.b16 %v2896, %v2894
        %v3061 = vpack.c.b16 %v2897, %v2895
        %v3062 = vpack.c.b16 %v2900, %v2898
        %v3063 = vpack.c.b16 %v2901, %v2899
        %v3064 = vpack.c.b16 %v2904, %v2902
        %v3065 = vpack.c.b16 %v2905, %v2903
        %v3066 = vpack.c.b16 %v2908, %v2906
        %v3067 = vpack.c.b16 %v2909, %v2907
        %v3068 = vpack.c.b16 %v2912, %v2910
        %v3069 = vpack.c.b16 %v2913, %v2911
        %v3070 = vpack.c.b16 %v2916, %v2914
        %v3071 = vpack.c.b16 %v2917, %v2915
        %v3072 = vpack.c.b16 %v2920, %v2918
        %v3073 = vpack.c.b16 %v2921, %v2919
        %v3074 = vpack.c.b16 %v2924, %v2922
        %v3075 = vpack.c.b16 %v2925, %v2923
        %v3076 = vpack.c.b16 %v2928, %v2926
        %v3077 = vpack.c.b16 %v2929, %v2927
        %v3078 = vpack.c.b16 %v2932, %v2930
        %v3079 = vpack.c.b16 %v2933, %v2931
        %v3080 = vpack.c.b16 %v2936, %v2934
        %v3081 = vpack.c.b16 %v2937, %v2935
        %v3082 = vpack.c.b16 %v2940, %v2938
        %v3083 = vpack.c.b16 %v2941, %v2939
        %v3084 = vpack.c.b16 %v2944, %v2942
        %v3085 = vpack.c.b16 %v2945, %v2943
        %v3086 = vpack.c.b16 %v2948, %v2946
        %v3087 = vpack.c.b16 %v2949, %v2947
        %v3088 = vpack.c.b16 %v2952, %v2950
        %v3089 = vpack.c.b16 %v2953, %v2951
        %v3090 = vpack.c.b16 %v2956, %v2954
        %v3091 = vpack.c.b16 %v2957, %v2955
        %v3092 = vpack.c.b16 %v2960, %v2958
        %v3093 = vpack.c.b16 %v2961, %v2959
        %v3094 = vpack.c.b16 %v2964, %v2962
        %v3095 = vpack.c.b16 %v2965, %v2963
        %v3096 = vpack.c.b16 %v2968, %v2966
        %v3097 = vpack.c.b16 %v2969, %v2967
        %3226 = vmatprep.subr.bf16.mxu0 %v2971
        %3227 = vmatpush1.bf16.msra.mxu0 %v2970
        %3228 = vmatprep.subr.bf16.mxu0 %v2973
        %3229 = vmatpush1.bf16.msra.mxu0 %v2972
        %3230 = vmatprep.subr.bf16.mxu0 %v2975
        %3231 = vmatpush1.bf16.msra.mxu0 %v2974
        %3232 = vmatprep.subr.bf16.mxu0 %v2977
        %3233 = vmatpush1.bf16.msra.mxu0 %v2976
        %3234 = vmatprep.subr.bf16.mxu0 %v2979
        %3235 = vmatpush1.bf16.msra.mxu0 %v2978
        %3236 = vmatprep.subr.bf16.mxu0 %v2981
        %3237 = vmatpush1.bf16.msra.mxu0 %v2980
        %3238 = vmatprep.subr.bf16.mxu0 %v2983
        %3239 = vmatpush1.bf16.msra.mxu0 %v2982
        %3240 = vmatprep.subr.bf16.mxu0 %v2985
        %3241 = vmatpush1.bf16.msra.mxu0 %v2984
        %3242 = vmatprep.subr.bf16.mxu0 %v2987
        %3243 = vmatpush1.bf16.msra.mxu0 %v2986
        %3244 = vmatprep.subr.bf16.mxu0 %v2989
        %3245 = vmatpush1.bf16.msra.mxu0 %v2988
        %3246 = vmatprep.subr.bf16.mxu0 %v2991
        %3247 = vmatpush1.bf16.msra.mxu0 %v2990
        %3248 = vmatprep.subr.bf16.mxu0 %v2993
        %3249 = vmatpush1.bf16.msra.mxu0 %v2992
        %3250 = vmatprep.subr.bf16.mxu0 %v2995
        %3251 = vmatpush1.bf16.msra.mxu0 %v2994
        %3252 = vmatprep.subr.bf16.mxu0 %v2997
        %3253 = vmatpush1.bf16.msra.mxu0 %v2996
        %3254 = vmatprep.subr.bf16.mxu0 %v2999
        %3255 = vmatpush1.bf16.msra.mxu0 %v2998
        %3256 = vmatprep.subr.bf16.mxu0 %v3001
        %3257 = vmatpush1.bf16.msra.mxu0 %v3000
        %3258 = vmatprep.mubr.bf16.mxu0 %v2395
        %3259 = vmatmul.mubr.bf16.gmra.mrb[0].mxu0 %v2394
        %v3260 = vpop.f32.mrb[0].mxu0
        %v3261 = vadd.f32 0.0, %v3260
        %v3262 = vpop.f32.mrb[0].mxu0
        %v3263 = vadd.f32 0.0, %v3262
        %v3264 = vpop.f32.mrb[0].mxu0
        %v3265 = vadd.f32 0.0, %v3264
        %v3266 = vpop.f32.mrb[0].mxu0
        %v3267 = vadd.f32 0.0, %v3266
        %3268 = vmatprep.mubr.bf16.mxu0 %v2403
        %3269 = vmatmul.mubr.bf16.gmra.mrb[0].mxu0 %v2402
        %v3270 = vpop.f32.mrb[0].mxu0
        %v3271 = vadd.f32 0.0, %v3270
        %v3272 = vpop.f32.mrb[0].mxu0
        %v3273 = vadd.f32 0.0, %v3272
        %v3274 = vpop.f32.mrb[0].mxu0
        %v3275 = vadd.f32 0.0, %v3274
        %v3276 = vpop.f32.mrb[0].mxu0
        %v3277 = vadd.f32 0.0, %v3276
        %3278 = vmatprep.mubr.bf16.mxu0 %v2411
        %3279 = vmatmul.mubr.bf16.gmra.mrb[0].mxu0 %v2410
        %v3280 = vpop.f32.mrb[0].mxu0
        %v3281 = vadd.f32 0.0, %v3280
        %v3282 = vpop.f32.mrb[0].mxu0
        %v3283 = vadd.f32 0.0, %v3282
        %v3284 = vpop.f32.mrb[0].mxu0
        %v3285 = vadd.f32 0.0, %v3284
        %v3286 = vpop.f32.mrb[0].mxu0
        %v3287 = vadd.f32 0.0, %v3286
        %3288 = vmatprep.mubr.bf16.mxu0 %v2419
        %3289 = vmatmul.mubr.bf16.gmra.mrb[0].mxu0 %v2418
        %v3290 = vpop.f32.mrb[0].mxu0
        %v3291 = vadd.f32 0.0, %v3290
        %v3292 = vpop.f32.mrb[0].mxu0
        %v3293 = vadd.f32 0.0, %v3292
        %v3294 = vpop.f32.mrb[0].mxu0
        %v3295 = vadd.f32 0.0, %v3294
        %v3296 = vpop.f32.mrb[0].mxu0
        %v3297 = vadd.f32 0.0, %v3296
        %3298 = vmatprep.mubr.bf16.mxu0 %v2427
        %3299 = vmatmul.mubr.bf16.gmra.mrb[0].mxu0 %v2426
        %v3300 = vpop.f32.mrb[0].mxu0
        %v3301 = vadd.f32 0.0, %v3300
        %v3302 = vpop.f32.mrb[0].mxu0
        %v3303 = vadd.f32 0.0, %v3302
        %v3304 = vpop.f32.mrb[0].mxu0
        %v3305 = vadd.f32 0.0, %v3304
        %v3306 = vpop.f32.mrb[0].mxu0
        %v3307 = vadd.f32 0.0, %v3306
        %3308 = vmatprep.mubr.bf16.mxu0 %v2435
        %3309 = vmatmul.mubr.bf16.gmra.mrb[0].mxu0 %v2434
        %v3310 = vpop.f32.mrb[0].mxu0
        %v3311 = vadd.f32 0.0, %v3310
        %v3312 = vpop.f32.mrb[0].mxu0
        %v3313 = vadd.f32 0.0, %v3312
        %v3314 = vpop.f32.mrb[0].mxu0
        %v3315 = vadd.f32 0.0, %v3314
        %v3316 = vpop.f32.mrb[0].mxu0
        %v3317 = vadd.f32 0.0, %v3316
        %3318 = vmatprep.mubr.bf16.mxu0 %v2443
        %3319 = vmatmul.mubr.bf16.gmra.mrb[0].mxu0 %v2442
        %v3320 = vpop.f32.mrb[0].mxu0
        %v3321 = vadd.f32 0.0, %v3320
        %v3322 = vpop.f32.mrb[0].mxu0
        %v3323 = vadd.f32 0.0, %v3322
        %v3324 = vpop.f32.mrb[0].mxu0
        %v3325 = vadd.f32 0.0, %v3324
        %v3326 = vpop.f32.mrb[0].mxu0
        %v3327 = vadd.f32 0.0, %v3326
        %3328 = vmatprep.mubr.bf16.mxu0 %v2451
        %3329 = vmatmul.mubr.bf16.gmra.mrb[0].mxu0 %v2450
        %v3330 = vpop.f32.mrb[0].mxu0
        %v3331 = vadd.f32 0.0, %v3330
        %v3332 = vpop.f32.mrb[0].mxu0
        %v3333 = vadd.f32 0.0, %v3332
        %v3334 = vpop.f32.mrb[0].mxu0
        %v3335 = vadd.f32 0.0, %v3334
        %v3336 = vpop.f32.mrb[0].mxu0
        %v3337 = vadd.f32 0.0, %v3336
        %3338 = vdwg.mxu0
        %3339 = vmatprep.subr.bf16.mxu0 %v3003
        %3340 = vmatpush1.bf16.msra.mxu0 %v3002
        %3341 = vmatprep.subr.bf16.mxu0 %v3005
        %3342 = vmatpush1.bf16.msra.mxu0 %v3004
        %3343 = vmatprep.subr.bf16.mxu0 %v3007
        %3344 = vmatpush1.bf16.msra.mxu0 %v3006
        %3345 = vmatprep.subr.bf16.mxu0 %v3009
        %3346 = vmatpush1.bf16.msra.mxu0 %v3008
        %3347 = vmatprep.subr.bf16.mxu0 %v3011
        %3348 = vmatpush1.bf16.msra.mxu0 %v3010
        %3349 = vmatprep.subr.bf16.mxu0 %v3013
        %3350 = vmatpush1.bf16.msra.mxu0 %v3012
        %3351 = vmatprep.subr.bf16.mxu0 %v3015
        %3352 = vmatpush1.bf16.msra.mxu0 %v3014
        %3353 = vmatprep.subr.bf16.mxu0 %v3017
        %3354 = vmatpush1.bf16.msra.mxu0 %v3016
        %3355 = vmatprep.subr.bf16.mxu0 %v3019
        %3356 = vmatpush1.bf16.msra.mxu0 %v3018
        %3357 = vmatprep.subr.bf16.mxu0 %v3021
        %3358 = vmatpush1.bf16.msra.mxu0 %v3020
        %3359 = vmatprep.subr.bf16.mxu0 %v3023
        %3360 = vmatpush1.bf16.msra.mxu0 %v3022
        %3361 = vmatprep.subr.bf16.mxu0 %v3025
        %3362 = vmatpush1.bf16.msra.mxu0 %v3024
        %3363 = vmatprep.subr.bf16.mxu0 %v3027
        %3364 = vmatpush1.bf16.msra.mxu0 %v3026
        %3365 = vmatprep.subr.bf16.mxu0 %v3029
        %3366 = vmatpush1.bf16.msra.mxu0 %v3028
        %3367 = vmatprep.subr.bf16.mxu0 %v3031
        %3368 = vmatpush1.bf16.msra.mxu0 %v3030
        %3369 = vmatprep.subr.bf16.mxu0 %v3033
        %3370 = vmatpush1.bf16.msra.mxu0 %v3032
        %3371 = vmatprep.mubr.bf16.mxu0 %v2397
        %3372 = vmatmul.mubr.bf16.gmra.mrb[0].mxu0 %v2396
        %v3373 = vpop.f32.mrb[0].mxu0
        %v3374 = vadd.f32 %v3261, %v3373
        %v3375 = vpop.f32.mrb[0].mxu0
        %v3376 = vadd.f32 %v3263, %v3375
        %v3377 = vpop.f32.mrb[0].mxu0
        %v3378 = vadd.f32 %v3265, %v3377
        %v3379 = vpop.f32.mrb[0].mxu0
        %v3380 = vadd.f32 %v3267, %v3379
        %3381 = vmatprep.mubr.bf16.mxu0 %v2405
        %3382 = vmatmul.mubr.bf16.gmra.mrb[0].mxu0 %v2404
        %v3383 = vpop.f32.mrb[0].mxu0
        %v3384 = vadd.f32 %v3271, %v3383
        %v3385 = vpop.f32.mrb[0].mxu0
        %v3386 = vadd.f32 %v3273, %v3385
        %v3387 = vpop.f32.mrb[0].mxu0
        %v3388 = vadd.f32 %v3275, %v3387
        %v3389 = vpop.f32.mrb[0].mxu0
        %v3390 = vadd.f32 %v3277, %v3389
        %3391 = vmatprep.mubr.bf16.mxu0 %v2413
        %3392 = vmatmul.mubr.bf16.gmra.mrb[0].mxu0 %v2412
        %v3393 = vpop.f32.mrb[0].mxu0
        %v3394 = vadd.f32 %v3281, %v3393
        %v3395 = vpop.f32.mrb[0].mxu0
        %v3396 = vadd.f32 %v3283, %v3395
        %v3397 = vpop.f32.mrb[0].mxu0
        %v3398 = vadd.f32 %v3285, %v3397
        %v3399 = vpop.f32.mrb[0].mxu0
        %v3400 = vadd.f32 %v3287, %v3399
        %3401 = vmatprep.mubr.bf16.mxu0 %v2421
        %3402 = vmatmul.mubr.bf16.gmra.mrb[0].mxu0 %v2420
        %v3403 = vpop.f32.mrb[0].mxu0
        %v3404 = vadd.f32 %v3291, %v3403
        %v3405 = vpop.f32.mrb[0].mxu0
        %v3406 = vadd.f32 %v3293, %v3405
        %v3407 = vpop.f32.mrb[0].mxu0
        %v3408 = vadd.f32 %v3295, %v3407
        %v3409 = vpop.f32.mrb[0].mxu0
        %v3410 = vadd.f32 %v3297, %v3409
        %3411 = vmatprep.mubr.bf16.mxu0 %v2429
        %3412 = vmatmul.mubr.bf16.gmra.mrb[0].mxu0 %v2428
        %v3413 = vpop.f32.mrb[0].mxu0
        %v3414 = vadd.f32 %v3301, %v3413
        %v3415 = vpop.f32.mrb[0].mxu0
        %v3416 = vadd.f32 %v3303, %v3415
        %v3417 = vpop.f32.mrb[0].mxu0
        %v3418 = vadd.f32 %v3305, %v3417
        %v3419 = vpop.f32.mrb[0].mxu0
        %v3420 = vadd.f32 %v3307, %v3419
        %3421 = vmatprep.mubr.bf16.mxu0 %v2437
        %3422 = vmatmul.mubr.bf16.gmra.mrb[0].mxu0 %v2436
        %v3423 = vpop.f32.mrb[0].mxu0
        %v3424 = vadd.f32 %v3311, %v3423
        %v3425 = vpop.f32.mrb[0].mxu0
        %v3426 = vadd.f32 %v3313, %v3425
        %v3427 = vpop.f32.mrb[0].mxu0
        %v3428 = vadd.f32 %v3315, %v3427
        %v3429 = vpop.f32.mrb[0].mxu0
        %v3430 = vadd.f32 %v3317, %v3429
        %3431 = vmatprep.mubr.bf16.mxu0 %v2445
        %3432 = vmatmul.mubr.bf16.gmra.mrb[0].mxu0 %v2444
        %v3433 = vpop.f32.mrb[0].mxu0
        %v3434 = vadd.f32 %v3321, %v3433
        %v3435 = vpop.f32.mrb[0].mxu0
        %v3436 = vadd.f32 %v3323, %v3435
        %v3437 = vpop.f32.mrb[0].mxu0
        %v3438 = vadd.f32 %v3325, %v3437
        %v3439 = vpop.f32.mrb[0].mxu0
        %v3440 = vadd.f32 %v3327, %v3439
        %3441 = vmatprep.mubr.bf16.mxu0 %v2453
        %3442 = vmatmul.mubr.bf16.gmra.mrb[0].mxu0 %v2452
        %v3443 = vpop.f32.mrb[0].mxu0
        %v3444 = vadd.f32 %v3331, %v3443
        %v3445 = vpop.f32.mrb[0].mxu0
        %v3446 = vadd.f32 %v3333, %v3445
        %v3447 = vpop.f32.mrb[0].mxu0
        %v3448 = vadd.f32 %v3335, %v3447
        %v3449 = vpop.f32.mrb[0].mxu0
        %v3450 = vadd.f32 %v3337, %v3449
        %3451 = vdwg.mxu0
        %3452 = vmatprep.subr.bf16.mxu0 %v3035
        %3453 = vmatpush1.bf16.msra.mxu0 %v3034
        %3454 = vmatprep.subr.bf16.mxu0 %v3037
        %3455 = vmatpush1.bf16.msra.mxu0 %v3036
        %3456 = vmatprep.subr.bf16.mxu0 %v3039
        %3457 = vmatpush1.bf16.msra.mxu0 %v3038
        %3458 = vmatprep.subr.bf16.mxu0 %v3041
        %3459 = vmatpush1.bf16.msra.mxu0 %v3040
        %3460 = vmatprep.subr.bf16.mxu0 %v3043
        %3461 = vmatpush1.bf16.msra.mxu0 %v3042
        %3462 = vmatprep.subr.bf16.mxu0 %v3045
        %3463 = vmatpush1.bf16.msra.mxu0 %v3044
        %3464 = vmatprep.subr.bf16.mxu0 %v3047
        %3465 = vmatpush1.bf16.msra.mxu0 %v3046
        %3466 = vmatprep.subr.bf16.mxu0 %v3049
        %3467 = vmatpush1.bf16.msra.mxu0 %v3048
        %3468 = vmatprep.subr.bf16.mxu0 %v3051
        %3469 = vmatpush1.bf16.msra.mxu0 %v3050
        %3470 = vmatprep.subr.bf16.mxu0 %v3053
        %3471 = vmatpush1.bf16.msra.mxu0 %v3052
        %3472 = vmatprep.subr.bf16.mxu0 %v3055
        %3473 = vmatpush1.bf16.msra.mxu0 %v3054
        %3474 = vmatprep.subr.bf16.mxu0 %v3057
        %3475 = vmatpush1.bf16.msra.mxu0 %v3056
        %3476 = vmatprep.subr.bf16.mxu0 %v3059
        %3477 = vmatpush1.bf16.msra.mxu0 %v3058
        %3478 = vmatprep.subr.bf16.mxu0 %v3061
        %3479 = vmatpush1.bf16.msra.mxu0 %v3060
        %3480 = vmatprep.subr.bf16.mxu0 %v3063
        %3481 = vmatpush1.bf16.msra.mxu0 %v3062
        %3482 = vmatprep.subr.bf16.mxu0 %v3065
        %3483 = vmatpush1.bf16.msra.mxu0 %v3064
        %3484 = vmatprep.mubr.bf16.mxu0 %v2399
        %3485 = vmatmul.mubr.bf16.gmra.mrb[0].mxu0 %v2398
        %v3486 = vpop.f32.mrb[0].mxu0
        %v3487 = vadd.f32 %v3374, %v3486
        %v3488 = vpop.f32.mrb[0].mxu0
        %v3489 = vadd.f32 %v3376, %v3488
        %v3490 = vpop.f32.mrb[0].mxu0
        %v3491 = vadd.f32 %v3378, %v3490
        %v3492 = vpop.f32.mrb[0].mxu0
        %v3493 = vadd.f32 %v3380, %v3492
        %3494 = vmatprep.mubr.bf16.mxu0 %v2407
        %3495 = vmatmul.mubr.bf16.gmra.mrb[0].mxu0 %v2406
        %v3496 = vpop.f32.mrb[0].mxu0
        %v3497 = vadd.f32 %v3384, %v3496
        %v3498 = vpop.f32.mrb[0].mxu0
        %v3499 = vadd.f32 %v3386, %v3498
        %v3500 = vpop.f32.mrb[0].mxu0
        %v3501 = vadd.f32 %v3388, %v3500
        %v3502 = vpop.f32.mrb[0].mxu0
        %v3503 = vadd.f32 %v3390, %v3502
        %3504 = vmatprep.mubr.bf16.mxu0 %v2415
        %3505 = vmatmul.mubr.bf16.gmra.mrb[0].mxu0 %v2414
        %v3506 = vpop.f32.mrb[0].mxu0
        %v3507 = vadd.f32 %v3394, %v3506
        %v3508 = vpop.f32.mrb[0].mxu0
        %v3509 = vadd.f32 %v3396, %v3508
        %v3510 = vpop.f32.mrb[0].mxu0
        %v3511 = vadd.f32 %v3398, %v3510
        %v3512 = vpop.f32.mrb[0].mxu0
        %v3513 = vadd.f32 %v3400, %v3512
        %3514 = vmatprep.mubr.bf16.mxu0 %v2423
        %3515 = vmatmul.mubr.bf16.gmra.mrb[0].mxu0 %v2422
        %v3516 = vpop.f32.mrb[0].mxu0
        %v3517 = vadd.f32 %v3404, %v3516
        %v3518 = vpop.f32.mrb[0].mxu0
        %v3519 = vadd.f32 %v3406, %v3518
        %v3520 = vpop.f32.mrb[0].mxu0
        %v3521 = vadd.f32 %v3408, %v3520
        %v3522 = vpop.f32.mrb[0].mxu0
        %v3523 = vadd.f32 %v3410, %v3522
        %3524 = vmatprep.mubr.bf16.mxu0 %v2431
        %3525 = vmatmul.mubr.bf16.gmra.mrb[0].mxu0 %v2430
        %v3526 = vpop.f32.mrb[0].mxu0
        %v3527 = vadd.f32 %v3414, %v3526
        %v3528 = vpop.f32.mrb[0].mxu0
        %v3529 = vadd.f32 %v3416, %v3528
        %v3530 = vpop.f32.mrb[0].mxu0
        %v3531 = vadd.f32 %v3418, %v3530
        %v3532 = vpop.f32.mrb[0].mxu0
        %v3533 = vadd.f32 %v3420, %v3532
        %3534 = vmatprep.mubr.bf16.mxu0 %v2439
        %3535 = vmatmul.mubr.bf16.gmra.mrb[0].mxu0 %v2438
        %v3536 = vpop.f32.mrb[0].mxu0
        %v3537 = vadd.f32 %v3424, %v3536
        %v3538 = vpop.f32.mrb[0].mxu0
        %v3539 = vadd.f32 %v3426, %v3538
        %v3540 = vpop.f32.mrb[0].mxu0
        %v3541 = vadd.f32 %v3428, %v3540
        %v3542 = vpop.f32.mrb[0].mxu0
        %v3543 = vadd.f32 %v3430, %v3542
        %3544 = vmatprep.mubr.bf16.mxu0 %v2447
        %3545 = vmatmul.mubr.bf16.gmra.mrb[0].mxu0 %v2446
        %v3546 = vpop.f32.mrb[0].mxu0
        %v3547 = vadd.f32 %v3434, %v3546
        %v3548 = vpop.f32.mrb[0].mxu0
        %v3549 = vadd.f32 %v3436, %v3548
        %v3550 = vpop.f32.mrb[0].mxu0
        %v3551 = vadd.f32 %v3438, %v3550
        %v3552 = vpop.f32.mrb[0].mxu0
        %v3553 = vadd.f32 %v3440, %v3552
        %3554 = vmatprep.mubr.bf16.mxu0 %v2455
        %3555 = vmatmul.mubr.bf16.gmra.mrb[0].mxu0 %v2454
        %v3556 = vpop.f32.mrb[0].mxu0
        %v3557 = vadd.f32 %v3444, %v3556
        %v3558 = vpop.f32.mrb[0].mxu0
        %v3559 = vadd.f32 %v3446, %v3558
        %v3560 = vpop.f32.mrb[0].mxu0
        %v3561 = vadd.f32 %v3448, %v3560
        %v3562 = vpop.f32.mrb[0].mxu0
        %v3563 = vadd.f32 %v3450, %v3562
        %3564 = vdwg.mxu0
        %3565 = vmatprep.subr.bf16.mxu0 %v3067
        %3566 = vmatpush1.bf16.msra.mxu0 %v3066
        %3567 = vmatprep.subr.bf16.mxu0 %v3069
        %3568 = vmatpush1.bf16.msra.mxu0 %v3068
        %3569 = vmatprep.subr.bf16.mxu0 %v3071
        %3570 = vmatpush1.bf16.msra.mxu0 %v3070
        %3571 = vmatprep.subr.bf16.mxu0 %v3073
        %3572 = vmatpush1.bf16.msra.mxu0 %v3072
        %3573 = vmatprep.subr.bf16.mxu0 %v3075
        %3574 = vmatpush1.bf16.msra.mxu0 %v3074
        %3575 = vmatprep.subr.bf16.mxu0 %v3077
        %3576 = vmatpush1.bf16.msra.mxu0 %v3076
        %3577 = vmatprep.subr.bf16.mxu0 %v3079
        %3578 = vmatpush1.bf16.msra.mxu0 %v3078
        %3579 = vmatprep.subr.bf16.mxu0 %v3081
        %3580 = vmatpush1.bf16.msra.mxu0 %v3080
        %3581 = vmatprep.subr.bf16.mxu0 %v3083
        %3582 = vmatpush1.bf16.msra.mxu0 %v3082
        %3583 = vmatprep.subr.bf16.mxu0 %v3085
        %3584 = vmatpush1.bf16.msra.mxu0 %v3084
        %3585 = vmatprep.subr.bf16.mxu0 %v3087
        %3586 = vmatpush1.bf16.msra.mxu0 %v3086
        %3587 = vmatprep.subr.bf16.mxu0 %v3089
        %3588 = vmatpush1.bf16.msra.mxu0 %v3088
        %3589 = vmatprep.subr.bf16.mxu0 %v3091
        %3590 = vmatpush1.bf16.msra.mxu0 %v3090
        %3591 = vmatprep.subr.bf16.mxu0 %v3093
        %3592 = vmatpush1.bf16.msra.mxu0 %v3092
        %3593 = vmatprep.subr.bf16.mxu0 %v3095
        %3594 = vmatpush1.bf16.msra.mxu0 %v3094
        %3595 = vmatprep.subr.bf16.mxu0 %v3097
        %3596 = vmatpush1.bf16.msra.mxu0 %v3096
        %3597 = vmatprep.mubr.bf16.mxu0 %v2401
        %3598 = vmatmul.mubr.bf16.gmra.mrb[0].mxu0 %v2400
        %v3599 = vpop.f32.mrb[0].mxu0
        %v3600 = vadd.f32 %v3487, %v3599
        %v3601 = vpop.f32.mrb[0].mxu0
        %v3602 = vadd.f32 %v3489, %v3601
        %v3603 = vpop.f32.mrb[0].mxu0
        %v3604 = vadd.f32 %v3491, %v3603
        %v3605 = vpop.f32.mrb[0].mxu0
        %v3606 = vadd.f32 %v3493, %v3605
        %3607 = vmatprep.mubr.bf16.mxu0 %v2409
        %3608 = vmatmul.mubr.bf16.gmra.mrb[0].mxu0 %v2408
        %v3609 = vpop.f32.mrb[0].mxu0
        %v3610 = vadd.f32 %v3497, %v3609
        %v3611 = vpop.f32.mrb[0].mxu0
        %v3612 = vadd.f32 %v3499, %v3611
        %v3613 = vpop.f32.mrb[0].mxu0
        %v3614 = vadd.f32 %v3501, %v3613
        %v3615 = vpop.f32.mrb[0].mxu0
        %v3616 = vadd.f32 %v3503, %v3615
        %3617 = vmatprep.mubr.bf16.mxu0 %v2417
        %3618 = vmatmul.mubr.bf16.gmra.mrb[0].mxu0 %v2416
        %v3619 = vpop.f32.mrb[0].mxu0
        %v3620 = vadd.f32 %v3507, %v3619
        %v3621 = vpop.f32.mrb[0].mxu0
        %v3622 = vadd.f32 %v3509, %v3621
        %v3623 = vpop.f32.mrb[0].mxu0
        %v3624 = vadd.f32 %v3511, %v3623
        %v3625 = vpop.f32.mrb[0].mxu0
        %v3626 = vadd.f32 %v3513, %v3625
        %3627 = vmatprep.mubr.bf16.mxu0 %v2425
        %3628 = vmatmul.mubr.bf16.gmra.mrb[0].mxu0 %v2424
        %v3629 = vpop.f32.mrb[0].mxu0
        %v3630 = vadd.f32 %v3517, %v3629
        %v3631 = vpop.f32.mrb[0].mxu0
        %v3632 = vadd.f32 %v3519, %v3631
        %v3633 = vpop.f32.mrb[0].mxu0
        %v3634 = vadd.f32 %v3521, %v3633
        %v3635 = vpop.f32.mrb[0].mxu0
        %v3636 = vadd.f32 %v3523, %v3635
        %3637 = vmatprep.mubr.bf16.mxu0 %v2433
        %3638 = vmatmul.mubr.bf16.gmra.mrb[0].mxu0 %v2432
        %v3639 = vpop.f32.mrb[0].mxu0
        %v3640 = vadd.f32 %v3527, %v3639
        %v3641 = vpop.f32.mrb[0].mxu0
        %v3642 = vadd.f32 %v3529, %v3641
        %v3643 = vpop.f32.mrb[0].mxu0
        %v3644 = vadd.f32 %v3531, %v3643
        %v3645 = vpop.f32.mrb[0].mxu0
        %v3646 = vadd.f32 %v3533, %v3645
        %3647 = vmatprep.mubr.bf16.mxu0 %v2441
        %3648 = vmatmul.mubr.bf16.gmra.mrb[0].mxu0 %v2440
        %v3649 = vpop.f32.mrb[0].mxu0
        %v3650 = vadd.f32 %v3537, %v3649
        %v3651 = vpop.f32.mrb[0].mxu0
        %v3652 = vadd.f32 %v3539, %v3651
        %v3653 = vpop.f32.mrb[0].mxu0
        %v3654 = vadd.f32 %v3541, %v3653
        %v3655 = vpop.f32.mrb[0].mxu0
        %v3656 = vadd.f32 %v3543, %v3655
        %3657 = vmatprep.mubr.bf16.mxu0 %v2449
        %3658 = vmatmul.mubr.bf16.gmra.mrb[0].mxu0 %v2448
        %v3659 = vpop.f32.mrb[0].mxu0
        %v3660 = vadd.f32 %v3547, %v3659
        %v3661 = vpop.f32.mrb[0].mxu0
        %v3662 = vadd.f32 %v3549, %v3661
        %v3663 = vpop.f32.mrb[0].mxu0
        %v3664 = vadd.f32 %v3551, %v3663
        %v3665 = vpop.f32.mrb[0].mxu0
        %v3666 = vadd.f32 %v3553, %v3665
        %3667 = vmatprep.mubr.bf16.mxu0 %v2457
        %3668 = vmatmul.mubr.bf16.gmra.mrb[0].mxu0 %v2456
        %v3669 = vpop.f32.mrb[0].mxu0
        %v3670 = vadd.f32 %v3557, %v3669
        %v3671 = vpop.f32.mrb[0].mxu0
        %v3672 = vadd.f32 %v3559, %v3671
        %v3673 = vpop.f32.mrb[0].mxu0
        %v3674 = vadd.f32 %v3561, %v3673
        %v3675 = vpop.f32.mrb[0].mxu0
        %v3676 = vadd.f32 %v3563, %v3675
        %3677 = vdwg.mxu0
        %v3678 = vadd.f32 %v2362, %v3600
        %v3679 = vadd.f32 %v2363, %v3602
        %v3680 = vadd.f32 %v2364, %v3604
        %v3681 = vadd.f32 %v2365, %v3606
        %v3682 = vadd.f32 %v2366, %v3610
        %v3683 = vadd.f32 %v2367, %v3612
        %v3684 = vadd.f32 %v2368, %v3614
        %v3685 = vadd.f32 %v2369, %v3616
        %v3686 = vadd.f32 %v2370, %v3620
        %v3687 = vadd.f32 %v2371, %v3622
        %v3688 = vadd.f32 %v2372, %v3624
        %v3689 = vadd.f32 %v2373, %v3626
        %v3690 = vadd.f32 %v2374, %v3630
        %v3691 = vadd.f32 %v2375, %v3632
        %v3692 = vadd.f32 %v2376, %v3634
        %v3693 = vadd.f32 %v2377, %v3636
        %v3694 = vadd.f32 %v2378, %v3640
        %v3695 = vadd.f32 %v2379, %v3642
        %v3696 = vadd.f32 %v2380, %v3644
        %v3697 = vadd.f32 %v2381, %v3646
        %v3698 = vadd.f32 %v2382, %v3650
        %v3699 = vadd.f32 %v2383, %v3652
        %v3700 = vadd.f32 %v2384, %v3654
        %v3701 = vadd.f32 %v2385, %v3656
        %v3702 = vadd.f32 %v2386, %v3660
        %v3703 = vadd.f32 %v2387, %v3662
        %v3704 = vadd.f32 %v2388, %v3664
        %v3705 = vadd.f32 %v2389, %v3666
        %v3706 = vadd.f32 %v2390, %v3670
        %v3707 = vadd.f32 %v2391, %v3672
        %v3708 = vadd.f32 %v2392, %v3674
        %v3709 = vadd.f32 %v2393, %v3676
        %3710 = vst [vmem:[#allocation2] sm:$0xff] %v3678
        %3711 = vst [vmem:[#allocation2 + $0x8] sm:$0xff] %v3679
        %3712 = vst [vmem:[#allocation2 + $0x10] sm:$0xff] %v3680
        %3713 = vst [vmem:[#allocation2 + $0x18] sm:$0xff] %v3681
        %3714 = vst [vmem:[#allocation2 + $0x20] sm:$0xff] %v3682
        %3715 = vst [vmem:[#allocation2 + $0x28] sm:$0xff] %v3683
        %3716 = vst [vmem:[#allocation2 + $0x30] sm:$0xff] %v3684
        %3717 = vst [vmem:[#allocation2 + $0x38] sm:$0xff] %v3685
        %3718 = vst [vmem:[#allocation2 + $0x40] sm:$0xff] %v3686
        %3719 = vst [vmem:[#allocation2 + $0x48] sm:$0xff] %v3687
        %3720 = vst [vmem:[#allocation2 + $0x50] sm:$0xff] %v3688
        %3721 = vst [vmem:[#allocation2 + $0x58] sm:$0xff] %v3689
        %3722 = vst [vmem:[#allocation2 + $0x60] sm:$0xff] %v3690
        %3723 = vst [vmem:[#allocation2 + $0x68] sm:$0xff] %v3691
        %3724 = vst [vmem:[#allocation2 + $0x70] sm:$0xff] %v3692
        %3725 = vst [vmem:[#allocation2 + $0x78] sm:$0xff] %v3693
        %3726 = vst [vmem:[#allocation2 + $0x80] sm:$0xff] %v3694
        %3727 = vst [vmem:[#allocation2 + $0x88] sm:$0xff] %v3695
        %3728 = vst [vmem:[#allocation2 + $0x90] sm:$0xff] %v3696
        %3729 = vst [vmem:[#allocation2 + $0x98] sm:$0xff] %v3697
        %3730 = vst [vmem:[#allocation2 + $0xa0] sm:$0xff] %v3698
        %3731 = vst [vmem:[#allocation2 + $0xa8] sm:$0xff] %v3699
        %3732 = vst [vmem:[#allocation2 + $0xb0] sm:$0xff] %v3700
        %3733 = vst [vmem:[#allocation2 + $0xb8] sm:$0xff] %v3701
        %3734 = vst [vmem:[#allocation2 + $0xc0] sm:$0xff] %v3702
        %3735 = vst [vmem:[#allocation2 + $0xc8] sm:$0xff] %v3703
        %3736 = vst [vmem:[#allocation2 + $0xd0] sm:$0xff] %v3704
        %3737 = vst [vmem:[#allocation2 + $0xd8] sm:$0xff] %v3705
        %3738 = vst [vmem:[#allocation2 + $0xe0] sm:$0xff] %v3706
        %3739 = vst [vmem:[#allocation2 + $0xe8] sm:$0xff] %v3707
        %3740 = vst [vmem:[#allocation2 + $0xf0] sm:$0xff] %v3708
        %3741 = vst [vmem:[#allocation2 + $0xf8] sm:$0xff] %v3709
        // Predicated region
        $region61: #{tpu_custom_call.1} parent=39 // pred_check
          %p3742 = pneg %p328
        $region62: #{tpu_custom_call.1} parent=39 // pred_check_branch
          %3744 = sbr.rel (%p3742) target = $region64
        $region63: #{tpu_custom_call.1} parent=39 // pred_region
          %v3745 = vld [vmem:[#allocation2] sm:$0xff]
          %v3746 = vld [vmem:[#allocation2 + $0x8] sm:$0xff]
          %v3747 = vld [vmem:[#allocation2 + $0x10] sm:$0xff]
          %v3748 = vld [vmem:[#allocation2 + $0x18] sm:$0xff]
          %v3749 = vld [vmem:[#allocation2 + $0x20] sm:$0xff]
          %v3750 = vld [vmem:[#allocation2 + $0x28] sm:$0xff]
          %v3751 = vld [vmem:[#allocation2 + $0x30] sm:$0xff]
          %v3752 = vld [vmem:[#allocation2 + $0x38] sm:$0xff]
          %v3753 = vld [vmem:[#allocation2 + $0x40] sm:$0xff]
          %v3754 = vld [vmem:[#allocation2 + $0x48] sm:$0xff]
          %v3755 = vld [vmem:[#allocation2 + $0x50] sm:$0xff]
          %v3756 = vld [vmem:[#allocation2 + $0x58] sm:$0xff]
          %v3757 = vld [vmem:[#allocation2 + $0x60] sm:$0xff]
          %v3758 = vld [vmem:[#allocation2 + $0x68] sm:$0xff]
          %v3759 = vld [vmem:[#allocation2 + $0x70] sm:$0xff]
          %v3760 = vld [vmem:[#allocation2 + $0x78] sm:$0xff]
          %v3761 = vld [vmem:[#allocation2 + $0x80] sm:$0xff]
          %v3762 = vld [vmem:[#allocation2 + $0x88] sm:$0xff]
          %v3763 = vld [vmem:[#allocation2 + $0x90] sm:$0xff]
          %v3764 = vld [vmem:[#allocation2 + $0x98] sm:$0xff]
          %v3765 = vld [vmem:[#allocation2 + $0xa0] sm:$0xff]
          %v3766 = vld [vmem:[#allocation2 + $0xa8] sm:$0xff]
          %v3767 = vld [vmem:[#allocation2 + $0xb0] sm:$0xff]
          %v3768 = vld [vmem:[#allocation2 + $0xb8] sm:$0xff]
          %v3769 = vld [vmem:[#allocation2 + $0xc0] sm:$0xff]
          %v3770 = vld [vmem:[#allocation2 + $0xc8] sm:$0xff]
          %v3771 = vld [vmem:[#allocation2 + $0xd0] sm:$0xff]
          %v3772 = vld [vmem:[#allocation2 + $0xd8] sm:$0xff]
          %v3773 = vld [vmem:[#allocation2 + $0xe0] sm:$0xff]
          %v3774 = vld [vmem:[#allocation2 + $0xe8] sm:$0xff]
          %v3775 = vld [vmem:[#allocation2 + $0xf0] sm:$0xff]
          %v3776 = vld [vmem:[#allocation2 + $0xf8] sm:$0xff]
          %v3777 = vld [vmem:[%s4] sm:$0x3]
          %v3779 = vlaneseq
          %v3780 = vshrl.u32 %v3779, 7
          %v3781 = vsub.s32 0, %v3780
          %v3782 = vrot.slane %v3777, %v3781
          %v3783 = vlaneseq
          %v3784 = vshrl.u32 %v3783, 7
          %v3785 = vsub.s32 1, %v3784
          %v3786 = vrot.slane %v3777, %v3785
          %v3789 = vadd.f32 %v3745, %v3782
          %v3790 = vadd.f32 %v3746, %v3786
          %v3791 = vadd.f32 %v3747, %v3782
          %v3792 = vadd.f32 %v3748, %v3786
          %v3793 = vadd.f32 %v3749, %v3782
          %v3794 = vadd.f32 %v3750, %v3786
          %v3795 = vadd.f32 %v3751, %v3782
          %v3796 = vadd.f32 %v3752, %v3786
          %v3797 = vadd.f32 %v3753, %v3782
          %v3798 = vadd.f32 %v3754, %v3786
          %v3799 = vadd.f32 %v3755, %v3782
          %v3800 = vadd.f32 %v3756, %v3786
          %v3801 = vadd.f32 %v3757, %v3782
          %v3802 = vadd.f32 %v3758, %v3786
          %v3803 = vadd.f32 %v3759, %v3782
          %v3804 = vadd.f32 %v3760, %v3786
          %v3805 = vadd.f32 %v3761, %v3782
          %v3806 = vadd.f32 %v3762, %v3786
          %v3807 = vadd.f32 %v3763, %v3782
          %v3808 = vadd.f32 %v3764, %v3786
          %v3809 = vadd.f32 %v3765, %v3782
          %v3810 = vadd.f32 %v3766, %v3786
          %v3811 = vadd.f32 %v3767, %v3782
          %v3812 = vadd.f32 %v3768, %v3786
          %v3813 = vadd.f32 %v3769, %v3782
          %v3814 = vadd.f32 %v3770, %v3786
          %v3815 = vadd.f32 %v3771, %v3782
          %v3816 = vadd.f32 %v3772, %v3786
          %v3817 = vadd.f32 %v3773, %v3782
          %v3818 = vadd.f32 %v3774, %v3786
          %v3819 = vadd.f32 %v3775, %v3782
          %v3820 = vadd.f32 %v3776, %v3786
          %3821 = vst [vmem:[%s322] sm:$0xff] %v3789
          %3822 = vst [vmem:[%s322 + $0x8] sm:$0xff] %v3790
          %3823 = vst [vmem:[%s322 + $0x10] sm:$0xff] %v3791
          %3824 = vst [vmem:[%s322 + $0x18] sm:$0xff] %v3792
          %3825 = vst [vmem:[%s322 + $0x20] sm:$0xff] %v3793
          %3826 = vst [vmem:[%s322 + $0x28] sm:$0xff] %v3794
          %3827 = vst [vmem:[%s322 + $0x30] sm:$0xff] %v3795
          %3828 = vst [vmem:[%s322 + $0x38] sm:$0xff] %v3796
          %3829 = vst [vmem:[%s322 + $0x40] sm:$0xff] %v3797
          %3830 = vst [vmem:[%s322 + $0x48] sm:$0xff] %v3798
          %3831 = vst [vmem:[%s322 + $0x50] sm:$0xff] %v3799
          %3832 = vst [vmem:[%s322 + $0x58] sm:$0xff] %v3800
          %3833 = vst [vmem:[%s322 + $0x60] sm:$0xff] %v3801
          %3834 = vst [vmem:[%s322 + $0x68] sm:$0xff] %v3802
          %3835 = vst [vmem:[%s322 + $0x70] sm:$0xff] %v3803
          %3836 = vst [vmem:[%s322 + $0x78] sm:$0xff] %v3804
          %3837 = vst [vmem:[%s322 + $0x80] sm:$0xff] %v3805
          %3838 = vst [vmem:[%s322 + $0x88] sm:$0xff] %v3806
          %3839 = vst [vmem:[%s322 + $0x90] sm:$0xff] %v3807
          %3840 = vst [vmem:[%s322 + $0x98] sm:$0xff] %v3808
          %3841 = vst [vmem:[%s322 + $0xa0] sm:$0xff] %v3809
          %3842 = vst [vmem:[%s322 + $0xa8] sm:$0xff] %v3810
          %3843 = vst [vmem:[%s322 + $0xb0] sm:$0xff] %v3811
          %3844 = vst [vmem:[%s322 + $0xb8] sm:$0xff] %v3812
          %3845 = vst [vmem:[%s322 + $0xc0] sm:$0xff] %v3813
          %3846 = vst [vmem:[%s322 + $0xc8] sm:$0xff] %v3814
          %3847 = vst [vmem:[%s322 + $0xd0] sm:$0xff] %v3815
          %3848 = vst [vmem:[%s322 + $0xd8] sm:$0xff] %v3816
          %3849 = vst [vmem:[%s322 + $0xe0] sm:$0xff] %v3817
          %3850 = vst [vmem:[%s322 + $0xe8] sm:$0xff] %v3818
          %3851 = vst [vmem:[%s322 + $0xf0] sm:$0xff] %v3819
          %3852 = vst [vmem:[%s322 + $0xf8] sm:$0xff] %v3820
        $region64: #{tpu_custom_call.1} parent=39 // pred_fallthru
          _
        %s3853 = sand.u32 %s169, 1
        %s3854 = scalar_lea.sflag [#allocation5], %s3853
        %s3855 = sand.u32 %s169, 1
        %s3856 = smul.addr %s3855, 256
        %s3857 = scalar_lea.vmem [#allocation11], %s3856
        // Predicated region
        $region65: #{tpu_custom_call.1} parent=39 // pred_check
          %p3858 = pneg %p179
        $region66: #{tpu_custom_call.1} parent=39 // pred_check_branch
          %3860 = sbr.rel (%p3858) target = $region68
        $region67: #{tpu_custom_call.1} parent=39 // pred_region
          %s3861 = smul.u32 16, %s28
          %s3863 = ssub.s32 4096, 4096
          %3864 = vsyncadd %s3854, %s3863
          %s3865 = smul.addr %s3861, 2
          %s3866 = smul.addr %s3865, 128
          %s3867 = scalar_lea.hbm %s5, %s3866
          %s3868 = sshll.u32 %s3857, 4
          %s3869 = int_to_ptr.vmem [resolvable:$true] %s3868
          %3874 = dma.vmem_to_hbm [thread:$0]  %s3869, 4096, %s3867, %s3854, 256, 256, 16
        $region68: #{tpu_custom_call.1} parent=39 // pred_fallthru
          _
      $region40: #{tpu_custom_call.1} parent=5 // pred_fallthru
        _
      %p3875 = scmp.le.s32.totalorder 2, %s19
      // Predicated region
      $region69: #{tpu_custom_call.1} parent=5 // pred_check
        %p3876 = pneg %p3875
      $region70: #{tpu_custom_call.1} parent=5 // pred_check_branch
        %3878 = sbr.rel (%p3876) target = $region72
      $region71: #{tpu_custom_call.1} parent=5 // pred_region
        %s3879 = ssub.s32 %s19, 2
        // Predicated region
        $region73: #{tpu_custom_call.1} parent=71 // pred_check
          %p3880 = pneg %p185
        $region74: #{tpu_custom_call.1} parent=71 // pred_check_branch
          %3882 = sbr.rel (%p3880) target = $region76
        $region75: #{tpu_custom_call.1} parent=71 // pred_region
          %s3883 = sand.u32 %s170, 1
          %s3884 = scalar_lea.sflag [#allocation5], %s3883
          %s3885 = sand.u32 %s170, 1
          %s3886 = smul.addr %s3885, 256
          %s3887 = scalar_lea.vmem [#allocation11], %s3886
          %3888 = dma.done %s3884, 4096
        $region76: #{tpu_custom_call.1} parent=71 // pred_fallthru
          _
      $region72: #{tpu_custom_call.1} parent=5 // pred_fallthru
        _
    $region6: #{tpu_custom_call.1} parent=1 // loop_footer
      %s23 = sadd.s32 1, %s19
    $region7: #{tpu_custom_call.1} parent=1 // loop_footer_branch
      %18 = sbr.rel target = $region3
    $region8: #{tpu_custom_call.1} parent=1 // loop_exit
      _
    %3889 = vsyncpa [#allocation4], 1
    %s3890 = scalar_lea.sflag [#allocation4], 1
    %3891 = vsyncpa %s3890, 1
    %3892 = vsyncpa [#allocation7], 1
    %3893 = vsyncpa [#allocation10], 1
    %3894 = vsyncpa [#allocation5], 1
    %s3895 = scalar_lea.sflag [#allocation5], 1
    %3896 = vsyncpa %s3895, 1

</llo_original>
